<compile_context>
chip_gen: v6e
topology: v6e:2x2x1
jax: 0.10.0
libtpu: 0.0.40
codegen_flags: <defaults>
</compile_context>

<pallas_src>
import functools
import random

import jax
import jax.numpy as jnp
from jax.experimental import pallas as pl
from jax.experimental.pallas import tpu as pltpu

MXU_DTYPE = jnp.bfloat16   # matmul-operand dtype; elementwise math stays float32


def _round_up(x, m):
    return ((x + m - 1) // m) * m


# ----------------------------------------------------------------------------
# Shared gate math (PyTorch LSTM semantics, gate order [i, f, g, o])
# ----------------------------------------------------------------------------
def _lstm_gate_update(gates, c):
    """gates: (B, 4H) f32 pre-activations; c: (B, H) f32. Returns (h_new, c_new)."""
    H = c.shape[-1]
    # Apply sigmoid/tanh on the full (B, 4H) lane-dense tile (lane mask selects
    # tanh for the g-gate) instead of 4 quarter-width activation passes.
    lane = jax.lax.broadcasted_iota(jnp.int32, gates.shape, 1)
    is_tanh = jnp.logical_and(lane >= 2 * H, lane < 3 * H)
    act = jnp.where(is_tanh, jnp.tanh(gates), jax.nn.sigmoid(gates))
    i_g = act[:, 0 * H:1 * H]
    f_g = act[:, 1 * H:2 * H]
    g_g = act[:, 2 * H:3 * H]
    o_g = act[:, 3 * H:4 * H]
    c_new = f_g * c + i_g * g_g
    h_new = o_g * jnp.tanh(c_new)
    return h_new, c_new


# ----------------------------------------------------------------------------
# Kernel 1: big input projection  y = x @ w + b   (tiled over output lanes)
# ----------------------------------------------------------------------------
def _linear_kernel(x_ref, w_ref, b_ref, o_ref):
    o_ref[...] = (jnp.dot(x_ref[...], w_ref[...],
                          preferred_element_type=jnp.float32) + b_ref[...])


def linear(x, w, b, *, block_n=512):
    M, K = x.shape
    N = w.shape[1]
    Mp = _round_up(M, 8)
    Np = _round_up(N, 128)
    if Mp != M:
        x = jnp.pad(x, ((0, Mp - M), (0, 0)))
    if Np != N:
        w = jnp.pad(w, ((0, 0), (0, Np - N)))
        b = jnp.pad(b, ((0, 0), (0, Np - N)))
    tn = Np if (Np <= block_n or Np % block_n != 0) else block_n
    out = pl.pallas_call(
        _linear_kernel,
        grid=(Np // tn,),
        in_specs=[pl.BlockSpec((Mp, K), lambda j: (0, 0)),
                  pl.BlockSpec((K, tn), lambda j: (0, j)),
                  pl.BlockSpec((1, tn), lambda j: (0, j))],
        out_specs=pl.BlockSpec((Mp, tn), lambda j: (0, j)),
        out_shape=jax.ShapeDtypeStruct((Mp, Np), jnp.float32),
        compiler_params=pltpu.CompilerParams(
            dimension_semantics=("parallel",)),
    )(x, w, b)
    return out[:M, :N]


# ----------------------------------------------------------------------------
# Kernel 2: full BIDIRECTIONAL LSTM recurrence over time in ONE pallas_call
#   grid=(T,).  Forward direction consumes time tile t, backward consumes tile
#   T-1-t of the same pre-projected gate tensor (two BlockSpecs, one array).
#   Carried (h, c) for both directions live in VMEM scratch; the summed final
#   (hidden, cell) is emitted on the last grid step.
# ----------------------------------------------------------------------------
def _bilstm_seq_kernel(xg_f_ref, xg_b_ref, m_f_ref, m_b_ref,
                       whh_f_ref, whh_b_ref,
                       out_f_ref, out_b_ref, hsum_ref, csum_ref,
                       hf_ref, cf_ref, hb_ref, cb_ref):
    t = pl.program_id(0)
    T = pl.num_programs(0)

    @pl.when(t == 0)
    def _():
        hf_ref[...] = jnp.zeros_like(hf_ref)
        cf_ref[...] = jnp.zeros_like(cf_ref)
        hb_ref[...] = jnp.zeros_like(hb_ref)
        cb_ref[...] = jnp.zeros_like(cb_ref)

    def step(xg, m, h, c, whh):
        gates = xg + jnp.dot(h.astype(MXU_DTYPE), whh[...],
                             preferred_element_type=jnp.float32)
        h_new, c_new = _lstm_gate_update(gates, c)
        # padded (t >= length) steps carry (h, c) through unchanged
        h_new = m * h_new + (1.0 - m) * h
        c_new = m * c_new + (1.0 - m) * c
        return h_new, c_new

    m_f = m_f_ref[0]                            # (Bp, 1): 1 = valid, 0 = padded
    m_b = m_b_ref[0]
    hf, cf = step(xg_f_ref[0], m_f, hf_ref[...], cf_ref[...], whh_f_ref)
    hb, cb = step(xg_b_ref[0], m_b, hb_ref[...], cb_ref[...], whh_b_ref)
    hf_ref[...] = hf
    cf_ref[...] = cf
    hb_ref[...] = hb
    cb_ref[...] = cb
    out_f_ref[0] = hf * m_f                     # zeros at padded steps (pad_packed)
    out_b_ref[0] = hb * m_b

    @pl.when(t == T - 1)
    def _():
        # hidden.view(L, 2, B, H).sum(dim=1) -- sum over directions, in-kernel
        hsum_ref[...] = hf + hb
        csum_ref[...] = cf + cb


def lstm_bidir_scan(xg, mask, w_hh_f, w_hh_b):
    """Both LSTM directions over all timesteps in one pallas_call (grid over T)."""
    T, Bp, G2 = xg.shape
    G = G2 // 2                                 # 4H per direction
    H = w_hh_f.shape[0]
    f_tmap = lambda t: (t, 0, 0)
    b_tmap = lambda t: (T - 1 - t, 0, 0)
    if G % 128 == 0:
        # Read both directions' gate slabs straight out of the fused (T,Bp,8H)
        # projection via two lane-block index maps (no XLA slice copies).
        xg_f_in, xg_b_in = xg, xg
        f_gmap = lambda t: (t, 0, 0)
        b_gmap = lambda t: (T - 1 - t, 0, 1)
    else:
        xg_f_in, xg_b_in = xg[..., :G], xg[..., G:]
        f_gmap, b_gmap = f_tmap, b_tmap

    out_f, out_b, h_sum, c_sum = pl.pallas_call(
        _bilstm_seq_kernel,
        grid=(T,),
        in_specs=[pl.BlockSpec((1, Bp, G), f_gmap),          # fwd gate slab
                  pl.BlockSpec((1, Bp, G), b_gmap),          # bwd gate slab
                  pl.BlockSpec((1, Bp, 1), f_tmap),          # fwd validity mask
                  pl.BlockSpec((1, Bp, 1), b_tmap),          # bwd validity mask
                  pl.BlockSpec((H, G), lambda t: (0, 0)),    # W_hh fwd (resident)
                  pl.BlockSpec((H, G), lambda t: (0, 0))],   # W_hh bwd (resident)
        out_specs=[pl.BlockSpec((1, Bp, H), f_tmap),
                   pl.BlockSpec((1, Bp, H), b_tmap),
                   pl.BlockSpec((Bp, H), lambda t: (0, 0)),
                   pl.BlockSpec((Bp, H), lambda t: (0, 0))],
        out_shape=[jax.ShapeDtypeStruct((T, Bp, H), jnp.float32),
                   jax.ShapeDtypeStruct((T, Bp, H), jnp.float32),
                   jax.ShapeDtypeStruct((Bp, H), jnp.float32),
                   jax.ShapeDtypeStruct((Bp, H), jnp.float32)],
        scratch_shapes=[pltpu.VMEM((Bp, H), jnp.float32),    # h fwd carry
                        pltpu.VMEM((Bp, H), jnp.float32),    # c fwd carry
                        pltpu.VMEM((Bp, H), jnp.float32),    # h bwd carry
                        pltpu.VMEM((Bp, H), jnp.float32)],   # c bwd carry
        compiler_params=pltpu.CompilerParams(
            dimension_semantics=("arbitrary",)),
    )(xg_f_in, xg_b_in, mask, mask, w_hh_f, w_hh_b)
    return out_f, out_b, h_sum, c_sum


# ----------------------------------------------------------------------------
# Kernel 3: whole decoder loop (embedding + L LSTM layers + fc + argmax + token
#   selection) in ONE pallas_call, grid over decode steps. Teacher-forcing flags
#   arrive via scalar prefetch (SMEM).
# ----------------------------------------------------------------------------
def _decoder_seq_kernel(sel_ref, tf_ref, h0_ref, c0_ref, emb_ref,
                        wih_ref, whh_ref, b_ref, fcw_ref, fcb_ref,
                        out_ref, h_scr, c_scr, tok_scr):
    s = pl.program_id(0)

    @pl.when(s == 0)
    def _():
        h_scr[...] = h0_ref[...]
        c_scr[...] = c0_ref[...]
        tok_scr[...] = jnp.zeros_like(tok_scr)

    L, Bp, H = h_scr.shape
    Vp, Dp = emb_ref.shape

    # ---- token selection: teacher-forced token vs previous greedy argmax ----
    u = sel_ref[s]                                       # int32 scalar in {0, 1}
    tok = u * tf_ref[0] + (1 - u) * tok_scr[...]         # (Bp, 1) int32

    # ---- embedding lookup as one-hot @ table (MXU-friendly, no gather) ----
    # TODO(synk): for very large vocabularies replace the one-hot matmul with a
    # DMA gather on the embedding table kept in HBM.
    lane_v = jax.lax.broadcasted_iota(jnp.int32, (Bp, Vp), 1)
    one_hot = (lane_v == tok).astype(MXU_DTYPE)
    x = jnp.dot(one_hot, emb_ref[...], preferred_element_type=jnp.float32)  # (Bp, Dp)

    # ---- stacked multi-layer LSTM cell ----
    inp = x
    for l in range(L):
        h = h_scr[l]
        c = c_scr[l]
        if inp.shape[1] < Dp:     # pad hidden up to the stacked W_ih input width
            inp = jnp.concatenate(
                [inp, jnp.zeros((Bp, Dp - inp.shape[1]), jnp.float32)], axis=1)
        gates = (jnp.dot(inp.astype(MXU_DTYPE), wih_ref[l],
                         preferred_element_type=jnp.float32)
                 + jnp.dot(h.astype(MXU_DTYPE), whh_ref[l],
                           preferred_element_type=jnp.float32)
                 + b_ref[l])
        h, c = _lstm_gate_update(gates, c)
        h_scr[l] = h
        c_scr[l] = c
        inp = h

    # ---- output projection (padded vocab lanes carry bias -1e9) ----
    logits = (jnp.dot(inp.astype(MXU_DTYPE), fcw_ref[...],
                      preferred_element_type=jnp.float32) + fcb_ref[...])   # (Bp, Vp)
    out_ref[0] = logits

    # ---- greedy next token: first index attaining the row max ----
    m = jnp.max(logits, axis=1, keepdims=True)
    cand = jnp.where(logits >= m, lane_v.astype(jnp.float32), jnp.float32(Vp))
    tok_scr[...] = jnp.min(cand, axis=1, keepdims=True).astype(jnp.int32)


def decoder_forward(params, enc_h, enc_c, tgt, use_tgt, hidden_dim, num_layers):
    Bp, TGT_T = tgt.shape
    S = TGT_T - 1
    H = hidden_dim
    L = num_layers
    emb = params["emb"]
    Vp, Dp = emb.shape

    # teacher-forced token for step s is tgt[:, s]  (s=0 uses the start token)
    tf_tok = jnp.transpose(tgt[:, :S], (1, 0))[:, :, None].astype(jnp.int32)  # (S,Bp,1)

    grid_spec = pltpu.PrefetchScalarGridSpec(
        num_scalar_prefetch=1,
        grid=(S,),
        in_specs=[
            pl.BlockSpec((1, Bp, 1), lambda s, sel: (s, 0, 0)),        # tf tokens
            pl.BlockSpec((L, Bp, H), lambda s, sel: (0, 0, 0)),        # enc hidden
            pl.BlockSpec((L, Bp, H), lambda s, sel: (0, 0, 0)),        # enc cell
            pl.BlockSpec((Vp, Dp), lambda s, sel: (0, 0)),             # embedding
            pl.BlockSpec((L, Dp, 4 * H), lambda s, sel: (0, 0, 0)),    # W_ih stack
            pl.BlockSpec((L, H, 4 * H), lambda s, sel: (0, 0, 0)),     # W_hh stack
            pl.BlockSpec((L, 1, 4 * H), lambda s, sel: (0, 0, 0)),     # bias stack
            pl.BlockSpec((H, Vp), lambda s, sel: (0, 0)),              # fc weight
            pl.BlockSpec((1, Vp), lambda s, sel: (0, 0)),              # fc bias
        ],
        out_specs=pl.BlockSpec((1, Bp, Vp), lambda s, sel: (s, 0, 0)),
        scratch_shapes=[
            pltpu.VMEM((L, Bp, H), jnp.float32),   # hidden stack
            pltpu.VMEM((L, Bp, H), jnp.float32),   # cell stack
            pltpu.VMEM((Bp, 1), jnp.int32),        # previous argmax token
        ],
    )
    out = pl.pallas_call(
        _decoder_seq_kernel,
        grid_spec=grid_spec,
        out_shape=jax.ShapeDtypeStruct((S, Bp, Vp), jnp.float32),
        compiler_params=pltpu.CompilerParams(
            dimension_semantics=("arbitrary",)),
    )(use_tgt, tf_tok, enc_h, enc_c, emb,
      params["w_ih"], params["w_hh"], params["b"],
      params["fc_w"], params["fc_b"])
    return jnp.transpose(out, (1, 0, 2))            # (Bp, S, Vp)


# ----------------------------------------------------------------------------
# Encoder forward (glue in JAX, hot path in the Pallas kernels above)
# ----------------------------------------------------------------------------
def encoder_forward(params, src, src_lengths, hidden_dim, num_layers):
    # TODO(synk): encoder embedding gather stays in XLA (data-dependent gather).
    emb = jnp.take(params["emb"], src, axis=0)       # (Bp, T, E)
    Bp, T, _ = emb.shape
    H = hidden_dim
    layer_in = jnp.transpose(emb, (1, 0, 2))         # time-major (T, Bp, E)
    # validity mask emulating pack_padded_sequence: 1.0 where t < length
    mask = (jnp.arange(T, dtype=jnp.int32)[:, None]
            < src_lengths[None, :].astype(jnp.int32)).astype(jnp.float32)[:, :, None]

    hiddens, cells = [], []
    for l in range(num_layers):
        lay = params["lstm"][l]
        d_in = layer_in.shape[-1]

        # Fused fwd|bwd input projection for ALL timesteps: one big MXU matmul.
        xg = linear(layer_in.reshape(T * Bp, d_in).astype(MXU_DTYPE),
                    lay["w_ih_cat"], lay["b_cat"])
        xg = xg.reshape(T, Bp, 8 * H)

        # TODO(synk): on v7x the two directions could run on separate TensorCores.
        out_f, out_b, h_sum, c_sum = lstm_bidir_scan(
            xg, mask, lay["w_hh_f"], lay["w_hh_b"])

        hiddens.append(h_sum)                                 # summed in-kernel
        cells.append(c_sum)
        layer_in = jnp.concatenate([out_f, out_b], axis=-1)   # (T, Bp, 2H)

    return jnp.stack(hiddens, 0), jnp.stack(cells, 0)         # (L, Bp, H)


# ----------------------------------------------------------------------------
# Parameter construction (matches nn.LSTM/Linear/Embedding shapes & gate order)
# ----------------------------------------------------------------------------
def _init_lstm_layer(key, in_dim, hidden):
    k1, k2, k3, k4 = jax.random.split(key, 4)
    s = 1.0 / float(hidden) ** 0.5
    w_ih = jax.random.uniform(k1, (in_dim, 4 * hidden), jnp.float32, -s, s)
    w_hh = jax.random.uniform(k2, (hidden, 4 * hidden), jnp.float32, -s, s)
    b = (jax.random.uniform(k3, (1, 4 * hidden), jnp.float32, -s, s)
         + jax.random.uniform(k4, (1, 4 * hidden), jnp.float32, -s, s))
    return w_ih, w_hh, b


def init_params(key, input_dim, output_dim, embedding_dim, hidden_dim, num_layers):
    keys = jax.random.split(key, 3 * num_layers + 4)
    ki = iter(keys)

    # ---------------- encoder ----------------
    enc = {"emb": jax.random.normal(next(ki), (input_dim, embedding_dim), jnp.float32),
           "lstm": []}
    for l in range(num_layers):
        in_dim = embedding_dim if l == 0 else 2 * hidden_dim
        wf_ih, wf_hh, bf = _init_lstm_layer(next(ki), in_dim, hidden_dim)
        wb_ih, wb_hh, bb = _init_lstm_layer(next(ki), in_dim, hidden_dim)
        enc["lstm"].append({
            # pre-concatenated fwd|bwd input projection (kernel-ready)
            "w_ih_cat": jnp.concatenate([wf_ih, wb_ih], axis=1).astype(MXU_DTYPE),
            "b_cat": jnp.concatenate([bf, bb], axis=1),
            "w_hh_f": wf_hh.astype(MXU_DTYPE),
            "w_hh_b": wb_hh.astype(MXU_DTYPE),
        })

    # ------------- decoder (kernel-ready padded / stacked form) -------------
    Dp = max(embedding_dim, hidden_dim)        # common input width for stacked W_ih
    Vp = _round_up(output_dim, 128)            # lane-dense vocab padding
    emb = jax.random.normal(next(ki), (output_dim, embedding_dim), jnp.float32)
    emb_pad = jnp.zeros((Vp, Dp), jnp.float32).at[:output_dim, :embedding_dim].set(emb)

    wih_l, whh_l, b_l = [], [], []
    for l in range(num_layers):
        in_dim = embedding_dim if l == 0 else hidden_dim
        w_ih, w_hh, b = _init_lstm_layer(next(ki), in_dim, hidden_dim)
        wih_l.append(jnp.zeros((Dp, 4 * hidden_dim), jnp.float32).at[:in_dim].set(w_ih))
        whh_l.append(w_hh)
        b_l.append(b)
    s = 1.0 / float(hidden_dim) ** 0.5
    fc_w = jax.random.uniform(next(ki), (hidden_dim, output_dim), jnp.float32, -s, s)
    fc_b = jax.random.uniform(next(ki), (1, output_dim), jnp.float32, -s, s)

    # TODO(synk): for large H/vocab on v7x (64 MiB VMEM), stream per-layer weights
    # and tile the fc vocab dim instead of keeping everything resident.
    dec = {
        "emb": emb_pad.astype(MXU_DTYPE),                              # (Vp, Dp)
        "w_ih": jnp.stack(wih_l).astype(MXU_DTYPE),                    # (L, Dp, 4H)
        "w_hh": jnp.stack(whh_l).astype(MXU_DTYPE),                    # (L, H, 4H)
        "b": jnp.stack(b_l),                                           # (L, 1, 4H)
        "fc_w": jnp.pad(fc_w, ((0, 0), (0, Vp - output_dim))).astype(MXU_DTYPE),
        "fc_b": jnp.pad(fc_b, ((0, 0), (0, Vp - output_dim)),
                        constant_values=-1e9),                         # (1, Vp)
    }
    return enc, dec


# ----------------------------------------------------------------------------
# Top-level forward
# ----------------------------------------------------------------------------
@functools.partial(jax.jit, static_argnames=("hidden_dim", "num_layers"))
def _seq2seq_core(enc_params, dec_params, src, src_lengths, tgt, use_tgt,
                  hidden_dim, num_layers):
    hidden, cell = encoder_forward(enc_params, src, src_lengths,
                                   hidden_dim, num_layers)
    return decoder_forward(dec_params, hidden, cell, tgt, use_tgt,
                           hidden_dim, num_layers)


def seq2seq_forward(enc_params, dec_params, src, src_lengths, tgt,
                    hidden_dim, num_layers, output_dim,
                    teacher_forcing_ratio=0.5, seed=0):
    B, _ = src.shape
    TGT_T = tgt.shape[1]
    S = TGT_T - 1
    Bp = _round_up(max(B, 8), 8)     # pad batch to fill the 8-sublane vreg

    def pad_rows(a):
        return jnp.pad(a, ((0, Bp - B),) + ((0, 0),) * (a.ndim - 1))

    src_p = pad_rows(src)
    tgt_p = pad_rows(tgt)
    len_p = jnp.pad(src_lengths, (0, Bp - B))   # length 0 -> fully masked rows

    # TODO(synk): torch draws random.random() each step; reproduced host-side with
    # a fixed seed, fed to the fused decoder kernel via scalar prefetch.
    rng = random.Random(seed)
    draws = [rng.random() < teacher_forcing_ratio for _ in range(S)]
    use_tgt = jnp.array([1] + [int(draws[s - 1]) for s in range(1, S)],
                        dtype=jnp.int32)

    out_p = _seq2seq_core(enc_params, dec_params, src_p, len_p, tgt_p, use_tgt,
                          hidden_dim=hidden_dim, num_layers=num_layers)
    return out_p[:B, :, :output_dim]            # strip batch / vocab padding


# ----------------------------------------------------------------------------
if __name__ == "__main__":
    B = 4                 # batch
    SRC_T = 8             # source max length
    TGT_T = 6             # target length
    ENG_VOCAB = 20        # input_dim
    FR_VOCAB = 24         # output_dim
    E = 16                # embedding_dim
    H = 32                # hidden_dim (4H = 128 -> one full lane tile per cell)
    L = 2                 # num_layers

    key = jax.random.PRNGKey(0)
    k_param, k_src, k_tgt = jax.random.split(key, 3)

    enc_params, dec_params = init_params(k_param, ENG_VOCAB, FR_VOCAB, E, H, L)

    src = jax.random.randint(k_src, (B, SRC_T), 1, ENG_VOCAB, dtype=jnp.int32)
    src_lengths = jnp.array([8, 5, 7, 3], dtype=jnp.int32)
    pad_mask = jnp.arange(SRC_T)[None, :] < src_lengths[:, None]
    src = jnp.where(pad_mask, src, 0)
    tgt = jax.random.randint(k_tgt, (B, TGT_T), 1, FR_VOCAB, dtype=jnp.int32)

    outputs = seq2seq_forward(enc_params, dec_params, src, src_lengths, tgt,
                              hidden_dim=H, num_layers=L, output_dim=FR_VOCAB,
                              teacher_forcing_ratio=0.5, seed=0)
    outputs = jax.block_until_ready(outputs)

    assert outputs.shape == (B, TGT_T - 1, FR_VOCAB), outputs.shape
    assert outputs.dtype == jnp.float32
    assert bool(jnp.all(jnp.isfinite(outputs)))
    print("KERNEL_OK")
</pallas_src>

<mosaic_0001>
module attributes {stable_mosaic.version = 11 : i64} {
  func.func @_linear_kernel(%arg0: i32, %arg1: memref<64x64xbf16, #tpu.memory_space<vmem>>, %arg2: memref<64x256xbf16, #tpu.memory_space<vmem>>, %arg3: memref<1x256xf32, #tpu.memory_space<vmem>>, %arg4: memref<64x256xf32, #tpu.memory_space<vmem>>) attributes {dimension_semantics = [#tpu.dimension_semantics<parallel>], iteration_bounds = array<i64: 1>, scalar_prefetch = 0 : i64, scratch_operands = 0 : i64, tpu.core_type = #tpu.core_type<tc>, window_params = [{pipeline_mode = #tpu.pipeline_mode<synchronous>, transform_indices = @transform_0, window_bounds = array<i64: 64, 64>}, {transform_indices = @transform_1, window_bounds = array<i64: 64, 256>}, {transform_indices = @transform_2, window_bounds = array<i64: 1, 256>}, {transform_indices = @transform_3, window_bounds = array<i64: 64, 256>}]} {
    %c0 = arith.constant 0 : index
    %c0_0 = arith.constant 0 : index
    %0 = vector.load %arg1[%c0, %c0_0] : memref<64x64xbf16, #tpu.memory_space<vmem>>, vector<64x64xbf16>
    %c0_1 = arith.constant 0 : index
    %c0_2 = arith.constant 0 : index
    %1 = vector.load %arg2[%c0_1, %c0_2] : memref<64x256xbf16, #tpu.memory_space<vmem>>, vector<64x256xbf16>
    %cst = arith.constant dense<0.000000e+00> : vector<64x256xf32>
    %2 = tpu.matmul %0, %1, %cst {dimension_numbers = #tpu.dot_dimension_numbers<[1], [0], [0], [1], [0, 0, 1, 1], [], []>} : vector<64x64xbf16>, vector<64x256xbf16>, vector<64x256xf32> -> vector<64x256xf32>
    %c0_3 = arith.constant 0 : index
    %c0_4 = arith.constant 0 : index
    %3 = vector.load %arg3[%c0_3, %c0_4] : memref<1x256xf32, #tpu.memory_space<vmem>>, vector<1x256xf32>
    %4 = vector.broadcast %3 : vector<1x256xf32> to vector<64x256xf32>
    %5 = arith.addf %2, %4 : vector<64x256xf32>
    %c0_5 = arith.constant 0 : index
    %c0_6 = arith.constant 0 : index
    %6 = vector.load %arg4[%c0_5, %c0_6] : memref<64x256xf32, #tpu.memory_space<vmem>>, vector<64x256xf32>
    tpu.vector_store %arg4[%c0_5, %c0_6], %5 {strides = array<i32>} : memref<64x256xf32, #tpu.memory_space<vmem>>, vector<64x256xf32>,
    return
  }
  func.func @transform_0(%arg0: i32) -> (i32, i32) {
    %c0_i32 = arith.constant 0 : i32
    %c0_i32_0 = arith.constant 0 : i32
    %c0_i32_1 = arith.constant 0 : i32
    return %c0_i32, %c0_i32_0 : i32, i32
  }
  func.func @transform_1(%arg0: i32) -> (i32, i32) {
    %c0_i32 = arith.constant 0 : i32
    %c0_i32_0 = arith.constant 0 : i32
    return %c0_i32, %arg0 : i32, i32
  }
  func.func @transform_2(%arg0: i32) -> (i32, i32) {
    %c0_i32 = arith.constant 0 : i32
    %c0_i32_0 = arith.constant 0 : i32
    return %c0_i32, %arg0 : i32, i32
  }
  func.func @transform_3(%arg0: i32) -> (i32, i32) {
    %c0_i32 = arith.constant 0 : i32
    %c0_i32_0 = arith.constant 0 : i32
    return %c0_i32, %arg0 : i32, i32
  }
}

module attributes {stable_mosaic.version = 11 : i64} {
  func.func @_bilstm_seq_kernel(%arg0: i32, %arg1: memref<1x8x128xf32, #tpu.memory_space<vmem>>, %arg2: memref<1x8x128xf32, #tpu.memory_space<vmem>>, %arg3: memref<1x8x1xf32, #tpu.memory_space<vmem>>, %arg4: memref<1x8x1xf32, #tpu.memory_space<vmem>>, %arg5: memref<32x128xbf16, #tpu.memory_space<vmem>>, %arg6: memref<32x128xbf16, #tpu.memory_space<vmem>>, %arg7: memref<1x8x32xf32, #tpu.memory_space<vmem>>, %arg8: memref<1x8x32xf32, #tpu.memory_space<vmem>>, %arg9: memref<8x32xf32, #tpu.memory_space<vmem>>, %arg10: memref<8x32xf32, #tpu.memory_space<vmem>>, %arg11: memref<8x32xf32, #tpu.memory_space<vmem>>, %arg12: memref<8x32xf32, #tpu.memory_space<vmem>>, %arg13: memref<8x32xf32, #tpu.memory_space<vmem>>, %arg14: memref<8x32xf32, #tpu.memory_space<vmem>>) attributes {dimension_semantics = [#tpu.dimension_semantics<arbitrary>], iteration_bounds = array<i64: 8>, scalar_prefetch = 0 : i64, scratch_operands = 4 : i64, tpu.core_type = #tpu.core_type<tc>, window_params = [{transform_indices = @transform_0, window_bounds = array<i64: 1, 8, 128>}, {transform_indices = @transform_1, window_bounds = array<i64: 1, 8, 128>}, {transform_indices = @transform_2, window_bounds = array<i64: 1, 8, 1>}, {transform_indices = @transform_3, window_bounds = array<i64: 1, 8, 1>}, {pipeline_mode = #tpu.pipeline_mode<synchronous>, transform_indices = @transform_4, window_bounds = array<i64: 32, 128>}, {pipeline_mode = #tpu.pipeline_mode<synchronous>, transform_indices = @transform_5, window_bounds = array<i64: 32, 128>}, {transform_indices = @transform_6, window_bounds = array<i64: 1, 8, 32>}, {transform_indices = @transform_7, window_bounds = array<i64: 1, 8, 32>}, {pipeline_mode = #tpu.pipeline_mode<synchronous>, transform_indices = @transform_8, window_bounds = array<i64: 8, 32>}, {pipeline_mode = #tpu.pipeline_mode<synchronous>, transform_indices = @transform_9, window_bounds = array<i64: 8, 32>}]} {
    %c0_i32 = arith.constant 0 : i32
    %0 = arith.cmpi eq, %arg0, %c0_i32 : i32
    %1 = arith.extui %0 : i1 to i32
    %c0_i32_0 = arith.constant 0 : i32
    %2 = arith.cmpi ne, %1, %c0_i32_0 : i32
    scf.if %2 {
      %cst_48 = arith.constant 0.000000e+00 : f32
      %112 = vector.broadcast %cst_48 : f32 to vector<8x32xf32>
      %c0_49 = arith.constant 0 : index
      %c0_50 = arith.constant 0 : index
      %113 = vector.load %arg11[%c0_49, %c0_50] : memref<8x32xf32, #tpu.memory_space<vmem>>, vector<8x32xf32>
      tpu.vector_store %arg11[%c0_49, %c0_50], %112 {strides = array<i32>} : memref<8x32xf32, #tpu.memory_space<vmem>>, vector<8x32xf32>,
      %cst_51 = arith.constant 0.000000e+00 : f32
      %114 = vector.broadcast %cst_51 : f32 to vector<8x32xf32>
      %c0_52 = arith.constant 0 : index
      %c0_53 = arith.constant 0 : index
      %115 = vector.load %arg12[%c0_52, %c0_53] : memref<8x32xf32, #tpu.memory_space<vmem>>, vector<8x32xf32>
      tpu.vector_store %arg12[%c0_52, %c0_53], %114 {strides = array<i32>} : memref<8x32xf32, #tpu.memory_space<vmem>>, vector<8x32xf32>,
      %cst_54 = arith.constant 0.000000e+00 : f32
      %116 = vector.broadcast %cst_54 : f32 to vector<8x32xf32>
      %c0_55 = arith.constant 0 : index
      %c0_56 = arith.constant 0 : index
      %117 = vector.load %arg13[%c0_55, %c0_56] : memref<8x32xf32, #tpu.memory_space<vmem>>, vector<8x32xf32>
      tpu.vector_store %arg13[%c0_55, %c0_56], %116 {strides = array<i32>} : memref<8x32xf32, #tpu.memory_space<vmem>>, vector<8x32xf32>,
      %cst_57 = arith.constant 0.000000e+00 : f32
      %118 = vector.broadcast %cst_57 : f32 to vector<8x32xf32>
      %c0_58 = arith.constant 0 : index
      %c0_59 = arith.constant 0 : index
      %119 = vector.load %arg14[%c0_58, %c0_59] : memref<8x32xf32, #tpu.memory_space<vmem>>, vector<8x32xf32>
      tpu.vector_store %arg14[%c0_58, %c0_59], %118 {strides = array<i32>} : memref<8x32xf32, #tpu.memory_space<vmem>>, vector<8x32xf32>,
    } else {
    }
    %c0 = arith.constant 0 : index
    %c0_1 = arith.constant 0 : index
    %c0_2 = arith.constant 0 : index
    %3 = vector.load %arg3[%c0, %c0_1, %c0_2] : memref<1x8x1xf32, #tpu.memory_space<vmem>>, vector<1x8x1xf32>
    %4 = vector.shape_cast %3 : vector<1x8x1xf32> to vector<8x1xf32>
    %c0_3 = arith.constant 0 : index
    %c0_4 = arith.constant 0 : index
    %c0_5 = arith.constant 0 : index
    %5 = vector.load %arg4[%c0_3, %c0_4, %c0_5] : memref<1x8x1xf32, #tpu.memory_space<vmem>>, vector<1x8x1xf32>
    %6 = vector.shape_cast %5 : vector<1x8x1xf32> to vector<8x1xf32>
    %c0_6 = arith.constant 0 : index
    %c0_7 = arith.constant 0 : index
    %c0_8 = arith.constant 0 : index
    %7 = vector.load %arg1[%c0_6, %c0_7, %c0_8] : memref<1x8x128xf32, #tpu.memory_space<vmem>>, vector<1x8x128xf32>
    %8 = vector.shape_cast %7 : vector<1x8x128xf32> to vector<8x128xf32>
    %c0_9 = arith.constant 0 : index
    %c0_10 = arith.constant 0 : index
    %9 = vector.load %arg11[%c0_9, %c0_10] : memref<8x32xf32, #tpu.memory_space<vmem>>, vector<8x32xf32>
    %c0_11 = arith.constant 0 : index
    %c0_12 = arith.constant 0 : index
    %10 = vector.load %arg12[%c0_11, %c0_12] : memref<8x32xf32, #tpu.memory_space<vmem>>, vector<8x32xf32>
    %11 = arith.truncf %9 : vector<8x32xf32> to vector<8x32xbf16>
    %c0_13 = arith.constant 0 : index
    %c0_14 = arith.constant 0 : index
    %12 = vector.load %arg5[%c0_13, %c0_14] : memref<32x128xbf16, #tpu.memory_space<vmem>>, vector<32x128xbf16>
    %cst = arith.constant dense<0.000000e+00> : vector<8x128xf32>
    %13 = tpu.matmul %11, %12, %cst {dimension_numbers = #tpu.dot_dimension_numbers<[1], [0], [0], [1], [0, 0, 1, 1], [], []>} : vector<8x32xbf16>, vector<32x128xbf16>, vector<8x128xf32> -> vector<8x128xf32>
    %14 = arith.addf %8, %13 : vector<8x128xf32>
    %15 = tpu.iota {dimensions = array<i32: 1>} : vector<8x128xi32>
    %c64_i32 = arith.constant 64 : i32
    %16 = vector.broadcast %c64_i32 : i32 to vector<8x128xi32>
    %17 = arith.cmpi sge, %15, %16 : vector<8x128xi32>
    %c96_i32 = arith.constant 96 : i32
    %18 = vector.broadcast %c96_i32 : i32 to vector<8x128xi32>
    %19 = arith.cmpi slt, %15, %18 : vector<8x128xi32>
    %20 = arith.andi %17, %19 : vector<8x128xi1>
    %21 = math.tanh %14 : vector<8x128xf32>
    %22 = arith.negf %14 : vector<8x128xf32>
    %23 = math.exp %22 : vector<8x128xf32>
    %cst_15 = arith.constant 1.000000e+00 : f32
    %24 = vector.broadcast %cst_15 : f32 to vector<8x128xf32>
    %25 = arith.addf %24, %23 : vector<8x128xf32>
    %26 = arith.divf %24, %25 : vector<8x128xf32>
    %27 = arith.select %20, %21, %26 : vector<8x128xi1>, vector<8x128xf32>
    %28 = vector.extract_strided_slice %27 {offsets = [0, 0], sizes = [8, 32], strides = [1, 1]} : vector<8x128xf32> to vector<8x32xf32>
    %29 = vector.extract_strided_slice %27 {offsets = [0, 32], sizes = [8, 32], strides = [1, 1]} : vector<8x128xf32> to vector<8x32xf32>
    %30 = vector.extract_strided_slice %27 {offsets = [0, 64], sizes = [8, 32], strides = [1, 1]} : vector<8x128xf32> to vector<8x32xf32>
    %31 = vector.extract_strided_slice %27 {offsets = [0, 96], sizes = [8, 32], strides = [1, 1]} : vector<8x128xf32> to vector<8x32xf32>
    %32 = arith.mulf %29, %10 : vector<8x32xf32>
    %33 = arith.mulf %28, %30 : vector<8x32xf32>
    %34 = arith.addf %32, %33 : vector<8x32xf32>
    %35 = math.tanh %34 : vector<8x32xf32>
    %36 = arith.mulf %31, %35 : vector<8x32xf32>
    %37 = vector.broadcast %4 : vector<8x1xf32> to vector<8x32xf32>
    %38 = arith.mulf %37, %36 : vector<8x32xf32>
    %cst_16 = arith.constant 1.000000e+00 : f32
    %39 = vector.broadcast %cst_16 : f32 to vector<8x1xf32>
    %40 = arith.subf %39, %4 : vector<8x1xf32>
    %41 = vector.broadcast %40 : vector<8x1xf32> to vector<8x32xf32>
    %42 = arith.mulf %41, %9 : vector<8x32xf32>
    %43 = arith.addf %38, %42 : vector<8x32xf32>
    %44 = vector.broadcast %4 : vector<8x1xf32> to vector<8x32xf32>
    %45 = arith.mulf %44, %34 : vector<8x32xf32>
    %cst_17 = arith.constant 1.000000e+00 : f32
    %46 = vector.broadcast %cst_17 : f32 to vector<8x1xf32>
    %47 = arith.subf %46, %4 : vector<8x1xf32>
    %48 = vector.broadcast %47 : vector<8x1xf32> to vector<8x32xf32>
    %49 = arith.mulf %48, %10 : vector<8x32xf32>
    %50 = arith.addf %45, %49 : vector<8x32xf32>
    %c0_18 = arith.constant 0 : index
    %c0_19 = arith.constant 0 : index
    %c0_20 = arith.constant 0 : index
    %51 = vector.load %arg2[%c0_18, %c0_19, %c0_20] : memref<1x8x128xf32, #tpu.memory_space<vmem>>, vector<1x8x128xf32>
    %52 = vector.shape_cast %51 : vector<1x8x128xf32> to vector<8x128xf32>
    %c0_21 = arith.constant 0 : index
    %c0_22 = arith.constant 0 : index
    %53 = vector.load %arg13[%c0_21, %c0_22] : memref<8x32xf32, #tpu.memory_space<vmem>>, vector<8x32xf32>
    %c0_23 = arith.constant 0 : index
    %c0_24 = arith.constant 0 : index
    %54 = vector.load %arg14[%c0_23, %c0_24] : memref<8x32xf32, #tpu.memory_space<vmem>>, vector<8x32xf32>
    %55 = arith.truncf %53 : vector<8x32xf32> to vector<8x32xbf16>
    %c0_25 = arith.constant 0 : index
    %c0_26 = arith.constant 0 : index
    %56 = vector.load %arg6[%c0_25, %c0_26] : memref<32x128xbf16, #tpu.memory_space<vmem>>, vector<32x128xbf16>
    %cst_27 = arith.constant dense<0.000000e+00> : vector<8x128xf32>
    %57 = tpu.matmul %55, %56, %cst_27 {dimension_numbers = #tpu.dot_dimension_numbers<[1], [0], [0], [1], [0, 0, 1, 1], [], []>} : vector<8x32xbf16>, vector<32x128xbf16>, vector<8x128xf32> -> vector<8x128xf32>
    %58 = arith.addf %52, %57 : vector<8x128xf32>
    %59 = tpu.iota {dimensions = array<i32: 1>} : vector<8x128xi32>
    %c64_i32_28 = arith.constant 64 : i32
    %60 = vector.broadcast %c64_i32_28 : i32 to vector<8x128xi32>
    %61 = arith.cmpi sge, %59, %60 : vector<8x128xi32>
    %c96_i32_29 = arith.constant 96 : i32
    %62 = vector.broadcast %c96_i32_29 : i32 to vector<8x128xi32>
    %63 = arith.cmpi slt, %59, %62 : vector<8x128xi32>
    %64 = arith.andi %61, %63 : vector<8x128xi1>
    %65 = math.tanh %58 : vector<8x128xf32>
    %66 = arith.negf %58 : vector<8x128xf32>
    %67 = math.exp %66 : vector<8x128xf32>
    %cst_30 = arith.constant 1.000000e+00 : f32
    %68 = vector.broadcast %cst_30 : f32 to vector<8x128xf32>
    %69 = arith.addf %68, %67 : vector<8x128xf32>
    %70 = arith.divf %68, %69 : vector<8x128xf32>
    %71 = arith.select %64, %65, %70 : vector<8x128xi1>, vector<8x128xf32>
    %72 = vector.extract_strided_slice %71 {offsets = [0, 0], sizes = [8, 32], strides = [1, 1]} : vector<8x128xf32> to vector<8x32xf32>
    %73 = vector.extract_strided_slice %71 {offsets = [0, 32], sizes = [8, 32], strides = [1, 1]} : vector<8x128xf32> to vector<8x32xf32>
    %74 = vector.extract_strided_slice %71 {offsets = [0, 64], sizes = [8, 32], strides = [1, 1]} : vector<8x128xf32> to vector<8x32xf32>
    %75 = vector.extract_strided_slice %71 {offsets = [0, 96], sizes = [8, 32], strides = [1, 1]} : vector<8x128xf32> to vector<8x32xf32>
    %76 = arith.mulf %73, %54 : vector<8x32xf32>
    %77 = arith.mulf %72, %74 : vector<8x32xf32>
    %78 = arith.addf %76, %77 : vector<8x32xf32>
    %79 = math.tanh %78 : vector<8x32xf32>
    %80 = arith.mulf %75, %79 : vector<8x32xf32>
    %81 = vector.broadcast %6 : vector<8x1xf32> to vector<8x32xf32>
    %82 = arith.mulf %81, %80 : vector<8x32xf32>
    %cst_31 = arith.constant 1.000000e+00 : f32
    %83 = vector.broadcast %cst_31 : f32 to vector<8x1xf32>
    %84 = arith.subf %83, %6 : vector<8x1xf32>
    %85 = vector.broadcast %84 : vector<8x1xf32> to vector<8x32xf32>
    %86 = arith.mulf %85, %53 : vector<8x32xf32>
    %87 = arith.addf %82, %86 : vector<8x32xf32>
    %88 = vector.broadcast %6 : vector<8x1xf32> to vector<8x32xf32>
    %89 = arith.mulf %88, %78 : vector<8x32xf32>
    %cst_32 = arith.constant 1.000000e+00 : f32
    %90 = vector.broadcast %cst_32 : f32 to vector<8x1xf32>
    %91 = arith.subf %90, %6 : vector<8x1xf32>
    %92 = vector.broadcast %91 : vector<8x1xf32> to vector<8x32xf32>
    %93 = arith.mulf %92, %54 : vector<8x32xf32>
    %94 = arith.addf %89, %93 : vector<8x32xf32>
    %c0_33 = arith.constant 0 : index
    %c0_34 = arith.constant 0 : index
    %95 = vector.load %arg11[%c0_33, %c0_34] : memref<8x32xf32, #tpu.memory_space<vmem>>, vector<8x32xf32>
    tpu.vector_store %arg11[%c0_33, %c0_34], %43 {strides = array<i32>} : memref<8x32xf32, #tpu.memory_space<vmem>>, vector<8x32xf32>,
    %c0_35 = arith.constant 0 : index
    %c0_36 = arith.constant 0 : index
    %96 = vector.load %arg12[%c0_35, %c0_36] : memref<8x32xf32, #tpu.memory_space<vmem>>, vector<8x32xf32>
    tpu.vector_store %arg12[%c0_35, %c0_36], %50 {strides = array<i32>} : memref<8x32xf32, #tpu.memory_space<vmem>>, vector<8x32xf32>,
    %c0_37 = arith.constant 0 : index
    %c0_38 = arith.constant 0 : index
    %97 = vector.load %arg13[%c0_37, %c0_38] : memref<8x32xf32, #tpu.memory_space<vmem>>, vector<8x32xf32>
    tpu.vector_store %arg13[%c0_37, %c0_38], %87 {strides = array<i32>} : memref<8x32xf32, #tpu.memory_space<vmem>>, vector<8x32xf32>,
    %c0_39 = arith.constant 0 : index
    %c0_40 = arith.constant 0 : index
    %98 = vector.load %arg14[%c0_39, %c0_40] : memref<8x32xf32, #tpu.memory_space<vmem>>, vector<8x32xf32>
    tpu.vector_store %arg14[%c0_39, %c0_40], %94 {strides = array<i32>} : memref<8x32xf32, #tpu.memory_space<vmem>>, vector<8x32xf32>,
    %99 = vector.broadcast %4 : vector<8x1xf32> to vector<8x32xf32>
    %100 = arith.mulf %43, %99 : vector<8x32xf32>
    %c0_41 = arith.constant 0 : index
    %c0_42 = arith.constant 0 : index
    %c0_43 = arith.constant 0 : index
    %101 = vector.load %arg7[%c0_41, %c0_42, %c0_43] : memref<1x8x32xf32, #tpu.memory_space<vmem>>, vector<1x8x32xf32>
    %102 = vector.shape_cast %101 : vector<1x8x32xf32> to vector<8x32xf32>
    %103 = vector.shape_cast %100 : vector<8x32xf32> to vector<1x8x32xf32>
    tpu.vector_store %arg7[%c0_41, %c0_42, %c0_43], %103 {strides = array<i32>} : memref<1x8x32xf32, #tpu.memory_space<vmem>>, vector<1x8x32xf32>,
    %104 = vector.broadcast %6 : vector<8x1xf32> to vector<8x32xf32>
    %105 = arith.mulf %87, %104 : vector<8x32xf32>
    %c0_44 = arith.constant 0 : index
    %c0_45 = arith.constant 0 : index
    %c0_46 = arith.constant 0 : index
    %106 = vector.load %arg8[%c0_44, %c0_45, %c0_46] : memref<1x8x32xf32, #tpu.memory_space<vmem>>, vector<1x8x32xf32>
    %107 = vector.shape_cast %106 : vector<1x8x32xf32> to vector<8x32xf32>
    %108 = vector.shape_cast %105 : vector<8x32xf32> to vector<1x8x32xf32>
    tpu.vector_store %arg8[%c0_44, %c0_45, %c0_46], %108 {strides = array<i32>} : memref<1x8x32xf32, #tpu.memory_space<vmem>>, vector<1x8x32xf32>,
    %c7_i32 = arith.constant 7 : i32
    %109 = arith.cmpi eq, %arg0, %c7_i32 : i32
    %110 = arith.extui %109 : i1 to i32
    %c0_i32_47 = arith.constant 0 : i32
    %111 = arith.cmpi ne, %110, %c0_i32_47 : i32
    scf.if %111 {
      %112 = arith.addf %43, %87 : vector<8x32xf32>
      %c0_48 = arith.constant 0 : index
      %c0_49 = arith.constant 0 : index
      %113 = vector.load %arg9[%c0_48, %c0_49] : memref<8x32xf32, #tpu.memory_space<vmem>>, vector<8x32xf32>
      tpu.vector_store %arg9[%c0_48, %c0_49], %112 {strides = array<i32>} : memref<8x32xf32, #tpu.memory_space<vmem>>, vector<8x32xf32>,
      %114 = arith.addf %50, %94 : vector<8x32xf32>
      %c0_50 = arith.constant 0 : index
      %c0_51 = arith.constant 0 : index
      %115 = vector.load %arg10[%c0_50, %c0_51] : memref<8x32xf32, #tpu.memory_space<vmem>>, vector<8x32xf32>
      tpu.vector_store %arg10[%c0_50, %c0_51], %114 {strides = array<i32>} : memref<8x32xf32, #tpu.memory_space<vmem>>, vector<8x32xf32>,
    } else {
    }
    return
  }
  func.func @transform_0(%arg0: i32) -> (i32, i32, i32) {
    %c0_i32 = arith.constant 0 : i32
    %c0_i32_0 = arith.constant 0 : i32
    %c0_i32_1 = arith.constant 0 : i32
    return %arg0, %c0_i32, %c0_i32_0 : i32, i32, i32
  }
  func.func @transform_1(%arg0: i32) -> (i32, i32, i32) {
    %c7_i32 = arith.constant 7 : i32
    %0 = arith.subi %c7_i32, %arg0 : i32
    %c0_i32 = arith.constant 0 : i32
    %c1_i32 = arith.constant 1 : i32
    %c0_i32_0 = arith.constant 0 : i32
    return %0, %c0_i32, %c1_i32 : i32, i32, i32
  }
  func.func @transform_2(%arg0: i32) -> (i32, i32, i32) {
    %c0_i32 = arith.constant 0 : i32
    %c0_i32_0 = arith.constant 0 : i32
    %c0_i32_1 = arith.constant 0 : i32
    return %arg0, %c0_i32, %c0_i32_0 : i32, i32, i32
  }
  func.func @transform_3(%arg0: i32) -> (i32, i32, i32) {
    %c7_i32 = arith.constant 7 : i32
    %0 = arith.subi %c7_i32, %arg0 : i32
    %c0_i32 = arith.constant 0 : i32
    %c0_i32_0 = arith.constant 0 : i32
    %c0_i32_1 = arith.constant 0 : i32
    return %0, %c0_i32, %c0_i32_0 : i32, i32, i32
  }
  func.func @transform_4(%arg0: i32) -> (i32, i32) {
    %c0_i32 = arith.constant 0 : i32
    %c0_i32_0 = arith.constant 0 : i32
    %c0_i32_1 = arith.constant 0 : i32
    return %c0_i32, %c0_i32_0 : i32, i32
  }
  func.func @transform_5(%arg0: i32) -> (i32, i32) {
    %c0_i32 = arith.constant 0 : i32
    %c0_i32_0 = arith.constant 0 : i32
    %c0_i32_1 = arith.constant 0 : i32
    return %c0_i32, %c0_i32_0 : i32, i32
  }
  func.func @transform_6(%arg0: i32) -> (i32, i32, i32) {
    %c0_i32 = arith.constant 0 : i32
    %c0_i32_0 = arith.constant 0 : i32
    %c0_i32_1 = arith.constant 0 : i32
    return %arg0, %c0_i32, %c0_i32_0 : i32, i32, i32
  }
  func.func @transform_7(%arg0: i32) -> (i32, i32, i32) {
    %c7_i32 = arith.constant 7 : i32
    %0 = arith.subi %c7_i32, %arg0 : i32
    %c0_i32 = arith.constant 0 : i32
    %c0_i32_0 = arith.constant 0 : i32
    %c0_i32_1 = arith.constant 0 : i32
    return %0, %c0_i32, %c0_i32_0 : i32, i32, i32
  }
  func.func @transform_8(%arg0: i32) -> (i32, i32) {
    %c0_i32 = arith.constant 0 : i32
    %c0_i32_0 = arith.constant 0 : i32
    %c0_i32_1 = arith.constant 0 : i32
    return %c0_i32, %c0_i32_0 : i32, i32
  }
  func.func @transform_9(%arg0: i32) -> (i32, i32) {
    %c0_i32 = arith.constant 0 : i32
    %c0_i32_0 = arith.constant 0 : i32
    %c0_i32_1 = arith.constant 0 : i32
    return %c0_i32, %c0_i32_0 : i32, i32
  }
}

module attributes {stable_mosaic.version = 11 : i64} {
  func.func @_bilstm_seq_kernel(%arg0: i32, %arg1: memref<1x8x128xf32, #tpu.memory_space<vmem>>, %arg2: memref<1x8x128xf32, #tpu.memory_space<vmem>>, %arg3: memref<1x8x1xf32, #tpu.memory_space<vmem>>, %arg4: memref<1x8x1xf32, #tpu.memory_space<vmem>>, %arg5: memref<32x128xbf16, #tpu.memory_space<vmem>>, %arg6: memref<32x128xbf16, #tpu.memory_space<vmem>>, %arg7: memref<1x8x32xf32, #tpu.memory_space<vmem>>, %arg8: memref<1x8x32xf32, #tpu.memory_space<vmem>>, %arg9: memref<8x32xf32, #tpu.memory_space<vmem>>, %arg10: memref<8x32xf32, #tpu.memory_space<vmem>>, %arg11: memref<8x32xf32, #tpu.memory_space<vmem>>, %arg12: memref<8x32xf32, #tpu.memory_space<vmem>>, %arg13: memref<8x32xf32, #tpu.memory_space<vmem>>, %arg14: memref<8x32xf32, #tpu.memory_space<vmem>>) attributes {dimension_semantics = [#tpu.dimension_semantics<arbitrary>], iteration_bounds = array<i64: 8>, scalar_prefetch = 0 : i64, scratch_operands = 4 : i64, tpu.core_type = #tpu.core_type<tc>, window_params = [{transform_indices = @transform_0, window_bounds = array<i64: 1, 8, 128>}, {transform_indices = @transform_1, window_bounds = array<i64: 1, 8, 128>}, {transform_indices = @transform_2, window_bounds = array<i64: 1, 8, 1>}, {transform_indices = @transform_3, window_bounds = array<i64: 1, 8, 1>}, {pipeline_mode = #tpu.pipeline_mode<synchronous>, transform_indices = @transform_4, window_bounds = array<i64: 32, 128>}, {pipeline_mode = #tpu.pipeline_mode<synchronous>, transform_indices = @transform_5, window_bounds = array<i64: 32, 128>}, {transform_indices = @transform_6, window_bounds = array<i64: 1, 8, 32>}, {transform_indices = @transform_7, window_bounds = array<i64: 1, 8, 32>}, {pipeline_mode = #tpu.pipeline_mode<synchronous>, transform_indices = @transform_8, window_bounds = array<i64: 8, 32>}, {pipeline_mode = #tpu.pipeline_mode<synchronous>, transform_indices = @transform_9, window_bounds = array<i64: 8, 32>}]} {
    %c0_i32 = arith.constant 0 : i32
    %0 = arith.cmpi eq, %arg0, %c0_i32 : i32
    %1 = arith.extui %0 : i1 to i32
    %c0_i32_0 = arith.constant 0 : i32
    %2 = arith.cmpi ne, %1, %c0_i32_0 : i32
    scf.if %2 {
      %cst_48 = arith.constant 0.000000e+00 : f32
      %112 = vector.broadcast %cst_48 : f32 to vector<8x32xf32>
      %c0_49 = arith.constant 0 : index
      %c0_50 = arith.constant 0 : index
      %113 = vector.load %arg11[%c0_49, %c0_50] : memref<8x32xf32, #tpu.memory_space<vmem>>, vector<8x32xf32>
      tpu.vector_store %arg11[%c0_49, %c0_50], %112 {strides = array<i32>} : memref<8x32xf32, #tpu.memory_space<vmem>>, vector<8x32xf32>,
      %cst_51 = arith.constant 0.000000e+00 : f32
      %114 = vector.broadcast %cst_51 : f32 to vector<8x32xf32>
      %c0_52 = arith.constant 0 : index
      %c0_53 = arith.constant 0 : index
      %115 = vector.load %arg12[%c0_52, %c0_53] : memref<8x32xf32, #tpu.memory_space<vmem>>, vector<8x32xf32>
      tpu.vector_store %arg12[%c0_52, %c0_53], %114 {strides = array<i32>} : memref<8x32xf32, #tpu.memory_space<vmem>>, vector<8x32xf32>,
      %cst_54 = arith.constant 0.000000e+00 : f32
      %116 = vector.broadcast %cst_54 : f32 to vector<8x32xf32>
      %c0_55 = arith.constant 0 : index
      %c0_56 = arith.constant 0 : index
      %117 = vector.load %arg13[%c0_55, %c0_56] : memref<8x32xf32, #tpu.memory_space<vmem>>, vector<8x32xf32>
      tpu.vector_store %arg13[%c0_55, %c0_56], %116 {strides = array<i32>} : memref<8x32xf32, #tpu.memory_space<vmem>>, vector<8x32xf32>,
      %cst_57 = arith.constant 0.000000e+00 : f32
      %118 = vector.broadcast %cst_57 : f32 to vector<8x32xf32>
      %c0_58 = arith.constant 0 : index
      %c0_59 = arith.constant 0 : index
      %119 = vector.load %arg14[%c0_58, %c0_59] : memref<8x32xf32, #tpu.memory_space<vmem>>, vector<8x32xf32>
      tpu.vector_store %arg14[%c0_58, %c0_59], %118 {strides = array<i32>} : memref<8x32xf32, #tpu.memory_space<vmem>>, vector<8x32xf32>,
    } else {
    }
    %c0 = arith.constant 0 : index
    %c0_1 = arith.constant 0 : index
    %c0_2 = arith.constant 0 : index
    %3 = vector.load %arg3[%c0, %c0_1, %c0_2] : memref<1x8x1xf32, #tpu.memory_space<vmem>>, vector<1x8x1xf32>
    %4 = vector.shape_cast %3 : vector<1x8x1xf32> to vector<8x1xf32>
    %c0_3 = arith.constant 0 : index
    %c0_4 = arith.constant 0 : index
    %c0_5 = arith.constant 0 : index
    %5 = vector.load %arg4[%c0_3, %c0_4, %c0_5] : memref<1x8x1xf32, #tpu.memory_space<vmem>>, vector<1x8x1xf32>
    %6 = vector.shape_cast %5 : vector<1x8x1xf32> to vector<8x1xf32>
    %c0_6 = arith.constant 0 : index
    %c0_7 = arith.constant 0 : index
    %c0_8 = arith.constant 0 : index
    %7 = vector.load %arg1[%c0_6, %c0_7, %c0_8] : memref<1x8x128xf32, #tpu.memory_space<vmem>>, vector<1x8x128xf32>
    %8 = vector.shape_cast %7 : vector<1x8x128xf32> to vector<8x128xf32>
    %c0_9 = arith.constant 0 : index
    %c0_10 = arith.constant 0 : index
    %9 = vector.load %arg11[%c0_9, %c0_10] : memref<8x32xf32, #tpu.memory_space<vmem>>, vector<8x32xf32>
    %c0_11 = arith.constant 0 : index
    %c0_12 = arith.constant 0 : index
    %10 = vector.load %arg12[%c0_11, %c0_12] : memref<8x32xf32, #tpu.memory_space<vmem>>, vector<8x32xf32>
    %11 = arith.truncf %9 : vector<8x32xf32> to vector<8x32xbf16>
    %c0_13 = arith.constant 0 : index
    %c0_14 = arith.constant 0 : index
    %12 = vector.load %arg5[%c0_13, %c0_14] : memref<32x128xbf16, #tpu.memory_space<vmem>>, vector<32x128xbf16>
    %cst = arith.constant dense<0.000000e+00> : vector<8x128xf32>
    %13 = tpu.matmul %11, %12, %cst {dimension_numbers = #tpu.dot_dimension_numbers<[1], [0], [0], [1], [0, 0, 1, 1], [], []>} : vector<8x32xbf16>, vector<32x128xbf16>, vector<8x128xf32> -> vector<8x128xf32>
    %14 = arith.addf %8, %13 : vector<8x128xf32>
    %15 = tpu.iota {dimensions = array<i32: 1>} : vector<8x128xi32>
    %c64_i32 = arith.constant 64 : i32
    %16 = vector.broadcast %c64_i32 : i32 to vector<8x128xi32>
    %17 = arith.cmpi sge, %15, %16 : vector<8x128xi32>
    %c96_i32 = arith.constant 96 : i32
    %18 = vector.broadcast %c96_i32 : i32 to vector<8x128xi32>
    %19 = arith.cmpi slt, %15, %18 : vector<8x128xi32>
    %20 = arith.andi %17, %19 : vector<8x128xi1>
    %21 = math.tanh %14 : vector<8x128xf32>
    %22 = arith.negf %14 : vector<8x128xf32>
    %23 = math.exp %22 : vector<8x128xf32>
    %cst_15 = arith.constant 1.000000e+00 : f32
    %24 = vector.broadcast %cst_15 : f32 to vector<8x128xf32>
    %25 = arith.addf %24, %23 : vector<8x128xf32>
    %26 = arith.divf %24, %25 : vector<8x128xf32>
    %27 = arith.select %20, %21, %26 : vector<8x128xi1>, vector<8x128xf32>
    %28 = vector.extract_strided_slice %27 {offsets = [0, 0], sizes = [8, 32], strides = [1, 1]} : vector<8x128xf32> to vector<8x32xf32>
    %29 = vector.extract_strided_slice %27 {offsets = [0, 32], sizes = [8, 32], strides = [1, 1]} : vector<8x128xf32> to vector<8x32xf32>
    %30 = vector.extract_strided_slice %27 {offsets = [0, 64], sizes = [8, 32], strides = [1, 1]} : vector<8x128xf32> to vector<8x32xf32>
    %31 = vector.extract_strided_slice %27 {offsets = [0, 96], sizes = [8, 32], strides = [1, 1]} : vector<8x128xf32> to vector<8x32xf32>
    %32 = arith.mulf %29, %10 : vector<8x32xf32>
    %33 = arith.mulf %28, %30 : vector<8x32xf32>
    %34 = arith.addf %32, %33 : vector<8x32xf32>
    %35 = math.tanh %34 : vector<8x32xf32>
    %36 = arith.mulf %31, %35 : vector<8x32xf32>
    %37 = vector.broadcast %4 : vector<8x1xf32> to vector<8x32xf32>
    %38 = arith.mulf %37, %36 : vector<8x32xf32>
    %cst_16 = arith.constant 1.000000e+00 : f32
    %39 = vector.broadcast %cst_16 : f32 to vector<8x1xf32>
    %40 = arith.subf %39, %4 : vector<8x1xf32>
    %41 = vector.broadcast %40 : vector<8x1xf32> to vector<8x32xf32>
    %42 = arith.mulf %41, %9 : vector<8x32xf32>
    %43 = arith.addf %38, %42 : vector<8x32xf32>
    %44 = vector.broadcast %4 : vector<8x1xf32> to vector<8x32xf32>
    %45 = arith.mulf %44, %34 : vector<8x32xf32>
    %cst_17 = arith.constant 1.000000e+00 : f32
    %46 = vector.broadcast %cst_17 : f32 to vector<8x1xf32>
    %47 = arith.subf %46, %4 : vector<8x1xf32>
    %48 = vector.broadcast %47 : vector<8x1xf32> to vector<8x32xf32>
    %49 = arith.mulf %48, %10 : vector<8x32xf32>
    %50 = arith.addf %45, %49 : vector<8x32xf32>
    %c0_18 = arith.constant 0 : index
    %c0_19 = arith.constant 0 : index
    %c0_20 = arith.constant 0 : index
    %51 = vector.load %arg2[%c0_18, %c0_19, %c0_20] : memref<1x8x128xf32, #tpu.memory_space<vmem>>, vector<1x8x128xf32>
    %52 = vector.shape_cast %51 : vector<1x8x128xf32> to vector<8x128xf32>
    %c0_21 = arith.constant 0 : index
    %c0_22 = arith.constant 0 : index
    %53 = vector.load %arg13[%c0_21, %c0_22] : memref<8x32xf32, #tpu.memory_space<vmem>>, vector<8x32xf32>
    %c0_23 = arith.constant 0 : index
    %c0_24 = arith.constant 0 : index
    %54 = vector.load %arg14[%c0_23, %c0_24] : memref<8x32xf32, #tpu.memory_space<vmem>>, vector<8x32xf32>
    %55 = arith.truncf %53 : vector<8x32xf32> to vector<8x32xbf16>
    %c0_25 = arith.constant 0 : index
    %c0_26 = arith.constant 0 : index
    %56 = vector.load %arg6[%c0_25, %c0_26] : memref<32x128xbf16, #tpu.memory_space<vmem>>, vector<32x128xbf16>
    %cst_27 = arith.constant dense<0.000000e+00> : vector<8x128xf32>
    %57 = tpu.matmul %55, %56, %cst_27 {dimension_numbers = #tpu.dot_dimension_numbers<[1], [0], [0], [1], [0, 0, 1, 1], [], []>} : vector<8x32xbf16>, vector<32x128xbf16>, vector<8x128xf32> -> vector<8x128xf32>
    %58 = arith.addf %52, %57 : vector<8x128xf32>
    %59 = tpu.iota {dimensions = array<i32: 1>} : vector<8x128xi32>
    %c64_i32_28 = arith.constant 64 : i32
    %60 = vector.broadcast %c64_i32_28 : i32 to vector<8x128xi32>
    %61 = arith.cmpi sge, %59, %60 : vector<8x128xi32>
    %c96_i32_29 = arith.constant 96 : i32
    %62 = vector.broadcast %c96_i32_29 : i32 to vector<8x128xi32>
    %63 = arith.cmpi slt, %59, %62 : vector<8x128xi32>
    %64 = arith.andi %61, %63 : vector<8x128xi1>
    %65 = math.tanh %58 : vector<8x128xf32>
    %66 = arith.negf %58 : vector<8x128xf32>
    %67 = math.exp %66 : vector<8x128xf32>
    %cst_30 = arith.constant 1.000000e+00 : f32
    %68 = vector.broadcast %cst_30 : f32 to vector<8x128xf32>
    %69 = arith.addf %68, %67 : vector<8x128xf32>
    %70 = arith.divf %68, %69 : vector<8x128xf32>
    %71 = arith.select %64, %65, %70 : vector<8x128xi1>, vector<8x128xf32>
    %72 = vector.extract_strided_slice %71 {offsets = [0, 0], sizes = [8, 32], strides = [1, 1]} : vector<8x128xf32> to vector<8x32xf32>
    %73 = vector.extract_strided_slice %71 {offsets = [0, 32], sizes = [8, 32], strides = [1, 1]} : vector<8x128xf32> to vector<8x32xf32>
    %74 = vector.extract_strided_slice %71 {offsets = [0, 64], sizes = [8, 32], strides = [1, 1]} : vector<8x128xf32> to vector<8x32xf32>
    %75 = vector.extract_strided_slice %71 {offsets = [0, 96], sizes = [8, 32], strides = [1, 1]} : vector<8x128xf32> to vector<8x32xf32>
    %76 = arith.mulf %73, %54 : vector<8x32xf32>
    %77 = arith.mulf %72, %74 : vector<8x32xf32>
    %78 = arith.addf %76, %77 : vector<8x32xf32>
    %79 = math.tanh %78 : vector<8x32xf32>
    %80 = arith.mulf %75, %79 : vector<8x32xf32>
    %81 = vector.broadcast %6 : vector<8x1xf32> to vector<8x32xf32>
    %82 = arith.mulf %81, %80 : vector<8x32xf32>
    %cst_31 = arith.constant 1.000000e+00 : f32
    %83 = vector.broadcast %cst_31 : f32 to vector<8x1xf32>
    %84 = arith.subf %83, %6 : vector<8x1xf32>
    %85 = vector.broadcast %84 : vector<8x1xf32> to vector<8x32xf32>
    %86 = arith.mulf %85, %53 : vector<8x32xf32>
    %87 = arith.addf %82, %86 : vector<8x32xf32>
    %88 = vector.broadcast %6 : vector<8x1xf32> to vector<8x32xf32>
    %89 = arith.mulf %88, %78 : vector<8x32xf32>
    %cst_32 = arith.constant 1.000000e+00 : f32
    %90 = vector.broadcast %cst_32 : f32 to vector<8x1xf32>
    %91 = arith.subf %90, %6 : vector<8x1xf32>
    %92 = vector.broadcast %91 : vector<8x1xf32> to vector<8x32xf32>
    %93 = arith.mulf %92, %54 : vector<8x32xf32>
    %94 = arith.addf %89, %93 : vector<8x32xf32>
    %c0_33 = arith.constant 0 : index
    %c0_34 = arith.constant 0 : index
    %95 = vector.load %arg11[%c0_33, %c0_34] : memref<8x32xf32, #tpu.memory_space<vmem>>, vector<8x32xf32>
    tpu.vector_store %arg11[%c0_33, %c0_34], %43 {strides = array<i32>} : memref<8x32xf32, #tpu.memory_space<vmem>>, vector<8x32xf32>,
    %c0_35 = arith.constant 0 : index
    %c0_36 = arith.constant 0 : index
    %96 = vector.load %arg12[%c0_35, %c0_36] : memref<8x32xf32, #tpu.memory_space<vmem>>, vector<8x32xf32>
    tpu.vector_store %arg12[%c0_35, %c0_36], %50 {strides = array<i32>} : memref<8x32xf32, #tpu.memory_space<vmem>>, vector<8x32xf32>,
    %c0_37 = arith.constant 0 : index
    %c0_38 = arith.constant 0 : index
    %97 = vector.load %arg13[%c0_37, %c0_38] : memref<8x32xf32, #tpu.memory_space<vmem>>, vector<8x32xf32>
    tpu.vector_store %arg13[%c0_37, %c0_38], %87 {strides = array<i32>} : memref<8x32xf32, #tpu.memory_space<vmem>>, vector<8x32xf32>,
    %c0_39 = arith.constant 0 : index
    %c0_40 = arith.constant 0 : index
    %98 = vector.load %arg14[%c0_39, %c0_40] : memref<8x32xf32, #tpu.memory_space<vmem>>, vector<8x32xf32>
    tpu.vector_store %arg14[%c0_39, %c0_40], %94 {strides = array<i32>} : memref<8x32xf32, #tpu.memory_space<vmem>>, vector<8x32xf32>,
    %99 = vector.broadcast %4 : vector<8x1xf32> to vector<8x32xf32>
    %100 = arith.mulf %43, %99 : vector<8x32xf32>
    %c0_41 = arith.constant 0 : index
    %c0_42 = arith.constant 0 : index
    %c0_43 = arith.constant 0 : index
    %101 = vector.load %arg7[%c0_41, %c0_42, %c0_43] : memref<1x8x32xf32, #tpu.memory_space<vmem>>, vector<1x8x32xf32>
    %102 = vector.shape_cast %101 : vector<1x8x32xf32> to vector<8x32xf32>
    %103 = vector.shape_cast %100 : vector<8x32xf32> to vector<1x8x32xf32>
    tpu.vector_store %arg7[%c0_41, %c0_42, %c0_43], %103 {strides = array<i32>} : memref<1x8x32xf32, #tpu.memory_space<vmem>>, vector<1x8x32xf32>,
    %104 = vector.broadcast %6 : vector<8x1xf32> to vector<8x32xf32>
    %105 = arith.mulf %87, %104 : vector<8x32xf32>
    %c0_44 = arith.constant 0 : index
    %c0_45 = arith.constant 0 : index
    %c0_46 = arith.constant 0 : index
    %106 = vector.load %arg8[%c0_44, %c0_45, %c0_46] : memref<1x8x32xf32, #tpu.memory_space<vmem>>, vector<1x8x32xf32>
    %107 = vector.shape_cast %106 : vector<1x8x32xf32> to vector<8x32xf32>
    %108 = vector.shape_cast %105 : vector<8x32xf32> to vector<1x8x32xf32>
    tpu.vector_store %arg8[%c0_44, %c0_45, %c0_46], %108 {strides = array<i32>} : memref<1x8x32xf32, #tpu.memory_space<vmem>>, vector<1x8x32xf32>,
    %c7_i32 = arith.constant 7 : i32
    %109 = arith.cmpi eq, %arg0, %c7_i32 : i32
    %110 = arith.extui %109 : i1 to i32
    %c0_i32_47 = arith.constant 0 : i32
    %111 = arith.cmpi ne, %110, %c0_i32_47 : i32
    scf.if %111 {
      %112 = arith.addf %43, %87 : vector<8x32xf32>
      %c0_48 = arith.constant 0 : index
      %c0_49 = arith.constant 0 : index
      %113 = vector.load %arg9[%c0_48, %c0_49] : memref<8x32xf32, #tpu.memory_space<vmem>>, vector<8x32xf32>
      tpu.vector_store %arg9[%c0_48, %c0_49], %112 {strides = array<i32>} : memref<8x32xf32, #tpu.memory_space<vmem>>, vector<8x32xf32>,
      %114 = arith.addf %50, %94 : vector<8x32xf32>
      %c0_50 = arith.constant 0 : index
      %c0_51 = arith.constant 0 : index
      %115 = vector.load %arg10[%c0_50, %c0_51] : memref<8x32xf32, #tpu.memory_space<vmem>>, vector<8x32xf32>
      tpu.vector_store %arg10[%c0_50, %c0_51], %114 {strides = array<i32>} : memref<8x32xf32, #tpu.memory_space<vmem>>, vector<8x32xf32>,
    } else {
    }
    return
  }
  func.func @transform_0(%arg0: i32) -> (i32, i32, i32) {
    %c0_i32 = arith.constant 0 : i32
    %c0_i32_0 = arith.constant 0 : i32
    %c0_i32_1 = arith.constant 0 : i32
    return %arg0, %c0_i32, %c0_i32_0 : i32, i32, i32
  }
  func.func @transform_1(%arg0: i32) -> (i32, i32, i32) {
    %c7_i32 = arith.constant 7 : i32
    %0 = arith.subi %c7_i32, %arg0 : i32
    %c0_i32 = arith.constant 0 : i32
    %c1_i32 = arith.constant 1 : i32
    %c0_i32_0 = arith.constant 0 : i32
    return %0, %c0_i32, %c1_i32 : i32, i32, i32
  }
  func.func @transform_2(%arg0: i32) -> (i32, i32, i32) {
    %c0_i32 = arith.constant 0 : i32
    %c0_i32_0 = arith.constant 0 : i32
    %c0_i32_1 = arith.constant 0 : i32
    return %arg0, %c0_i32, %c0_i32_0 : i32, i32, i32
  }
  func.func @transform_3(%arg0: i32) -> (i32, i32, i32) {
    %c7_i32 = arith.constant 7 : i32
    %0 = arith.subi %c7_i32, %arg0 : i32
    %c0_i32 = arith.constant 0 : i32
    %c0_i32_0 = arith.constant 0 : i32
    %c0_i32_1 = arith.constant 0 : i32
    return %0, %c0_i32, %c0_i32_0 : i32, i32, i32
  }
  func.func @transform_4(%arg0: i32) -> (i32, i32) {
    %c0_i32 = arith.constant 0 : i32
    %c0_i32_0 = arith.constant 0 : i32
    %c0_i32_1 = arith.constant 0 : i32
    return %c0_i32, %c0_i32_0 : i32, i32
  }
  func.func @transform_5(%arg0: i32) -> (i32, i32) {
    %c0_i32 = arith.constant 0 : i32
    %c0_i32_0 = arith.constant 0 : i32
    %c0_i32_1 = arith.constant 0 : i32
    return %c0_i32, %c0_i32_0 : i32, i32
  }
  func.func @transform_6(%arg0: i32) -> (i32, i32, i32) {
    %c0_i32 = arith.constant 0 : i32
    %c0_i32_0 = arith.constant 0 : i32
    %c0_i32_1 = arith.constant 0 : i32
    return %arg0, %c0_i32, %c0_i32_0 : i32, i32, i32
  }
  func.func @transform_7(%arg0: i32) -> (i32, i32, i32) {
    %c7_i32 = arith.constant 7 : i32
    %0 = arith.subi %c7_i32, %arg0 : i32
    %c0_i32 = arith.constant 0 : i32
    %c0_i32_0 = arith.constant 0 : i32
    %c0_i32_1 = arith.constant 0 : i32
    return %0, %c0_i32, %c0_i32_0 : i32, i32, i32
  }
  func.func @transform_8(%arg0: i32) -> (i32, i32) {
    %c0_i32 = arith.constant 0 : i32
    %c0_i32_0 = arith.constant 0 : i32
    %c0_i32_1 = arith.constant 0 : i32
    return %c0_i32, %c0_i32_0 : i32, i32
  }
  func.func @transform_9(%arg0: i32) -> (i32, i32) {
    %c0_i32 = arith.constant 0 : i32
    %c0_i32_0 = arith.constant 0 : i32
    %c0_i32_1 = arith.constant 0 : i32
    return %c0_i32, %c0_i32_0 : i32, i32
  }
}

module attributes {stable_mosaic.version = 11 : i64} {
  func.func @_linear_kernel(%arg0: i32, %arg1: memref<64x16xbf16, #tpu.memory_space<vmem>>, %arg2: memref<16x256xbf16, #tpu.memory_space<vmem>>, %arg3: memref<1x256xf32, #tpu.memory_space<vmem>>, %arg4: memref<64x256xf32, #tpu.memory_space<vmem>>) attributes {dimension_semantics = [#tpu.dimension_semantics<parallel>], iteration_bounds = array<i64: 1>, scalar_prefetch = 0 : i64, scratch_operands = 0 : i64, tpu.core_type = #tpu.core_type<tc>, window_params = [{pipeline_mode = #tpu.pipeline_mode<synchronous>, transform_indices = @transform_0, window_bounds = array<i64: 64, 16>}, {transform_indices = @transform_1, window_bounds = array<i64: 16, 256>}, {transform_indices = @transform_2, window_bounds = array<i64: 1, 256>}, {transform_indices = @transform_3, window_bounds = array<i64: 64, 256>}]} {
    %c0 = arith.constant 0 : index
    %c0_0 = arith.constant 0 : index
    %0 = vector.load %arg1[%c0, %c0_0] : memref<64x16xbf16, #tpu.memory_space<vmem>>, vector<64x16xbf16>
    %c0_1 = arith.constant 0 : index
    %c0_2 = arith.constant 0 : index
    %1 = vector.load %arg2[%c0_1, %c0_2] : memref<16x256xbf16, #tpu.memory_space<vmem>>, vector<16x256xbf16>
    %cst = arith.constant dense<0.000000e+00> : vector<64x256xf32>
    %2 = tpu.matmul %0, %1, %cst {dimension_numbers = #tpu.dot_dimension_numbers<[1], [0], [0], [1], [0, 0, 1, 1], [], []>} : vector<64x16xbf16>, vector<16x256xbf16>, vector<64x256xf32> -> vector<64x256xf32>
    %c0_3 = arith.constant 0 : index
    %c0_4 = arith.constant 0 : index
    %3 = vector.load %arg3[%c0_3, %c0_4] : memref<1x256xf32, #tpu.memory_space<vmem>>, vector<1x256xf32>
    %4 = vector.broadcast %3 : vector<1x256xf32> to vector<64x256xf32>
    %5 = arith.addf %2, %4 : vector<64x256xf32>
    %c0_5 = arith.constant 0 : index
    %c0_6 = arith.constant 0 : index
    %6 = vector.load %arg4[%c0_5, %c0_6] : memref<64x256xf32, #tpu.memory_space<vmem>>, vector<64x256xf32>
    tpu.vector_store %arg4[%c0_5, %c0_6], %5 {strides = array<i32>} : memref<64x256xf32, #tpu.memory_space<vmem>>, vector<64x256xf32>,
    return
  }
  func.func @transform_0(%arg0: i32) -> (i32, i32) {
    %c0_i32 = arith.constant 0 : i32
    %c0_i32_0 = arith.constant 0 : i32
    %c0_i32_1 = arith.constant 0 : i32
    return %c0_i32, %c0_i32_0 : i32, i32
  }
  func.func @transform_1(%arg0: i32) -> (i32, i32) {
    %c0_i32 = arith.constant 0 : i32
    %c0_i32_0 = arith.constant 0 : i32
    return %c0_i32, %arg0 : i32, i32
  }
  func.func @transform_2(%arg0: i32) -> (i32, i32) {
    %c0_i32 = arith.constant 0 : i32
    %c0_i32_0 = arith.constant 0 : i32
    return %c0_i32, %arg0 : i32, i32
  }
  func.func @transform_3(%arg0: i32) -> (i32, i32) {
    %c0_i32 = arith.constant 0 : i32
    %c0_i32_0 = arith.constant 0 : i32
    return %c0_i32, %arg0 : i32, i32
  }
}

module attributes {stable_mosaic.version = 11 : i64} {
  func.func @_decoder_seq_kernel(%arg0: i32, %arg1: memref<5xi32, #tpu.memory_space<smem>>, %arg2: memref<1x8x1xi32, #tpu.memory_space<vmem>>, %arg3: memref<2x8x32xf32, #tpu.memory_space<vmem>>, %arg4: memref<2x8x32xf32, #tpu.memory_space<vmem>>, %arg5: memref<128x32xbf16, #tpu.memory_space<vmem>>, %arg6: memref<2x32x128xbf16, #tpu.memory_space<vmem>>, %arg7: memref<2x32x128xbf16, #tpu.memory_space<vmem>>, %arg8: memref<2x1x128xf32, #tpu.memory_space<vmem>>, %arg9: memref<32x128xbf16, #tpu.memory_space<vmem>>, %arg10: memref<1x128xf32, #tpu.memory_space<vmem>>, %arg11: memref<1x8x128xf32, #tpu.memory_space<vmem>>, %arg12: memref<2x8x32xf32, #tpu.memory_space<vmem>>, %arg13: memref<2x8x32xf32, #tpu.memory_space<vmem>>, %arg14: memref<8x1xi32, #tpu.memory_space<vmem>>) attributes {dimension_semantics = [#tpu.dimension_semantics<arbitrary>], iteration_bounds = array<i64: 5>, scalar_prefetch = 1 : i64, scratch_operands = 3 : i64, tpu.core_type = #tpu.core_type<tc>, window_params = [{transform_indices = @transform_0, window_bounds = array<i64: 1, 8, 1>}, {pipeline_mode = #tpu.pipeline_mode<synchronous>, transform_indices = @transform_1, window_bounds = array<i64: 2, 8, 32>}, {pipeline_mode = #tpu.pipeline_mode<synchronous>, transform_indices = @transform_2, window_bounds = array<i64: 2, 8, 32>}, {pipeline_mode = #tpu.pipeline_mode<synchronous>, transform_indices = @transform_3, window_bounds = array<i64: 128, 32>}, {pipeline_mode = #tpu.pipeline_mode<synchronous>, transform_indices = @transform_4, window_bounds = array<i64: 2, 32, 128>}, {pipeline_mode = #tpu.pipeline_mode<synchronous>, transform_indices = @transform_5, window_bounds = array<i64: 2, 32, 128>}, {pipeline_mode = #tpu.pipeline_mode<synchronous>, transform_indices = @transform_6, window_bounds = array<i64: 2, 1, 128>}, {pipeline_mode = #tpu.pipeline_mode<synchronous>, transform_indices = @transform_7, window_bounds = array<i64: 32, 128>}, {pipeline_mode = #tpu.pipeline_mode<synchronous>, transform_indices = @transform_8, window_bounds = array<i64: 1, 128>}, {transform_indices = @transform_9, window_bounds = array<i64: 1, 8, 128>}]} {
    %c0_i32 = arith.constant 0 : i32
    %0 = arith.cmpi eq, %arg0, %c0_i32 : i32
    %1 = arith.extui %0 : i1 to i32
    %c0_i32_0 = arith.constant 0 : i32
    %2 = arith.cmpi ne, %1, %c0_i32_0 : i32
    scf.if %2 {
      %c0_69 = arith.constant 0 : index
      %c0_70 = arith.constant 0 : index
      %c0_71 = arith.constant 0 : index
      %132 = vector.load %arg3[%c0_69, %c0_70, %c0_71] : memref<2x8x32xf32, #tpu.memory_space<vmem>>, vector<2x8x32xf32>
      %c0_72 = arith.constant 0 : index
      %c0_73 = arith.constant 0 : index
      %c0_74 = arith.constant 0 : index
      %133 = vector.load %arg12[%c0_72, %c0_73, %c0_74] : memref<2x8x32xf32, #tpu.memory_space<vmem>>, vector<2x8x32xf32>
      tpu.vector_store %arg12[%c0_72, %c0_73, %c0_74], %132 {strides = array<i32>} : memref<2x8x32xf32, #tpu.memory_space<vmem>>, vector<2x8x32xf32>,
      %c0_75 = arith.constant 0 : index
      %c0_76 = arith.constant 0 : index
      %c0_77 = arith.constant 0 : index
      %134 = vector.load %arg4[%c0_75, %c0_76, %c0_77] : memref<2x8x32xf32, #tpu.memory_space<vmem>>, vector<2x8x32xf32>
      %c0_78 = arith.constant 0 : index
      %c0_79 = arith.constant 0 : index
      %c0_80 = arith.constant 0 : index
      %135 = vector.load %arg13[%c0_78, %c0_79, %c0_80] : memref<2x8x32xf32, #tpu.memory_space<vmem>>, vector<2x8x32xf32>
      tpu.vector_store %arg13[%c0_78, %c0_79, %c0_80], %134 {strides = array<i32>} : memref<2x8x32xf32, #tpu.memory_space<vmem>>, vector<2x8x32xf32>,
      %c0_i32_81 = arith.constant 0 : i32
      %136 = vector.broadcast %c0_i32_81 : i32 to vector<8x1xi32>
      %c0_82 = arith.constant 0 : index
      %c0_83 = arith.constant 0 : index
      %137 = vector.load %arg14[%c0_82, %c0_83] : memref<8x1xi32, #tpu.memory_space<vmem>>, vector<8x1xi32>
      tpu.vector_store %arg14[%c0_82, %c0_83], %136 {strides = array<i32>} : memref<8x1xi32, #tpu.memory_space<vmem>>, vector<8x1xi32>,
    } else {
    }
    %3 = arith.index_cast %arg0 : i32 to index
    %4 = memref.load %arg1[%3] : memref<5xi32, #tpu.memory_space<smem>>
    %c0 = arith.constant 0 : index
    %c0_1 = arith.constant 0 : index
    %c0_2 = arith.constant 0 : index
    %5 = vector.load %arg2[%c0, %c0_1, %c0_2] : memref<1x8x1xi32, #tpu.memory_space<vmem>>, vector<1x8x1xi32>
    %6 = vector.shape_cast %5 : vector<1x8x1xi32> to vector<8x1xi32>
    %7 = vector.broadcast %4 : i32 to vector<8x1xi32>
    %8 = arith.muli %7, %6 : vector<8x1xi32>
    %c1_i32 = arith.constant 1 : i32
    %9 = arith.subi %c1_i32, %4 : i32
    %c0_3 = arith.constant 0 : index
    %c0_4 = arith.constant 0 : index
    %10 = vector.load %arg14[%c0_3, %c0_4] : memref<8x1xi32, #tpu.memory_space<vmem>>, vector<8x1xi32>
    %11 = vector.broadcast %9 : i32 to vector<8x1xi32>
    %12 = arith.muli %11, %10 : vector<8x1xi32>
    %13 = arith.addi %8, %12 : vector<8x1xi32>
    %14 = tpu.iota {dimensions = array<i32: 1>} : vector<8x128xi32>
    %15 = vector.broadcast %13 : vector<8x1xi32> to vector<8x128xi32>
    %16 = arith.cmpi eq, %14, %15 : vector<8x128xi32>
    %17 = arith.extui %16 : vector<8x128xi1> to vector<8x128xi32>
    %18 = arith.sitofp %17 : vector<8x128xi32> to vector<8x128xf32>
    %19 = arith.truncf %18 : vector<8x128xf32> to vector<8x128xbf16>
    %c0_5 = arith.constant 0 : index
    %c0_6 = arith.constant 0 : index
    %20 = vector.load %arg5[%c0_5, %c0_6] : memref<128x32xbf16, #tpu.memory_space<vmem>>, vector<128x32xbf16>
    %cst = arith.constant dense<0.000000e+00> : vector<8x32xf32>
    %21 = tpu.matmul %19, %20, %cst {dimension_numbers = #tpu.dot_dimension_numbers<[1], [0], [0], [1], [0, 0, 1, 1], [], []>} : vector<8x128xbf16>, vector<128x32xbf16>, vector<8x32xf32> -> vector<8x32xf32>
    %c0_7 = arith.constant 0 : index
    %c0_8 = arith.constant 0 : index
    %c0_9 = arith.constant 0 : index
    %22 = vector.load %arg12[%c0_7, %c0_8, %c0_9] : memref<2x8x32xf32, #tpu.memory_space<vmem>>, vector<1x8x32xf32>
    %23 = vector.shape_cast %22 : vector<1x8x32xf32> to vector<8x32xf32>
    %c0_10 = arith.constant 0 : index
    %c0_11 = arith.constant 0 : index
    %c0_12 = arith.constant 0 : index
    %24 = vector.load %arg13[%c0_10, %c0_11, %c0_12] : memref<2x8x32xf32, #tpu.memory_space<vmem>>, vector<1x8x32xf32>
    %25 = vector.shape_cast %24 : vector<1x8x32xf32> to vector<8x32xf32>
    %26 = arith.truncf %21 : vector<8x32xf32> to vector<8x32xbf16>
    %c0_13 = arith.constant 0 : index
    %c0_14 = arith.constant 0 : index
    %c0_15 = arith.constant 0 : index
    %27 = vector.load %arg6[%c0_13, %c0_14, %c0_15] : memref<2x32x128xbf16, #tpu.memory_space<vmem>>, vector<1x32x128xbf16>
    %28 = vector.shape_cast %27 : vector<1x32x128xbf16> to vector<32x128xbf16>
    %cst_16 = arith.constant dense<0.000000e+00> : vector<8x128xf32>
    %29 = tpu.matmul %26, %28, %cst_16 {dimension_numbers = #tpu.dot_dimension_numbers<[1], [0], [0], [1], [0, 0, 1, 1], [], []>} : vector<8x32xbf16>, vector<32x128xbf16>, vector<8x128xf32> -> vector<8x128xf32>
    %30 = arith.truncf %23 : vector<8x32xf32> to vector<8x32xbf16>
    %c0_17 = arith.constant 0 : index
    %c0_18 = arith.constant 0 : index
    %c0_19 = arith.constant 0 : index
    %31 = vector.load %arg7[%c0_17, %c0_18, %c0_19] : memref<2x32x128xbf16, #tpu.memory_space<vmem>>, vector<1x32x128xbf16>
    %32 = vector.shape_cast %31 : vector<1x32x128xbf16> to vector<32x128xbf16>
    %cst_20 = arith.constant dense<0.000000e+00> : vector<8x128xf32>
    %33 = tpu.matmul %30, %32, %cst_20 {dimension_numbers = #tpu.dot_dimension_numbers<[1], [0], [0], [1], [0, 0, 1, 1], [], []>} : vector<8x32xbf16>, vector<32x128xbf16>, vector<8x128xf32> -> vector<8x128xf32>
    %34 = arith.addf %29, %33 : vector<8x128xf32>
    %c0_21 = arith.constant 0 : index
    %c0_22 = arith.constant 0 : index
    %c0_23 = arith.constant 0 : index
    %35 = vector.load %arg8[%c0_21, %c0_22, %c0_23] : memref<2x1x128xf32, #tpu.memory_space<vmem>>, vector<1x1x128xf32>
    %36 = vector.shape_cast %35 : vector<1x1x128xf32> to vector<1x128xf32>
    %37 = vector.broadcast %36 : vector<1x128xf32> to vector<8x128xf32>
    %38 = arith.addf %34, %37 : vector<8x128xf32>
    %39 = tpu.iota {dimensions = array<i32: 1>} : vector<8x128xi32>
    %c64_i32 = arith.constant 64 : i32
    %40 = vector.broadcast %c64_i32 : i32 to vector<8x128xi32>
    %41 = arith.cmpi sge, %39, %40 : vector<8x128xi32>
    %c96_i32 = arith.constant 96 : i32
    %42 = vector.broadcast %c96_i32 : i32 to vector<8x128xi32>
    %43 = arith.cmpi slt, %39, %42 : vector<8x128xi32>
    %44 = arith.andi %41, %43 : vector<8x128xi1>
    %45 = math.tanh %38 : vector<8x128xf32>
    %46 = arith.negf %38 : vector<8x128xf32>
    %47 = math.exp %46 : vector<8x128xf32>
    %cst_24 = arith.constant 1.000000e+00 : f32
    %48 = vector.broadcast %cst_24 : f32 to vector<8x128xf32>
    %49 = arith.addf %48, %47 : vector<8x128xf32>
    %50 = arith.divf %48, %49 : vector<8x128xf32>
    %51 = arith.select %44, %45, %50 : vector<8x128xi1>, vector<8x128xf32>
    %52 = vector.extract_strided_slice %51 {offsets = [0, 0], sizes = [8, 32], strides = [1, 1]} : vector<8x128xf32> to vector<8x32xf32>
    %53 = vector.extract_strided_slice %51 {offsets = [0, 32], sizes = [8, 32], strides = [1, 1]} : vector<8x128xf32> to vector<8x32xf32>
    %54 = vector.extract_strided_slice %51 {offsets = [0, 64], sizes = [8, 32], strides = [1, 1]} : vector<8x128xf32> to vector<8x32xf32>
    %55 = vector.extract_strided_slice %51 {offsets = [0, 96], sizes = [8, 32], strides = [1, 1]} : vector<8x128xf32> to vector<8x32xf32>
    %56 = arith.mulf %53, %25 : vector<8x32xf32>
    %57 = arith.mulf %52, %54 : vector<8x32xf32>
    %58 = arith.addf %56, %57 : vector<8x32xf32>
    %59 = math.tanh %58 : vector<8x32xf32>
    %60 = arith.mulf %55, %59 : vector<8x32xf32>
    %c0_25 = arith.constant 0 : index
    %c0_26 = arith.constant 0 : index
    %c0_27 = arith.constant 0 : index
    %61 = vector.load %arg12[%c0_25, %c0_26, %c0_27] : memref<2x8x32xf32, #tpu.memory_space<vmem>>, vector<1x8x32xf32>
    %62 = vector.shape_cast %61 : vector<1x8x32xf32> to vector<8x32xf32>
    %63 = vector.shape_cast %60 : vector<8x32xf32> to vector<1x8x32xf32>
    tpu.vector_store %arg12[%c0_25, %c0_26, %c0_27], %63 {strides = array<i32>} : memref<2x8x32xf32, #tpu.memory_space<vmem>>, vector<1x8x32xf32>,
    %c0_28 = arith.constant 0 : index
    %c0_29 = arith.constant 0 : index
    %c0_30 = arith.constant 0 : index
    %64 = vector.load %arg13[%c0_28, %c0_29, %c0_30] : memref<2x8x32xf32, #tpu.memory_space<vmem>>, vector<1x8x32xf32>
    %65 = vector.shape_cast %64 : vector<1x8x32xf32> to vector<8x32xf32>
    %66 = vector.shape_cast %58 : vector<8x32xf32> to vector<1x8x32xf32>
    tpu.vector_store %arg13[%c0_28, %c0_29, %c0_30], %66 {strides = array<i32>} : memref<2x8x32xf32, #tpu.memory_space<vmem>>, vector<1x8x32xf32>,
    %c1 = arith.constant 1 : index
    %c0_31 = arith.constant 0 : index
    %c0_32 = arith.constant 0 : index
    %67 = vector.load %arg12[%c1, %c0_31, %c0_32] : memref<2x8x32xf32, #tpu.memory_space<vmem>>, vector<1x8x32xf32>
    %68 = vector.shape_cast %67 : vector<1x8x32xf32> to vector<8x32xf32>
    %c1_33 = arith.constant 1 : index
    %c0_34 = arith.constant 0 : index
    %c0_35 = arith.constant 0 : index
    %69 = vector.load %arg13[%c1_33, %c0_34, %c0_35] : memref<2x8x32xf32, #tpu.memory_space<vmem>>, vector<1x8x32xf32>
    %70 = vector.shape_cast %69 : vector<1x8x32xf32> to vector<8x32xf32>
    %71 = arith.truncf %60 : vector<8x32xf32> to vector<8x32xbf16>
    %c1_36 = arith.constant 1 : index
    %c0_37 = arith.constant 0 : index
    %c0_38 = arith.constant 0 : index
    %72 = vector.load %arg6[%c1_36, %c0_37, %c0_38] : memref<2x32x128xbf16, #tpu.memory_space<vmem>>, vector<1x32x128xbf16>
    %73 = vector.shape_cast %72 : vector<1x32x128xbf16> to vector<32x128xbf16>
    %cst_39 = arith.constant dense<0.000000e+00> : vector<8x128xf32>
    %74 = tpu.matmul %71, %73, %cst_39 {dimension_numbers = #tpu.dot_dimension_numbers<[1], [0], [0], [1], [0, 0, 1, 1], [], []>} : vector<8x32xbf16>, vector<32x128xbf16>, vector<8x128xf32> -> vector<8x128xf32>
    %75 = arith.truncf %68 : vector<8x32xf32> to vector<8x32xbf16>
    %c1_40 = arith.constant 1 : index
    %c0_41 = arith.constant 0 : index
    %c0_42 = arith.constant 0 : index
    %76 = vector.load %arg7[%c1_40, %c0_41, %c0_42] : memref<2x32x128xbf16, #tpu.memory_space<vmem>>, vector<1x32x128xbf16>
    %77 = vector.shape_cast %76 : vector<1x32x128xbf16> to vector<32x128xbf16>
    %cst_43 = arith.constant dense<0.000000e+00> : vector<8x128xf32>
    %78 = tpu.matmul %75, %77, %cst_43 {dimension_numbers = #tpu.dot_dimension_numbers<[1], [0], [0], [1], [0, 0, 1, 1], [], []>} : vector<8x32xbf16>, vector<32x128xbf16>, vector<8x128xf32> -> vector<8x128xf32>
    %79 = arith.addf %74, %78 : vector<8x128xf32>
    %c1_44 = arith.constant 1 : index
    %c0_45 = arith.constant 0 : index
    %c0_46 = arith.constant 0 : index
    %80 = vector.load %arg8[%c1_44, %c0_45, %c0_46] : memref<2x1x128xf32, #tpu.memory_space<vmem>>, vector<1x1x128xf32>
    %81 = vector.shape_cast %80 : vector<1x1x128xf32> to vector<1x128xf32>
    %82 = vector.broadcast %81 : vector<1x128xf32> to vector<8x128xf32>
    %83 = arith.addf %79, %82 : vector<8x128xf32>
    %84 = tpu.iota {dimensions = array<i32: 1>} : vector<8x128xi32>
    %c64_i32_47 = arith.constant 64 : i32
    %85 = vector.broadcast %c64_i32_47 : i32 to vector<8x128xi32>
    %86 = arith.cmpi sge, %84, %85 : vector<8x128xi32>
    %c96_i32_48 = arith.constant 96 : i32
    %87 = vector.broadcast %c96_i32_48 : i32 to vector<8x128xi32>
    %88 = arith.cmpi slt, %84, %87 : vector<8x128xi32>
    %89 = arith.andi %86, %88 : vector<8x128xi1>
    %90 = math.tanh %83 : vector<8x128xf32>
    %91 = arith.negf %83 : vector<8x128xf32>
    %92 = math.exp %91 : vector<8x128xf32>
    %cst_49 = arith.constant 1.000000e+00 : f32
    %93 = vector.broadcast %cst_49 : f32 to vector<8x128xf32>
    %94 = arith.addf %93, %92 : vector<8x128xf32>
    %95 = arith.divf %93, %94 : vector<8x128xf32>
    %96 = arith.select %89, %90, %95 : vector<8x128xi1>, vector<8x128xf32>
    %97 = vector.extract_strided_slice %96 {offsets = [0, 0], sizes = [8, 32], strides = [1, 1]} : vector<8x128xf32> to vector<8x32xf32>
    %98 = vector.extract_strided_slice %96 {offsets = [0, 32], sizes = [8, 32], strides = [1, 1]} : vector<8x128xf32> to vector<8x32xf32>
    %99 = vector.extract_strided_slice %96 {offsets = [0, 64], sizes = [8, 32], strides = [1, 1]} : vector<8x128xf32> to vector<8x32xf32>
    %100 = vector.extract_strided_slice %96 {offsets = [0, 96], sizes = [8, 32], strides = [1, 1]} : vector<8x128xf32> to vector<8x32xf32>
    %101 = arith.mulf %98, %70 : vector<8x32xf32>
    %102 = arith.mulf %97, %99 : vector<8x32xf32>
    %103 = arith.addf %101, %102 : vector<8x32xf32>
    %104 = math.tanh %103 : vector<8x32xf32>
    %105 = arith.mulf %100, %104 : vector<8x32xf32>
    %c1_50 = arith.constant 1 : index
    %c0_51 = arith.constant 0 : index
    %c0_52 = arith.constant 0 : index
    %106 = vector.load %arg12[%c1_50, %c0_51, %c0_52] : memref<2x8x32xf32, #tpu.memory_space<vmem>>, vector<1x8x32xf32>
    %107 = vector.shape_cast %106 : vector<1x8x32xf32> to vector<8x32xf32>
    %108 = vector.shape_cast %105 : vector<8x32xf32> to vector<1x8x32xf32>
    tpu.vector_store %arg12[%c1_50, %c0_51, %c0_52], %108 {strides = array<i32>} : memref<2x8x32xf32, #tpu.memory_space<vmem>>, vector<1x8x32xf32>,
    %c1_53 = arith.constant 1 : index
    %c0_54 = arith.constant 0 : index
    %c0_55 = arith.constant 0 : index
    %109 = vector.load %arg13[%c1_53, %c0_54, %c0_55] : memref<2x8x32xf32, #tpu.memory_space<vmem>>, vector<1x8x32xf32>
    %110 = vector.shape_cast %109 : vector<1x8x32xf32> to vector<8x32xf32>
    %111 = vector.shape_cast %103 : vector<8x32xf32> to vector<1x8x32xf32>
    tpu.vector_store %arg13[%c1_53, %c0_54, %c0_55], %111 {strides = array<i32>} : memref<2x8x32xf32, #tpu.memory_space<vmem>>, vector<1x8x32xf32>,
    %112 = arith.truncf %105 : vector<8x32xf32> to vector<8x32xbf16>
    %c0_56 = arith.constant 0 : index
    %c0_57 = arith.constant 0 : index
    %113 = vector.load %arg9[%c0_56, %c0_57] : memref<32x128xbf16, #tpu.memory_space<vmem>>, vector<32x128xbf16>
    %cst_58 = arith.constant dense<0.000000e+00> : vector<8x128xf32>
    %114 = tpu.matmul %112, %113, %cst_58 {dimension_numbers = #tpu.dot_dimension_numbers<[1], [0], [0], [1], [0, 0, 1, 1], [], []>} : vector<8x32xbf16>, vector<32x128xbf16>, vector<8x128xf32> -> vector<8x128xf32>
    %c0_59 = arith.constant 0 : index
    %c0_60 = arith.constant 0 : index
    %115 = vector.load %arg10[%c0_59, %c0_60] : memref<1x128xf32, #tpu.memory_space<vmem>>, vector<1x128xf32>
    %116 = vector.broadcast %115 : vector<1x128xf32> to vector<8x128xf32>
    %117 = arith.addf %114, %116 : vector<8x128xf32>
    %c0_61 = arith.constant 0 : index
    %c0_62 = arith.constant 0 : index
    %c0_63 = arith.constant 0 : index
    %118 = vector.load %arg11[%c0_61, %c0_62, %c0_63] : memref<1x8x128xf32, #tpu.memory_space<vmem>>, vector<1x8x128xf32>
    %119 = vector.shape_cast %118 : vector<1x8x128xf32> to vector<8x128xf32>
    %120 = vector.shape_cast %117 : vector<8x128xf32> to vector<1x8x128xf32>
    tpu.vector_store %arg11[%c0_61, %c0_62, %c0_63], %120 {strides = array<i32>} : memref<1x8x128xf32, #tpu.memory_space<vmem>>, vector<1x8x128xf32>,
    %cst_64 = arith.constant dense<0xFF800000> : vector<8xf32>
    %121 = vector.multi_reduction <maximumf>, %117, %cst_64 [1] : vector<8x128xf32> to vector<8xf32>
    %122 = vector.shape_cast %121 : vector<8xf32> to vector<8x1xf32>
    %123 = vector.broadcast %122 : vector<8x1xf32> to vector<8x128xf32>
    %124 = arith.cmpf oge, %117, %123 : vector<8x128xf32>
    %125 = arith.sitofp %14 : vector<8x128xi32> to vector<8x128xf32>
    %cst_65 = arith.constant 1.280000e+02 : f32
    %126 = vector.broadcast %cst_65 : f32 to vector<8x128xf32>
    %127 = arith.select %124, %125, %126 : vector<8x128xi1>, vector<8x128xf32>
    %cst_66 = arith.constant dense<0x7F800000> : vector<8xf32>
    %128 = vector.multi_reduction <minimumf>, %127, %cst_66 [1] : vector<8x128xf32> to vector<8xf32>
    %129 = vector.shape_cast %128 : vector<8xf32> to vector<8x1xf32>
    %130 = arith.fptosi %129 : vector<8x1xf32> to vector<8x1xi32>
    %c0_67 = arith.constant 0 : index
    %c0_68 = arith.constant 0 : index
    %131 = vector.load %arg14[%c0_67, %c0_68] : memref<8x1xi32, #tpu.memory_space<vmem>>, vector<8x1xi32>
    tpu.vector_store %arg14[%c0_67, %c0_68], %130 {strides = array<i32>} : memref<8x1xi32, #tpu.memory_space<vmem>>, vector<8x1xi32>,
    return
  }
  func.func @transform_0(%arg0: i32, %arg1: memref<5xi32, #tpu.memory_space<smem>>) -> (i32, i32, i32) {
    %c0_i32 = arith.constant 0 : i32
    %c0_i32_0 = arith.constant 0 : i32
    %c0_i32_1 = arith.constant 0 : i32
    return %arg0, %c0_i32, %c0_i32_0 : i32, i32, i32
  }
  func.func @transform_1(%arg0: i32, %arg1: memref<5xi32, #tpu.memory_space<smem>>) -> (i32, i32, i32) {
    %c0_i32 = arith.constant 0 : i32
    %c0_i32_0 = arith.constant 0 : i32
    %c0_i32_1 = arith.constant 0 : i32
    %c0_i32_2 = arith.constant 0 : i32
    return %c0_i32, %c0_i32_0, %c0_i32_1 : i32, i32, i32
  }
  func.func @transform_2(%arg0: i32, %arg1: memref<5xi32, #tpu.memory_space<smem>>) -> (i32, i32, i32) {
    %c0_i32 = arith.constant 0 : i32
    %c0_i32_0 = arith.constant 0 : i32
    %c0_i32_1 = arith.constant 0 : i32
    %c0_i32_2 = arith.constant 0 : i32
    return %c0_i32, %c0_i32_0, %c0_i32_1 : i32, i32, i32
  }
  func.func @transform_3(%arg0: i32, %arg1: memref<5xi32, #tpu.memory_space<smem>>) -> (i32, i32) {
    %c0_i32 = arith.constant 0 : i32
    %c0_i32_0 = arith.constant 0 : i32
    %c0_i32_1 = arith.constant 0 : i32
    return %c0_i32, %c0_i32_0 : i32, i32
  }
  func.func @transform_4(%arg0: i32, %arg1: memref<5xi32, #tpu.memory_space<smem>>) -> (i32, i32, i32) {
    %c0_i32 = arith.constant 0 : i32
    %c0_i32_0 = arith.constant 0 : i32
    %c0_i32_1 = arith.constant 0 : i32
    %c0_i32_2 = arith.constant 0 : i32
    return %c0_i32, %c0_i32_0, %c0_i32_1 : i32, i32, i32
  }
  func.func @transform_5(%arg0: i32, %arg1: memref<5xi32, #tpu.memory_space<smem>>) -> (i32, i32, i32) {
    %c0_i32 = arith.constant 0 : i32
    %c0_i32_0 = arith.constant 0 : i32
    %c0_i32_1 = arith.constant 0 : i32
    %c0_i32_2 = arith.constant 0 : i32
    return %c0_i32, %c0_i32_0, %c0_i32_1 : i32, i32, i32
  }
  func.func @transform_6(%arg0: i32, %arg1: memref<5xi32, #tpu.memory_space<smem>>) -> (i32, i32, i32) {
    %c0_i32 = arith.constant 0 : i32
    %c0_i32_0 = arith.constant 0 : i32
    %c0_i32_1 = arith.constant 0 : i32
    %c0_i32_2 = arith.constant 0 : i32
    return %c0_i32, %c0_i32_0, %c0_i32_1 : i32, i32, i32
  }
  func.func @transform_7(%arg0: i32, %arg1: memref<5xi32, #tpu.memory_space<smem>>) -> (i32, i32) {
    %c0_i32 = arith.constant 0 : i32
    %c0_i32_0 = arith.constant 0 : i32
    %c0_i32_1 = arith.constant 0 : i32
    return %c0_i32, %c0_i32_0 : i32, i32
  }
  func.func @transform_8(%arg0: i32, %arg1: memref<5xi32, #tpu.memory_space<smem>>) -> (i32, i32) {
    %c0_i32 = arith.constant 0 : i32
    %c0_i32_0 = arith.constant 0 : i32
    %c0_i32_1 = arith.constant 0 : i32
    return %c0_i32, %c0_i32_0 : i32, i32
  }
  func.func @transform_9(%arg0: i32, %arg1: memref<5xi32, #tpu.memory_space<smem>>) -> (i32, i32, i32) {
    %c0_i32 = arith.constant 0 : i32
    %c0_i32_0 = arith.constant 0 : i32
    %c0_i32_1 = arith.constant 0 : i32
    return %arg0, %c0_i32, %c0_i32_0 : i32, i32, i32
  }
}

</mosaic_0001>

<llo_original>
// kernel: _seq2seq_core.5
$region0: #{_seq2seq_core.5}
  #allocation0 [shape = 'u32[]', space=smem, size = 0x4, offset = 0x4, fixed_abs, tag = 'smem constant byte address 0x4 - core index']
  #allocation1 [shape = 'u32[144,128]{1,0:T(1,128)}', space=vmem, size = 0x12000, scoped, tag = 'internal scratch']
  %s0 = inlined_call_operand.vmem [shape: bf16[64,16], index: 0, kind: input, shape index: {}]
  %s1 = inlined_call_operand.vmem [shape: bf16[16,256], index: 1, kind: input, shape index: {}]
  %s2 = inlined_call_operand.vmem [shape: f32[1,256], index: 2, kind: input, shape index: {}]
  %s3 = inlined_call_operand.vmem [shape: f32[64,256], index: 3, kind: output, shape index: {}]
  %s4 = sld [smem:[#allocation0]]
  $region22: #{_seq2seq_core.5} parent=0
    _
  %s6 = ssub.s32 1, %s4
  %s7 = scalar_select 0, %s6, %s4
  // Predicated region
  $region2: #{_seq2seq_core.5} parent=0 // pred_check
    _
  $region3: #{_seq2seq_core.5} parent=0 // pred_check_branch
    %9 = sbr.rel (0) target = $region5
  $region4: #{_seq2seq_core.5} parent=0 // pred_region
    _
  $region5: #{_seq2seq_core.5} parent=0 // pred_fallthru
    _
  // Predicated region
  $region6: #{_seq2seq_core.5} parent=0 // pred_check
    _
  $region7: #{_seq2seq_core.5} parent=0 // pred_check_branch
    %11 = sbr.rel (0) target = $region9
  $region8: #{_seq2seq_core.5} parent=0 // pred_region
    _
  $region9: #{_seq2seq_core.5} parent=0 // pred_fallthru
    _
  // Predicated region
  $region10: #{_seq2seq_core.5} parent=0 // pred_check
    _
  $region11: #{_seq2seq_core.5} parent=0 // pred_check_branch
    %13 = sbr.rel (0) target = $region13
  $region12: #{_seq2seq_core.5} parent=0 // pred_region
    _
  $region13: #{_seq2seq_core.5} parent=0 // pred_fallthru
    _
  %v15 = vld [vmem:[%s0] sm:$0xf]
  %v16 = vld [vmem:[%s0 + $0x4] sm:$0xf]
  %v17 = vld [vmem:[%s0 + $0x8] sm:$0xf]
  %v18 = vld [vmem:[%s0 + $0xc] sm:$0xf]
  %v19 = vld [vmem:[%s0 + $0x10] sm:$0xf]
  %v20 = vld [vmem:[%s0 + $0x14] sm:$0xf]
  %v21 = vld [vmem:[%s0 + $0x18] sm:$0xf]
  %v22 = vld [vmem:[%s0 + $0x1c] sm:$0xf]
  %v23 = vld [vmem:[%s1] sm:$0xff]
  %v24 = vld [vmem:[%s1 + $0x8] sm:$0xff]
  %v25 = vld [vmem:[%s2] sm:$0x3]
  %v27 = vlaneseq
  %v28 = vshrl.u32 %v27, 7
  %v29 = vsub.s32 0, %v28
  %v30 = vrot.slane %v25, %v29
  %v31 = vlaneseq
  %v32 = vshrl.u32 %v31, 7
  %v33 = vsub.s32 1, %v32
  %v34 = vrot.slane %v25, %v33
  %v45 = vunpack.c.l.b16 %v15
  %v46 = vunpack.c.l.b16 %v16
  %v47 = vunpack.c.l.b16 %v17
  %v48 = vunpack.c.l.b16 %v18
  %v49 = vunpack.c.l.b16 %v19
  %v50 = vunpack.c.l.b16 %v20
  %v51 = vunpack.c.l.b16 %v21
  %v52 = vunpack.c.l.b16 %v22
  %v53 = vpack.c.b16 %v46, %v45
  %v54 = vpack.c.b16 %v48, %v47
  %v55 = vpack.c.b16 %v50, %v49
  %v56 = vpack.c.b16 %v52, %v51
  %v59 = vunpack.c.l.b16 %v23
  %v60 = vunpack.c.h.b16 %v23
  %v61 = vunpack.c.l.b16 %v24
  %v62 = vunpack.c.h.b16 %v24
  %v63 = vpack.c.b16 %v61, %v59
  %v64 = vpack.c.b16 %v62, %v60
  %vm67 = vcmask 130048
  %v69 = vsel %vm67, %v53, 0
  %v72 = vsel %vm67, %v54, 0
  %v75 = vsel %vm67, %v55, 0
  %v78 = vsel %vm67, %v56, 0
  %80 = vmatprep.subr.bf16.mxu0 0
  %81 = vmatpush1.bf16.msra.mxu0 0
  %82 = vmatprep.subr.bf16.mxu0 0
  %83 = vmatpush1.bf16.msra.mxu0 0
  %84 = vmatprep.subr.bf16.mxu0 0
  %85 = vmatpush1.bf16.msra.mxu0 0
  %86 = vmatprep.subr.bf16.mxu0 0
  %87 = vmatpush1.bf16.msra.mxu0 0
  %88 = vmatprep.subr.bf16.mxu0 0
  %89 = vmatpush1.bf16.msra.mxu0 0
  %90 = vmatprep.subr.bf16.mxu0 0
  %91 = vmatpush1.bf16.msra.mxu0 0
  %92 = vmatprep.subr.bf16.mxu0 0
  %93 = vmatpush1.bf16.msra.mxu0 0
  %94 = vmatprep.subr.bf16.mxu0 %v64
  %95 = vmatpush1.bf16.msra.mxu0 %v63
  %96 = vmatprep.subr.bf16.mxu0 0
  %97 = vmatpush2.bf16.msra.mxu0 0
  %98 = vmatprep.subr.bf16.mxu0 0
  %99 = vmatpush2.bf16.msra.mxu0 0
  %100 = vmatprep.subr.bf16.mxu0 0
  %101 = vmatpush2.bf16.msra.mxu0 0
  %102 = vmatprep.subr.bf16.mxu0 0
  %103 = vmatpush2.bf16.msra.mxu0 0
  %104 = vmatprep.subr.bf16.mxu0 0
  %105 = vmatpush2.bf16.msra.mxu0 0
  %106 = vmatprep.subr.bf16.mxu0 0
  %107 = vmatpush2.bf16.msra.mxu0 0
  %108 = vmatprep.subr.bf16.mxu0 0
  %109 = vmatpush2.bf16.msra.mxu0 0
  %110 = vmatprep.subr.bf16.mxu0 0
  %111 = vmatpush2.bf16.msra.mxu0 0
  %112 = vmatprep.mubr.bf16.mxu0 0
  %113 = vmatmul.mubr.bf16.gmra.mxu0 %v69
  %v114 = vpop.f32.mrf.mxu0
  %v115 = vadd.f32 %v30, %v114
  %v116 = vpop.f32.mrf.mxu0
  %v117 = vadd.f32 %v34, %v116
  %v118 = vpop.f32.mrf.mxu0
  %v119 = vadd.f32 %v30, %v118
  %v120 = vpop.f32.mrf.mxu0
  %v121 = vadd.f32 %v34, %v120
  %122 = vmatprep.mubr.bf16.mxu0 0
  %123 = vmatmul.mubr.bf16.gmra.mxu0 %v72
  %v124 = vpop.f32.mrf.mxu0
  %v125 = vadd.f32 %v30, %v124
  %v126 = vpop.f32.mrf.mxu0
  %v127 = vadd.f32 %v34, %v126
  %v128 = vpop.f32.mrf.mxu0
  %v129 = vadd.f32 %v30, %v128
  %v130 = vpop.f32.mrf.mxu0
  %v131 = vadd.f32 %v34, %v130
  %132 = vmatprep.mubr.bf16.mxu0 0
  %133 = vmatmul.mubr.bf16.gmra.mxu0 %v75
  %v134 = vpop.f32.mrf.mxu0
  %v135 = vadd.f32 %v30, %v134
  %v136 = vpop.f32.mrf.mxu0
  %v137 = vadd.f32 %v34, %v136
  %v138 = vpop.f32.mrf.mxu0
  %v139 = vadd.f32 %v30, %v138
  %v140 = vpop.f32.mrf.mxu0
  %v141 = vadd.f32 %v34, %v140
  %142 = vmatprep.mubr.bf16.mxu0 0
  %143 = vmatmul.mubr.bf16.gmra.mxu0 %v78
  %v144 = vpop.f32.mrf.mxu0
  %v145 = vadd.f32 %v30, %v144
  %v146 = vpop.f32.mrf.mxu0
  %v147 = vadd.f32 %v34, %v146
  %v148 = vpop.f32.mrf.mxu0
  %v149 = vadd.f32 %v30, %v148
  %v150 = vpop.f32.mrf.mxu0
  %v151 = vadd.f32 %v34, %v150
  %152 = vdwg.mxu0
  %153 = vst [vmem:[%s3] sm:$0xff] %v115
  %154 = vst [vmem:[%s3 + $0x8] sm:$0xff] %v117
  %155 = vst [vmem:[%s3 + $0x10] sm:$0xff] %v119
  %156 = vst [vmem:[%s3 + $0x18] sm:$0xff] %v121
  %157 = vst [vmem:[%s3 + $0x20] sm:$0xff] %v125
  %158 = vst [vmem:[%s3 + $0x28] sm:$0xff] %v127
  %159 = vst [vmem:[%s3 + $0x30] sm:$0xff] %v129
  %160 = vst [vmem:[%s3 + $0x38] sm:$0xff] %v131
  %161 = vst [vmem:[%s3 + $0x40] sm:$0xff] %v135
  %162 = vst [vmem:[%s3 + $0x48] sm:$0xff] %v137
  %163 = vst [vmem:[%s3 + $0x50] sm:$0xff] %v139
  %164 = vst [vmem:[%s3 + $0x58] sm:$0xff] %v141
  %165 = vst [vmem:[%s3 + $0x60] sm:$0xff] %v145
  %166 = vst [vmem:[%s3 + $0x68] sm:$0xff] %v147
  %167 = vst [vmem:[%s3 + $0x70] sm:$0xff] %v149
  %168 = vst [vmem:[%s3 + $0x78] sm:$0xff] %v151
  // Predicated region
  $region14: #{_seq2seq_core.5} parent=0 // pred_check
    _
  $region15: #{_seq2seq_core.5} parent=0 // pred_check_branch
    %170 = sbr.rel (0) target = $region17
  $region16: #{_seq2seq_core.5} parent=0 // pred_region
    _
  $region17: #{_seq2seq_core.5} parent=0 // pred_fallthru
    _
  // Predicated region
  $region18: #{_seq2seq_core.5} parent=0 // pred_check
    _
  $region19: #{_seq2seq_core.5} parent=0 // pred_check_branch
    %172 = sbr.rel (0) target = $region21
  $region20: #{_seq2seq_core.5} parent=0 // pred_region
    _
  $region21: #{_seq2seq_core.5} parent=0 // pred_fallthru
    _

// kernel: _seq2seq_core.7
$region0: #{_seq2seq_core.7}
  #allocation0 [shape = 'u32[]', space=smem, size = 0x4, offset = 0x4, fixed_abs, tag = 'smem constant byte address 0x4 - core index']
  #allocation1 [shape = 'u32[144,128]{1,0:T(1,128)}', space=vmem, size = 0x12000, scoped, tag = 'internal scratch']
  %s0 = inlined_call_operand.vmem [shape: bf16[64,64], index: 0, kind: input, shape index: {}]
  %s1 = inlined_call_operand.vmem [shape: bf16[64,256], index: 1, kind: input, shape index: {}]
  %s2 = inlined_call_operand.vmem [shape: f32[1,256], index: 2, kind: input, shape index: {}]
  %s3 = inlined_call_operand.vmem [shape: f32[64,256], index: 3, kind: output, shape index: {}]
  %s4 = sld [smem:[#allocation0]]
  $region22: #{_seq2seq_core.7} parent=0
    _
  %s6 = ssub.s32 1, %s4
  %s7 = scalar_select 0, %s6, %s4
  // Predicated region
  $region2: #{_seq2seq_core.7} parent=0 // pred_check
    _
  $region3: #{_seq2seq_core.7} parent=0 // pred_check_branch
    %9 = sbr.rel (0) target = $region5
  $region4: #{_seq2seq_core.7} parent=0 // pred_region
    _
  $region5: #{_seq2seq_core.7} parent=0 // pred_fallthru
    _
  // Predicated region
  $region6: #{_seq2seq_core.7} parent=0 // pred_check
    _
  $region7: #{_seq2seq_core.7} parent=0 // pred_check_branch
    %11 = sbr.rel (0) target = $region9
  $region8: #{_seq2seq_core.7} parent=0 // pred_region
    _
  $region9: #{_seq2seq_core.7} parent=0 // pred_fallthru
    _
  // Predicated region
  $region10: #{_seq2seq_core.7} parent=0 // pred_check
    _
  $region11: #{_seq2seq_core.7} parent=0 // pred_check_branch
    %13 = sbr.rel (0) target = $region13
  $region12: #{_seq2seq_core.7} parent=0 // pred_region
    _
  $region13: #{_seq2seq_core.7} parent=0 // pred_fallthru
    _
  %v15 = vld [vmem:[%s0] sm:$0xf]
  %v16 = vld [vmem:[%s0 + $0x4] sm:$0xf]
  %v17 = vld [vmem:[%s0 + $0x8] sm:$0xf]
  %v18 = vld [vmem:[%s0 + $0xc] sm:$0xf]
  %v19 = vld [vmem:[%s0 + $0x10] sm:$0xf]
  %v20 = vld [vmem:[%s0 + $0x14] sm:$0xf]
  %v21 = vld [vmem:[%s0 + $0x18] sm:$0xf]
  %v22 = vld [vmem:[%s0 + $0x1c] sm:$0xf]
  %v23 = vld [vmem:[%s1] sm:$0xff]
  %v24 = vld [vmem:[%s1 + $0x8] sm:$0xff]
  %v25 = vld [vmem:[%s1 + $0x10] sm:$0xff]
  %v26 = vld [vmem:[%s1 + $0x18] sm:$0xff]
  %v27 = vld [vmem:[%s1 + $0x20] sm:$0xff]
  %v28 = vld [vmem:[%s1 + $0x28] sm:$0xff]
  %v29 = vld [vmem:[%s1 + $0x30] sm:$0xff]
  %v30 = vld [vmem:[%s1 + $0x38] sm:$0xff]
  %v31 = vld [vmem:[%s2] sm:$0x3]
  %v33 = vlaneseq
  %v34 = vshrl.u32 %v33, 7
  %v35 = vsub.s32 0, %v34
  %v36 = vrot.slane %v31, %v35
  %v37 = vlaneseq
  %v38 = vshrl.u32 %v37, 7
  %v39 = vsub.s32 1, %v38
  %v40 = vrot.slane %v31, %v39
  %v51 = vunpack.c.l.b16 %v15
  %v52 = vunpack.c.l.b16 %v16
  %v53 = vunpack.c.l.b16 %v17
  %v54 = vunpack.c.l.b16 %v18
  %v55 = vunpack.c.l.b16 %v19
  %v56 = vunpack.c.l.b16 %v20
  %v57 = vunpack.c.l.b16 %v21
  %v58 = vunpack.c.l.b16 %v22
  %v59 = vpack.c.b16 %v52, %v51
  %v60 = vpack.c.b16 %v54, %v53
  %v61 = vpack.c.b16 %v56, %v55
  %v62 = vpack.c.b16 %v58, %v57
  %v71 = vunpack.c.l.b16 %v23
  %v72 = vunpack.c.h.b16 %v23
  %v73 = vunpack.c.l.b16 %v24
  %v74 = vunpack.c.h.b16 %v24
  %v75 = vunpack.c.l.b16 %v25
  %v76 = vunpack.c.h.b16 %v25
  %v77 = vunpack.c.l.b16 %v26
  %v78 = vunpack.c.h.b16 %v26
  %v79 = vunpack.c.l.b16 %v27
  %v80 = vunpack.c.h.b16 %v27
  %v81 = vunpack.c.l.b16 %v28
  %v82 = vunpack.c.h.b16 %v28
  %v83 = vunpack.c.l.b16 %v29
  %v84 = vunpack.c.h.b16 %v29
  %v85 = vunpack.c.l.b16 %v30
  %v86 = vunpack.c.h.b16 %v30
  %v87 = vpack.c.b16 %v73, %v71
  %v88 = vpack.c.b16 %v74, %v72
  %v89 = vpack.c.b16 %v77, %v75
  %v90 = vpack.c.b16 %v78, %v76
  %v91 = vpack.c.b16 %v81, %v79
  %v92 = vpack.c.b16 %v82, %v80
  %v93 = vpack.c.b16 %v85, %v83
  %v94 = vpack.c.b16 %v86, %v84
  %vm103 = vcmask 523264
  %v105 = vsel %vm103, %v59, 0
  %v108 = vsel %vm103, %v60, 0
  %v111 = vsel %vm103, %v61, 0
  %v114 = vsel %vm103, %v62, 0
  %116 = vmatprep.subr.bf16.mxu0 0
  %117 = vmatpush1.bf16.msra.mxu0 0
  %118 = vmatprep.subr.bf16.mxu0 0
  %119 = vmatpush1.bf16.msra.mxu0 0
  %120 = vmatprep.subr.bf16.mxu0 0
  %121 = vmatpush1.bf16.msra.mxu0 0
  %122 = vmatprep.subr.bf16.mxu0 0
  %123 = vmatpush1.bf16.msra.mxu0 0
  %124 = vmatprep.subr.bf16.mxu0 %v94
  %125 = vmatpush1.bf16.msra.mxu0 %v93
  %126 = vmatprep.subr.bf16.mxu0 %v92
  %127 = vmatpush1.bf16.msra.mxu0 %v91
  %128 = vmatprep.subr.bf16.mxu0 %v90
  %129 = vmatpush1.bf16.msra.mxu0 %v89
  %130 = vmatprep.subr.bf16.mxu0 %v88
  %131 = vmatpush1.bf16.msra.mxu0 %v87
  %132 = vmatprep.subr.bf16.mxu0 0
  %133 = vmatpush2.bf16.msra.mxu0 0
  %134 = vmatprep.subr.bf16.mxu0 0
  %135 = vmatpush2.bf16.msra.mxu0 0
  %136 = vmatprep.subr.bf16.mxu0 0
  %137 = vmatpush2.bf16.msra.mxu0 0
  %138 = vmatprep.subr.bf16.mxu0 0
  %139 = vmatpush2.bf16.msra.mxu0 0
  %140 = vmatprep.subr.bf16.mxu0 0
  %141 = vmatpush2.bf16.msra.mxu0 0
  %142 = vmatprep.subr.bf16.mxu0 0
  %143 = vmatpush2.bf16.msra.mxu0 0
  %144 = vmatprep.subr.bf16.mxu0 0
  %145 = vmatpush2.bf16.msra.mxu0 0
  %146 = vmatprep.subr.bf16.mxu0 0
  %147 = vmatpush2.bf16.msra.mxu0 0
  %148 = vmatprep.mubr.bf16.mxu0 0
  %149 = vmatmul.mubr.bf16.gmra.mxu0 %v105
  %v150 = vpop.f32.mrf.mxu0
  %v151 = vadd.f32 %v36, %v150
  %v152 = vpop.f32.mrf.mxu0
  %v153 = vadd.f32 %v40, %v152
  %v154 = vpop.f32.mrf.mxu0
  %v155 = vadd.f32 %v36, %v154
  %v156 = vpop.f32.mrf.mxu0
  %v157 = vadd.f32 %v40, %v156
  %158 = vmatprep.mubr.bf16.mxu0 0
  %159 = vmatmul.mubr.bf16.gmra.mxu0 %v108
  %v160 = vpop.f32.mrf.mxu0
  %v161 = vadd.f32 %v36, %v160
  %v162 = vpop.f32.mrf.mxu0
  %v163 = vadd.f32 %v40, %v162
  %v164 = vpop.f32.mrf.mxu0
  %v165 = vadd.f32 %v36, %v164
  %v166 = vpop.f32.mrf.mxu0
  %v167 = vadd.f32 %v40, %v166
  %168 = vmatprep.mubr.bf16.mxu0 0
  %169 = vmatmul.mubr.bf16.gmra.mxu0 %v111
  %v170 = vpop.f32.mrf.mxu0
  %v171 = vadd.f32 %v36, %v170
  %v172 = vpop.f32.mrf.mxu0
  %v173 = vadd.f32 %v40, %v172
  %v174 = vpop.f32.mrf.mxu0
  %v175 = vadd.f32 %v36, %v174
  %v176 = vpop.f32.mrf.mxu0
  %v177 = vadd.f32 %v40, %v176
  %178 = vmatprep.mubr.bf16.mxu0 0
  %179 = vmatmul.mubr.bf16.gmra.mxu0 %v114
  %v180 = vpop.f32.mrf.mxu0
  %v181 = vadd.f32 %v36, %v180
  %v182 = vpop.f32.mrf.mxu0
  %v183 = vadd.f32 %v40, %v182
  %v184 = vpop.f32.mrf.mxu0
  %v185 = vadd.f32 %v36, %v184
  %v186 = vpop.f32.mrf.mxu0
  %v187 = vadd.f32 %v40, %v186
  %188 = vdwg.mxu0
  %189 = vst [vmem:[%s3] sm:$0xff] %v151
  %190 = vst [vmem:[%s3 + $0x8] sm:$0xff] %v153
  %191 = vst [vmem:[%s3 + $0x10] sm:$0xff] %v155
  %192 = vst [vmem:[%s3 + $0x18] sm:$0xff] %v157
  %193 = vst [vmem:[%s3 + $0x20] sm:$0xff] %v161
  %194 = vst [vmem:[%s3 + $0x28] sm:$0xff] %v163
  %195 = vst [vmem:[%s3 + $0x30] sm:$0xff] %v165
  %196 = vst [vmem:[%s3 + $0x38] sm:$0xff] %v167
  %197 = vst [vmem:[%s3 + $0x40] sm:$0xff] %v171
  %198 = vst [vmem:[%s3 + $0x48] sm:$0xff] %v173
  %199 = vst [vmem:[%s3 + $0x50] sm:$0xff] %v175
  %200 = vst [vmem:[%s3 + $0x58] sm:$0xff] %v177
  %201 = vst [vmem:[%s3 + $0x60] sm:$0xff] %v181
  %202 = vst [vmem:[%s3 + $0x68] sm:$0xff] %v183
  %203 = vst [vmem:[%s3 + $0x70] sm:$0xff] %v185
  %204 = vst [vmem:[%s3 + $0x78] sm:$0xff] %v187
  // Predicated region
  $region14: #{_seq2seq_core.7} parent=0 // pred_check
    _
  $region15: #{_seq2seq_core.7} parent=0 // pred_check_branch
    %206 = sbr.rel (0) target = $region17
  $region16: #{_seq2seq_core.7} parent=0 // pred_region
    _
  $region17: #{_seq2seq_core.7} parent=0 // pred_fallthru
    _
  // Predicated region
  $region18: #{_seq2seq_core.7} parent=0 // pred_check
    _
  $region19: #{_seq2seq_core.7} parent=0 // pred_check_branch
    %208 = sbr.rel (0) target = $region21
  $region20: #{_seq2seq_core.7} parent=0 // pred_region
    _
  $region21: #{_seq2seq_core.7} parent=0 // pred_fallthru
    _

// kernel: _seq2seq_core.8
$region0: #{_seq2seq_core.8}
  #allocation0 [shape = 'u32[]', space=smem, size = 0x4, offset = 0x4, fixed_abs, tag = 'smem constant byte address 0x4 - core index']
  #allocation1 [shape = 'u32[144,128]{1,0:T(1,128)}', space=vmem, size = 0x12000, scoped, tag = 'internal scratch']
  #allocation2 [shape = 'f32[8,32]{1,0:T(8,128)}', space=vmem, size = 0x1000, scoped, tag = 'scratch operand']
  #allocation3 [shape = 'f32[8,32]{1,0:T(8,128)}', space=vmem, size = 0x1000, scoped, tag = 'scratch operand']
  #allocation4 [shape = 'f32[8,32]{1,0:T(8,128)}', space=vmem, size = 0x1000, scoped, tag = 'scratch operand']
  #allocation5 [shape = 'f32[8,32]{1,0:T(8,128)}', space=vmem, size = 0x1000, scoped, tag = 'scratch operand']
  %s0 = inlined_call_operand.vmem [shape: f32[8,8,256], index: 0, kind: input, shape index: {}, may-alias: {0,1}]
  %s1 = inlined_call_operand.vmem [shape: f32[8,8,256], index: 1, kind: input, shape index: {}, may-alias: {0,1}]
  %s2 = inlined_call_operand.vmem [shape: f32[8,8,1], index: 2, kind: input, shape index: {}, may-alias: {2,3}]
  %s3 = inlined_call_operand.vmem [shape: f32[8,8,1], index: 3, kind: input, shape index: {}, may-alias: {2,3}]
  %s4 = inlined_call_operand.vmem [shape: bf16[32,128], index: 4, kind: input, shape index: {}]
  %s5 = inlined_call_operand.vmem [shape: bf16[32,128], index: 5, kind: input, shape index: {}]
  %s6 = inlined_call_operand.hbm [shape: f32[8,8,32], index: 6, kind: output, shape index: {0}]
  %s7 = inlined_call_operand.hbm [shape: f32[8,8,32], index: 7, kind: output, shape index: {1}]
  %s8 = inlined_call_operand.vmem [shape: f32[8,32], index: 8, kind: output, shape index: {2}]
  %s9 = inlined_call_operand.vmem [shape: f32[8,32], index: 9, kind: output, shape index: {3}]
  %10 = xla_tuple %s6, %s7, %s8, %s9
  %s11 = sld [smem:[#allocation0]]
  $region89: #{_seq2seq_core.8} parent=0
    _
  %s13 = ssub.s32 1, %s11
  %s14 = scalar_select 0, %s13, %s11
  $region1: #{_seq2seq_core.8} parent=0
    #allocation6 [shape = 'u8[8192]{0}', space=vmem, size = 0x2000, scoped, tag = 'output window, operand 0']
    #allocation7 [shape = 's32[2]{0}', space=sflag, size = 0x8, scoped, tag = 'scoped memory for _seq2seq_core.8']
    #allocation8 [shape = 'u8[8192]{0}', space=vmem, size = 0x2000, scoped, tag = 'output window, operand 1']
    #allocation9 [shape = 's32[2]{0}', space=sflag, size = 0x8, scoped, tag = 'scoped memory for _seq2seq_core.8']
    %15 = vsyncpa [#allocation7], 0
    %s16 = scalar_lea.sflag [#allocation7], 1
    %17 = vsyncpa %s16, 0
    %18 = vsyncpa [#allocation9], 0
    %s19 = scalar_lea.sflag [#allocation9], 1
    %20 = vsyncpa %s19, 0
    loop: start=0, step=1, limit=10
    $region2: #{_seq2seq_core.8} parent=1 // loop_pre_header
      _
    $region3: #{_seq2seq_core.8} parent=1 // loop_header
      %s22 = sphi 0, %s26
      %p23 = scmp.ge.s32.totalorder %s22, 10
      %s32 = sphi 0, %s34
      %s35 = sphi 0, %s32
      %s36 = sphi 0, %s35
      %s52 = sphi 0, %s36
      %s60 = sphi 0, %s62
      %s63 = sphi 0, %s60
      %s64 = sphi 0, %s63
      %s80 = sphi 0, %s64
      %s86 = sphi 0, %s88
      %s89 = sphi 0, %s86
      %s90 = sphi 0, %s89
      %s106 = sphi 0, %s90
      %s114 = sphi 0, %s116
      %s117 = sphi 0, %s114
      %s118 = sphi 0, %s117
      %s134 = sphi 0, %s118
      %s138 = sphi 0, %s138
      %s140 = sphi 0, %s138
      %s141 = sphi 0, %s140
      %s155 = sphi 0, %s141
      %s159 = sphi 0, %s159
      %s161 = sphi 0, %s159
      %s162 = sphi 0, %s161
      %s176 = sphi 0, %s162
      %s182 = sphi 0, %s184
      %s185 = sphi 0, %s182
      %s186 = sphi 0, %s185
      %s202 = sphi 0, %s186
      %s210 = sphi 0, %s212
      %s213 = sphi 0, %s210
      %s214 = sphi 0, %s213
      %s230 = sphi 0, %s214
      %s234 = sphi 0, %s234
      %s236 = sphi 0, %s234
      %s237 = sphi 0, %s236
      %s251 = sphi 0, %s237
      %s255 = sphi 0, %s255
      %s257 = sphi 0, %s255
      %s258 = sphi 0, %s257
      %s272 = sphi 0, %s258
    $region4: #{_seq2seq_core.8} parent=1 // loop_header_branch
      %25 = sbr.rel (%p23) target = $region8
    $region5: #{_seq2seq_core.8} parent=1 // loop_body
      %s27 = ssub.s32 %s22, 1
      %s28 = ssub.s32 %s22, 2
      %s29 = sadd.s32 %s22, 1
      %s30 = ssub.s32 %s22, %s29
      %p31 = scmp.eq.s32.totalorder %s30, 0
      %s33 = sadd.s32 %s32, 1
      %s34 = scalar_select %p31, %s32, %s33
      %p37 = pneg %p31
      %p38 = scmp.eq.s32.totalorder %s22, 7
      %p39 = por %p37, %p38
      %p40 = scmp.ne.s32.totalorder %s32, %s35
      %p41 = scmp.eq.s32.totalorder %s22, 0
      %p42 = por %p40, %p41
      %p43 = scmp.ne.s32.totalorder %s32, %s35
      %p44 = scmp.eq.s32.totalorder %s27, 7
      %p45 = por %p43, %p44
      %p46 = scmp.ne.s32.totalorder %s35, %s36
      %p47 = scmp.eq.s32.totalorder %s27, 0
      %p48 = por %p46, %p47
      %p49 = scmp.ne.s32.totalorder %s35, %s36
      %p50 = scmp.eq.s32.totalorder %s28, 7
      %p51 = por %p49, %p50
      %p53 = scmp.ne.s32.totalorder %s36, %s52
      %p54 = scmp.eq.s32.totalorder %s28, 0
      %p55 = por %p53, %p54
      %s56 = ssub.s32 7, %s22
      %s57 = ssub.s32 7, %s29
      %s58 = ssub.s32 %s56, %s57
      %p59 = scmp.eq.s32.totalorder %s58, 0
      %s61 = sadd.s32 %s60, 1
      %s62 = scalar_select %p59, %s60, %s61
      %p65 = pneg %p59
      %p66 = scmp.eq.s32.totalorder %s22, 7
      %p67 = por %p65, %p66
      %p68 = scmp.ne.s32.totalorder %s60, %s63
      %p69 = scmp.eq.s32.totalorder %s22, 0
      %p70 = por %p68, %p69
      %p71 = scmp.ne.s32.totalorder %s60, %s63
      %p72 = scmp.eq.s32.totalorder %s27, 7
      %p73 = por %p71, %p72
      %p74 = scmp.ne.s32.totalorder %s63, %s64
      %p75 = scmp.eq.s32.totalorder %s27, 0
      %p76 = por %p74, %p75
      %p77 = scmp.ne.s32.totalorder %s63, %s64
      %p78 = scmp.eq.s32.totalorder %s28, 7
      %p79 = por %p77, %p78
      %p81 = scmp.ne.s32.totalorder %s64, %s80
      %p82 = scmp.eq.s32.totalorder %s28, 0
      %p83 = por %p81, %p82
      %s84 = ssub.s32 %s22, %s29
      %p85 = scmp.eq.s32.totalorder %s84, 0
      %s87 = sadd.s32 %s86, 1
      %s88 = scalar_select %p85, %s86, %s87
      %p91 = pneg %p85
      %p92 = scmp.eq.s32.totalorder %s22, 7
      %p93 = por %p91, %p92
      %p94 = scmp.ne.s32.totalorder %s86, %s89
      %p95 = scmp.eq.s32.totalorder %s22, 0
      %p96 = por %p94, %p95
      %p97 = scmp.ne.s32.totalorder %s86, %s89
      %p98 = scmp.eq.s32.totalorder %s27, 7
      %p99 = por %p97, %p98
      %p100 = scmp.ne.s32.totalorder %s89, %s90
      %p101 = scmp.eq.s32.totalorder %s27, 0
      %p102 = por %p100, %p101
      %p103 = scmp.ne.s32.totalorder %s89, %s90
      %p104 = scmp.eq.s32.totalorder %s28, 7
      %p105 = por %p103, %p104
      %p107 = scmp.ne.s32.totalorder %s90, %s106
      %p108 = scmp.eq.s32.totalorder %s28, 0
      %p109 = por %p107, %p108
      %s110 = ssub.s32 7, %s22
      %s111 = ssub.s32 7, %s29
      %s112 = ssub.s32 %s110, %s111
      %p113 = scmp.eq.s32.totalorder %s112, 0
      %s115 = sadd.s32 %s114, 1
      %s116 = scalar_select %p113, %s114, %s115
      %p119 = pneg %p113
      %p120 = scmp.eq.s32.totalorder %s22, 7
      %p121 = por %p119, %p120
      %p122 = scmp.ne.s32.totalorder %s114, %s117
      %p123 = scmp.eq.s32.totalorder %s22, 0
      %p124 = por %p122, %p123
      %p125 = scmp.ne.s32.totalorder %s114, %s117
      %p126 = scmp.eq.s32.totalorder %s27, 7
      %p127 = por %p125, %p126
      %p128 = scmp.ne.s32.totalorder %s117, %s118
      %p129 = scmp.eq.s32.totalorder %s27, 0
      %p130 = por %p128, %p129
      %p131 = scmp.ne.s32.totalorder %s117, %s118
      %p132 = scmp.eq.s32.totalorder %s28, 7
      %p133 = por %p131, %p132
      %p135 = scmp.ne.s32.totalorder %s118, %s134
      %p136 = scmp.eq.s32.totalorder %s28, 0
      %p137 = por %p135, %p136
      %s139 = sadd.s32 %s138, 1
      %p142 = scmp.eq.s32.totalorder %s22, 7
      %p143 = scmp.ne.s32.totalorder %s138, %s140
      %p144 = scmp.eq.s32.totalorder %s22, 0
      %p145 = por %p143, %p144
      %p146 = scmp.ne.s32.totalorder %s138, %s140
      %p147 = scmp.eq.s32.totalorder %s27, 7
      %p148 = por %p146, %p147
      %p149 = scmp.ne.s32.totalorder %s140, %s141
      %p150 = scmp.eq.s32.totalorder %s27, 0
      %p151 = por %p149, %p150
      %p152 = scmp.ne.s32.totalorder %s140, %s141
      %p153 = scmp.eq.s32.totalorder %s28, 7
      %p154 = por %p152, %p153
      %p156 = scmp.ne.s32.totalorder %s141, %s155
      %p157 = scmp.eq.s32.totalorder %s28, 0
      %p158 = por %p156, %p157
      %s160 = sadd.s32 %s159, 1
      %p163 = scmp.eq.s32.totalorder %s22, 7
      %p164 = scmp.ne.s32.totalorder %s159, %s161
      %p165 = scmp.eq.s32.totalorder %s22, 0
      %p166 = por %p164, %p165
      %p167 = scmp.ne.s32.totalorder %s159, %s161
      %p168 = scmp.eq.s32.totalorder %s27, 7
      %p169 = por %p167, %p168
      %p170 = scmp.ne.s32.totalorder %s161, %s162
      %p171 = scmp.eq.s32.totalorder %s27, 0
      %p172 = por %p170, %p171
      %p173 = scmp.ne.s32.totalorder %s161, %s162
      %p174 = scmp.eq.s32.totalorder %s28, 7
      %p175 = por %p173, %p174
      %p177 = scmp.ne.s32.totalorder %s162, %s176
      %p178 = scmp.eq.s32.totalorder %s28, 0
      %p179 = por %p177, %p178
      %s180 = ssub.s32 %s22, %s29
      %p181 = scmp.eq.s32.totalorder %s180, 0
      %s183 = sadd.s32 %s182, 1
      %s184 = scalar_select %p181, %s182, %s183
      %p187 = pneg %p181
      %p188 = scmp.eq.s32.totalorder %s22, 7
      %p189 = por %p187, %p188
      %p190 = scmp.ne.s32.totalorder %s182, %s185
      %p191 = scmp.eq.s32.totalorder %s22, 0
      %p192 = por %p190, %p191
      %p193 = scmp.ne.s32.totalorder %s182, %s185
      %p194 = scmp.eq.s32.totalorder %s27, 7
      %p195 = por %p193, %p194
      %p196 = scmp.ne.s32.totalorder %s185, %s186
      %p197 = scmp.eq.s32.totalorder %s27, 0
      %p198 = por %p196, %p197
      %p199 = scmp.ne.s32.totalorder %s185, %s186
      %p200 = scmp.eq.s32.totalorder %s28, 7
      %p201 = por %p199, %p200
      %p203 = scmp.ne.s32.totalorder %s186, %s202
      %p204 = scmp.eq.s32.totalorder %s28, 0
      %p205 = por %p203, %p204
      %s206 = ssub.s32 7, %s22
      %s207 = ssub.s32 7, %s29
      %s208 = ssub.s32 %s206, %s207
      %p209 = scmp.eq.s32.totalorder %s208, 0
      %s211 = sadd.s32 %s210, 1
      %s212 = scalar_select %p209, %s210, %s211
      %p215 = pneg %p209
      %p216 = scmp.eq.s32.totalorder %s22, 7
      %p217 = por %p215, %p216
      %p218 = scmp.ne.s32.totalorder %s210, %s213
      %p219 = scmp.eq.s32.totalorder %s22, 0
      %p220 = por %p218, %p219
      %p221 = scmp.ne.s32.totalorder %s210, %s213
      %p222 = scmp.eq.s32.totalorder %s27, 7
      %p223 = por %p221, %p222
      %p224 = scmp.ne.s32.totalorder %s213, %s214
      %p225 = scmp.eq.s32.totalorder %s27, 0
      %p226 = por %p224, %p225
      %p227 = scmp.ne.s32.totalorder %s213, %s214
      %p228 = scmp.eq.s32.totalorder %s28, 7
      %p229 = por %p227, %p228
      %p231 = scmp.ne.s32.totalorder %s214, %s230
      %p232 = scmp.eq.s32.totalorder %s28, 0
      %p233 = por %p231, %p232
      %s235 = sadd.s32 %s234, 1
      %p238 = scmp.eq.s32.totalorder %s22, 7
      %p239 = scmp.ne.s32.totalorder %s234, %s236
      %p240 = scmp.eq.s32.totalorder %s22, 0
      %p241 = por %p239, %p240
      %p242 = scmp.ne.s32.totalorder %s234, %s236
      %p243 = scmp.eq.s32.totalorder %s27, 7
      %p244 = por %p242, %p243
      %p245 = scmp.ne.s32.totalorder %s236, %s237
      %p246 = scmp.eq.s32.totalorder %s27, 0
      %p247 = por %p245, %p246
      %p248 = scmp.ne.s32.totalorder %s236, %s237
      %p249 = scmp.eq.s32.totalorder %s28, 7
      %p250 = por %p248, %p249
      %p252 = scmp.ne.s32.totalorder %s237, %s251
      %p253 = scmp.eq.s32.totalorder %s28, 0
      %p254 = por %p252, %p253
      %s256 = sadd.s32 %s255, 1
      %p259 = scmp.eq.s32.totalorder %s22, 7
      %p260 = scmp.ne.s32.totalorder %s255, %s257
      %p261 = scmp.eq.s32.totalorder %s22, 0
      %p262 = por %p260, %p261
      %p263 = scmp.ne.s32.totalorder %s255, %s257
      %p264 = scmp.eq.s32.totalorder %s27, 7
      %p265 = por %p263, %p264
      %p266 = scmp.ne.s32.totalorder %s257, %s258
      %p267 = scmp.eq.s32.totalorder %s27, 0
      %p268 = por %p266, %p267
      %p269 = scmp.ne.s32.totalorder %s257, %s258
      %p270 = scmp.eq.s32.totalorder %s28, 7
      %p271 = por %p269, %p270
      %p273 = scmp.ne.s32.totalorder %s258, %s272
      %p274 = scmp.eq.s32.totalorder %s28, 0
      %p275 = por %p273, %p274
      %p276 = scmp.le.s32.totalorder 1, %s22
      %p277 = scmp.lt.s32.totalorder %s22, 9
      %p278 = pnand %p276, %p277
      %p279 = pneg %p278
      // Predicated region
      $region9: #{_seq2seq_core.8} parent=5 // pred_check
        _
      $region10: #{_seq2seq_core.8} parent=5 // pred_check_branch
        %281 = sbr.rel (%p278) target = $region12
      $region11: #{_seq2seq_core.8} parent=5 // pred_region
        %s282 = ssub.s32 %s22, 1
        // Predicated region
        $region13: #{_seq2seq_core.8} parent=11 // pred_check
          %p283 = pneg %p151
        $region14: #{_seq2seq_core.8} parent=11 // pred_check_branch
          %285 = sbr.rel (%p283) target = $region16
        $region15: #{_seq2seq_core.8} parent=11 // pred_region
          _
        $region16: #{_seq2seq_core.8} parent=11 // pred_fallthru
          _
        // Predicated region
        $region17: #{_seq2seq_core.8} parent=11 // pred_check
          %p286 = pneg %p172
        $region18: #{_seq2seq_core.8} parent=11 // pred_check_branch
          %288 = sbr.rel (%p286) target = $region20
        $region19: #{_seq2seq_core.8} parent=11 // pred_region
          _
        $region20: #{_seq2seq_core.8} parent=11 // pred_fallthru
          _
      $region12: #{_seq2seq_core.8} parent=5 // pred_fallthru
        _
      %p289 = scmp.lt.s32.totalorder %s22, 8
      // Predicated region
      $region21: #{_seq2seq_core.8} parent=5 // pred_check
        %p290 = pneg %p289
      $region22: #{_seq2seq_core.8} parent=5 // pred_check_branch
        %292 = sbr.rel (%p290) target = $region24
      $region23: #{_seq2seq_core.8} parent=5 // pred_region
        // Predicated region
        $region25: #{_seq2seq_core.8} parent=23 // pred_check
          %p293 = pneg %p42
        $region26: #{_seq2seq_core.8} parent=23 // pred_check_branch
          %295 = sbr.rel (%p293) target = $region28
        $region27: #{_seq2seq_core.8} parent=23 // pred_region
          %p296 = scmp.lt.s32.totalorder %s22, 7
          %s297 = scalar_select %p296, %s22, 7
          %s298 = smul.addr %s297, 2
          %s299 = smul.addr %s298, 8
          %s300 = scalar_lea.vmem %s0, %s299
        $region28: #{_seq2seq_core.8} parent=23 // pred_fallthru
          _
        // Predicated region
        $region29: #{_seq2seq_core.8} parent=23 // pred_check
          %p301 = pneg %p70
        $region30: #{_seq2seq_core.8} parent=23 // pred_check_branch
          %303 = sbr.rel (%p301) target = $region32
        $region31: #{_seq2seq_core.8} parent=23 // pred_region
          %s304 = ssub.s32 7, %s22
          %p305 = scmp.lt.s32.totalorder %s304, 7
          %s306 = scalar_select %p305, %s304, 7
          %s307 = smul.addr %s306, 2
          %s308 = sadd.s32 1, %s307
          %s309 = smul.addr %s308, 8
          %s310 = scalar_lea.vmem %s1, %s309
          %s311 = ssub.s32 7, %s22
        $region32: #{_seq2seq_core.8} parent=23 // pred_fallthru
          _
        // Predicated region
        $region33: #{_seq2seq_core.8} parent=23 // pred_check
          %p312 = pneg %p96
        $region34: #{_seq2seq_core.8} parent=23 // pred_check_branch
          %314 = sbr.rel (%p312) target = $region36
        $region35: #{_seq2seq_core.8} parent=23 // pred_region
          %p315 = scmp.lt.s32.totalorder %s22, 7
          %s316 = scalar_select %p315, %s22, 7
          %s317 = smul.addr %s316, 8
          %s318 = scalar_lea.vmem %s2, %s317
        $region36: #{_seq2seq_core.8} parent=23 // pred_fallthru
          _
        // Predicated region
        $region37: #{_seq2seq_core.8} parent=23 // pred_check
          %p319 = pneg %p124
        $region38: #{_seq2seq_core.8} parent=23 // pred_check_branch
          %321 = sbr.rel (%p319) target = $region40
        $region39: #{_seq2seq_core.8} parent=23 // pred_region
          %s322 = ssub.s32 7, %s22
          %p323 = scmp.lt.s32.totalorder %s322, 7
          %s324 = scalar_select %p323, %s322, 7
          %s325 = smul.addr %s324, 8
          %s326 = scalar_lea.vmem %s3, %s325
          %s327 = ssub.s32 7, %s22
        $region40: #{_seq2seq_core.8} parent=23 // pred_fallthru
          _
      $region24: #{_seq2seq_core.8} parent=5 // pred_fallthru
        _
      %p328 = scmp.le.s32.totalorder 1, %s22
      %p329 = scmp.lt.s32.totalorder %s22, 9
      %p330 = pnand %p328, %p329
      %p331 = pneg %p330
      // Predicated region
      $region41: #{_seq2seq_core.8} parent=5 // pred_check
        _
      $region42: #{_seq2seq_core.8} parent=5 // pred_check_branch
        %333 = sbr.rel (%p330) target = $region44
      $region43: #{_seq2seq_core.8} parent=5 // pred_region
        %s334 = ssub.s32 %s22, 1
        %p335 = scmp.lt.s32.totalorder %s27, 7
        %s336 = scalar_select %p335, %s27, 7
        %s337 = smul.addr %s336, 2
        %s338 = smul.addr %s337, 8
        %s339 = scalar_lea.vmem %s0, %s338
        %p340 = pneg %p48
        %p341 = pneg %p45
        %s342 = ssub.s32 7, %s27
        %p343 = scmp.lt.s32.totalorder %s342, 7
        %s344 = scalar_select %p343, %s342, 7
        %s345 = smul.addr %s344, 2
        %s346 = sadd.s32 1, %s345
        %s347 = smul.addr %s346, 8
        %s348 = scalar_lea.vmem %s1, %s347
        %p349 = pneg %p76
        %p350 = pneg %p73
        %p351 = scmp.lt.s32.totalorder %s27, 7
        %s352 = scalar_select %p351, %s27, 7
        %s353 = smul.addr %s352, 8
        %s354 = scalar_lea.vmem %s2, %s353
        %p355 = pneg %p102
        %p356 = pneg %p99
        %s357 = ssub.s32 7, %s27
        %p358 = scmp.lt.s32.totalorder %s357, 7
        %s359 = scalar_select %p358, %s357, 7
        %s360 = smul.addr %s359, 8
        %s361 = scalar_lea.vmem %s3, %s360
        %p362 = pneg %p130
        %p363 = pneg %p127
        %p364 = pneg %p151
        %p365 = pneg %p148
        %p366 = pneg %p172
        %p367 = pneg %p169
        %p368 = pneg %p198
        %p369 = pneg %p195
        %s370 = sand.u32 %s185, 1
        %s371 = scalar_lea.sflag [#allocation7], %s370
        %s372 = sand.u32 %s185, 1
        %s373 = smul.addr %s372, 8
        %s374 = scalar_lea.vmem [#allocation6], %s373
        %p375 = pneg %p226
        %p376 = pneg %p223
        %s377 = sand.u32 %s213, 1
        %s378 = scalar_lea.sflag [#allocation9], %s377
        %s379 = sand.u32 %s213, 1
        %s380 = smul.addr %s379, 8
        %s381 = scalar_lea.vmem [#allocation8], %s380
        %p382 = pneg %p247
        %p383 = pneg %p244
        %p384 = pneg %p268
        %p385 = pneg %p265
        %p386 = scmp.lt.s32.totalorder %s27, 7
        %s387 = scalar_select %p386, %s27, 7
        %s388 = smul.addr %s387, 2
        %s389 = smul.addr %s388, 8
        %s390 = scalar_lea.vmem %s0, %s389
        %s391 = ssub.s32 7, %s27
        %p392 = scmp.lt.s32.totalorder %s391, 7
        %s393 = scalar_select %p392, %s391, 7
        %s394 = smul.addr %s393, 2
        %s395 = sadd.s32 1, %s394
        %s396 = smul.addr %s395, 8
        %s397 = scalar_lea.vmem %s1, %s396
        %s398 = ssub.s32 7, %s27
        %p399 = scmp.lt.s32.totalorder %s27, 7
        %s400 = scalar_select %p399, %s27, 7
        %s401 = smul.addr %s400, 8
        %s402 = scalar_lea.vmem %s2, %s401
        %s403 = ssub.s32 7, %s27
        %p404 = scmp.lt.s32.totalorder %s403, 7
        %s405 = scalar_select %p404, %s403, 7
        %s406 = smul.addr %s405, 8
        %s407 = scalar_lea.vmem %s3, %s406
        %s408 = ssub.s32 7, %s27
        %s409 = ssub.s32 7, %s27
        %p411 = scmp.eq.s32.totalorder %s27, 0
        // Predicated region
        $region45: #{_seq2seq_core.8} parent=43 // pred_check
          %p412 = pneg %p411
        $region46: #{_seq2seq_core.8} parent=43 // pred_check_branch
          %414 = sbr.rel (%p412) target = $region48
        $region47: #{_seq2seq_core.8} parent=43 // pred_region
          %vm415 = vcmask 261120
          %416 = vst.msk [vmem:[#allocation2] sm:$0xff] %vm415, 0.0
          %417 = vst.msk [vmem:[#allocation3] sm:$0xff] %vm415, 0.0
          %418 = vst.msk [vmem:[#allocation4] sm:$0xff] %vm415, 0.0
          %419 = vst.msk [vmem:[#allocation5] sm:$0xff] %vm415, 0.0
        $region48: #{_seq2seq_core.8} parent=43 // pred_fallthru
          _
        %v420 = vld [vmem:[%s402] sm:$0xff]
        %v421 = vld [vmem:[%s407] sm:$0xff]
        %v422 = vld [vmem:[%s390] sm:$0xff]
        %v423 = vld [vmem:[#allocation2] sm:$0xff]
        %v424 = vld [vmem:[#allocation3] sm:$0xff]
        %v425 = vpack.c.bf16 %v423, %v423
        %v426 = vld [vmem:[%s4] sm:$0xf]
        %v427 = vld [vmem:[%s4 + $0x4] sm:$0xf]
        %v428 = vld [vmem:[%s4 + $0x8] sm:$0xf]
        %v429 = vld [vmem:[%s4 + $0xc] sm:$0xf]
        %v434 = vunpack.c.l.b16 %v426
        %v435 = vunpack.c.l.b16 %v427
        %v436 = vunpack.c.l.b16 %v428
        %v437 = vunpack.c.l.b16 %v429
        %v438 = vpack.c.b16 %v435, %v434
        %v439 = vpack.c.b16 %v437, %v436
        %vm442 = vcmask 261120
        %v444 = vsel %vm442, %v425, 0
        %446 = vmatprep.subr.bf16.mxu0 0
        %447 = vmatpush1.bf16.msra.mxu0 0
        %448 = vmatprep.subr.bf16.mxu0 0
        %449 = vmatpush1.bf16.msra.mxu0 0
        %450 = vmatprep.subr.bf16.mxu0 0
        %451 = vmatpush1.bf16.msra.mxu0 0
        %452 = vmatprep.subr.bf16.mxu0 0
        %453 = vmatpush1.bf16.msra.mxu0 0
        %454 = vmatprep.subr.bf16.mxu0 0
        %455 = vmatpush1.bf16.msra.mxu0 0
        %456 = vmatprep.subr.bf16.mxu0 0
        %457 = vmatpush1.bf16.msra.mxu0 0
        %458 = vmatprep.subr.bf16.mxu0 0
        %459 = vmatpush1.bf16.msra.mxu0 %v439
        %460 = vmatprep.subr.bf16.mxu0 0
        %461 = vmatpush1.bf16.msra.mxu0 %v438
        %462 = vmatprep.subr.bf16.mxu0 0
        %463 = vmatpush2.bf16.msra.mxu0 0
        %464 = vmatprep.subr.bf16.mxu0 0
        %465 = vmatpush2.bf16.msra.mxu0 0
        %466 = vmatprep.subr.bf16.mxu0 0
        %467 = vmatpush2.bf16.msra.mxu0 0
        %468 = vmatprep.subr.bf16.mxu0 0
        %469 = vmatpush2.bf16.msra.mxu0 0
        %470 = vmatprep.subr.bf16.mxu0 0
        %471 = vmatpush2.bf16.msra.mxu0 0
        %472 = vmatprep.subr.bf16.mxu0 0
        %473 = vmatpush2.bf16.msra.mxu0 0
        %474 = vmatprep.subr.bf16.mxu0 0
        %475 = vmatpush2.bf16.msra.mxu0 0
        %476 = vmatprep.subr.bf16.mxu0 0
        %477 = vmatpush2.bf16.msra.mxu0 0
        %478 = vmatprep.mubr.bf16.mxu0 0
        %479 = vmatmul.mubr.bf16.gmra.mxu0 %v444
        %v480 = vpop.f32.mrf.mxu0
        %v481 = vadd.f32 0.0, %v480
        %v482 = vpop.f32.mrf.mxu0
        %v483 = vpop.f32.mrf.mxu0
        %v484 = vpop.f32.mrf.mxu0
        %485 = vdwg.mxu0
        %v486 = vadd.f32 %v422, %v481
        %v487 = vlaneseq
        %v488 = vand.u32 %v487, 127
        %vm489 = vcmp.ge.s32.totalorder %v488, 64
        %vm490 = vcmp.lt.s32.totalorder %v488, 96
        %vm491 = vmand %vm489, %vm490
        %v492 = vtanh.pop %v486
        %v493 = vxor.u32 %v486, 2147483648
        %v494 = vmul.f32 %v493, 1.442695
        %v495 = vpow.pop %v494
        %v496 = vadd.f32 %v495, 1.0
        %v497 = vrcp.pop %v496
        %v498 = vmul.f32 1.0, %v497
        %v499 = vsel %vm491, %v492, %v498
        %501 = vrot.lane.b32.xlu0 %v424, 32
        %v502 = vpop.permute.xlu0 %501
        %v504 = vmul.f32 %v499, %v502
        %506 = vrot.lane.b32.xlu0 %v499, 64
        %v507 = vpop.permute.xlu0 %506
        %v509 = vmul.f32 %v499, %v507
        %511 = vrot.lane.b32.xlu0 %v509, 32
        %v512 = vpop.permute.xlu0 %511
        %v514 = vadd.f32 %v504, %v512
        %v515 = vtanh.pop %v514
        %517 = vrot.lane.b32.xlu0 %v515, 64
        %v518 = vpop.permute.xlu0 %517
        %v520 = vmul.f32 %v499, %v518
        %522 = vset.pattern.permute.xlu0 0
        %523 = vperm.xlu0 %522, %v420
        %v524 = vpop.permute.xlu0 %523
        %v526 = vmul.f32 %v524, %v520
        %v527 = vsub.f32 1.0, %v420
        %529 = vset.pattern.permute.xlu0 0
        %530 = vperm.xlu0 %529, %v527
        %v531 = vpop.permute.xlu0 %530
        %v533 = vmul.f32 %v531, %v423
        %535 = vrot.lane.b32.xlu0 %v533, 96
        %v536 = vpop.permute.xlu0 %535
        %v538 = vadd.f32 %v526, %v536
        %v539 = vmul.f32 %v524, %v514
        %v540 = vmul.f32 %v531, %v424
        %542 = vrot.lane.b32.xlu0 %v540, 32
        %v543 = vpop.permute.xlu0 %542
        %v545 = vadd.f32 %v539, %v543
        %v546 = vld [vmem:[%s397] sm:$0xff]
        %v547 = vld [vmem:[#allocation4] sm:$0xff]
        %v548 = vld [vmem:[#allocation5] sm:$0xff]
        %v549 = vpack.c.bf16 %v547, %v547
        %v550 = vld [vmem:[%s5] sm:$0xf]
        %v551 = vld [vmem:[%s5 + $0x4] sm:$0xf]
        %v552 = vld [vmem:[%s5 + $0x8] sm:$0xf]
        %v553 = vld [vmem:[%s5 + $0xc] sm:$0xf]
        %v558 = vunpack.c.l.b16 %v550
        %v559 = vunpack.c.l.b16 %v551
        %v560 = vunpack.c.l.b16 %v552
        %v561 = vunpack.c.l.b16 %v553
        %v562 = vpack.c.b16 %v559, %v558
        %v563 = vpack.c.b16 %v561, %v560
        %v567 = vsel %vm442, %v549, 0
        %569 = vmatprep.subr.bf16.mxu0 0
        %570 = vmatpush1.bf16.msra.mxu0 0
        %571 = vmatprep.subr.bf16.mxu0 0
        %572 = vmatpush1.bf16.msra.mxu0 0
        %573 = vmatprep.subr.bf16.mxu0 0
        %574 = vmatpush1.bf16.msra.mxu0 0
        %575 = vmatprep.subr.bf16.mxu0 0
        %576 = vmatpush1.bf16.msra.mxu0 0
        %577 = vmatprep.subr.bf16.mxu0 0
        %578 = vmatpush1.bf16.msra.mxu0 0
        %579 = vmatprep.subr.bf16.mxu0 0
        %580 = vmatpush1.bf16.msra.mxu0 0
        %581 = vmatprep.subr.bf16.mxu0 0
        %582 = vmatpush1.bf16.msra.mxu0 %v563
        %583 = vmatprep.subr.bf16.mxu0 0
        %584 = vmatpush1.bf16.msra.mxu0 %v562
        %585 = vmatprep.subr.bf16.mxu0 0
        %586 = vmatpush2.bf16.msra.mxu0 0
        %587 = vmatprep.subr.bf16.mxu0 0
        %588 = vmatpush2.bf16.msra.mxu0 0
        %589 = vmatprep.subr.bf16.mxu0 0
        %590 = vmatpush2.bf16.msra.mxu0 0
        %591 = vmatprep.subr.bf16.mxu0 0
        %592 = vmatpush2.bf16.msra.mxu0 0
        %593 = vmatprep.subr.bf16.mxu0 0
        %594 = vmatpush2.bf16.msra.mxu0 0
        %595 = vmatprep.subr.bf16.mxu0 0
        %596 = vmatpush2.bf16.msra.mxu0 0
        %597 = vmatprep.subr.bf16.mxu0 0
        %598 = vmatpush2.bf16.msra.mxu0 0
        %599 = vmatprep.subr.bf16.mxu0 0
        %600 = vmatpush2.bf16.msra.mxu0 0
        %601 = vmatprep.mubr.bf16.mxu0 0
        %602 = vmatmul.mubr.bf16.gmra.mxu0 %v567
        %v603 = vpop.f32.mrf.mxu0
        %v604 = vadd.f32 0.0, %v603
        %v605 = vpop.f32.mrf.mxu0
        %v606 = vpop.f32.mrf.mxu0
        %v607 = vpop.f32.mrf.mxu0
        %608 = vdwg.mxu0
        %v609 = vadd.f32 %v546, %v604
        %v610 = vtanh.pop %v609
        %v611 = vxor.u32 %v609, 2147483648
        %v612 = vmul.f32 %v611, 1.442695
        %v613 = vpow.pop %v612
        %v614 = vadd.f32 %v613, 1.0
        %v615 = vrcp.pop %v614
        %v616 = vmul.f32 1.0, %v615
        %v617 = vsel %vm491, %v610, %v616
        %619 = vrot.lane.b32.xlu0 %v548, 32
        %v620 = vpop.permute.xlu0 %619
        %v622 = vmul.f32 %v617, %v620
        %624 = vrot.lane.b32.xlu0 %v617, 64
        %v625 = vpop.permute.xlu0 %624
        %v627 = vmul.f32 %v617, %v625
        %629 = vrot.lane.b32.xlu0 %v627, 32
        %v630 = vpop.permute.xlu0 %629
        %v632 = vadd.f32 %v622, %v630
        %v633 = vtanh.pop %v632
        %635 = vrot.lane.b32.xlu0 %v633, 64
        %v636 = vpop.permute.xlu0 %635
        %v638 = vmul.f32 %v617, %v636
        %640 = vset.pattern.permute.xlu0 0
        %641 = vperm.xlu0 %640, %v421
        %v642 = vpop.permute.xlu0 %641
        %v644 = vmul.f32 %v642, %v638
        %v645 = vsub.f32 1.0, %v421
        %647 = vset.pattern.permute.xlu0 0
        %648 = vperm.xlu0 %647, %v645
        %v649 = vpop.permute.xlu0 %648
        %v651 = vmul.f32 %v649, %v547
        %653 = vrot.lane.b32.xlu0 %v651, 96
        %v654 = vpop.permute.xlu0 %653
        %v656 = vadd.f32 %v644, %v654
        %v657 = vmul.f32 %v642, %v632
        %v658 = vmul.f32 %v649, %v548
        %660 = vrot.lane.b32.xlu0 %v658, 32
        %v661 = vpop.permute.xlu0 %660
        %v663 = vadd.f32 %v657, %v661
        %665 = vrot.lane.b32.xlu0 %v538, 32
        %v666 = vpop.permute.xlu0 %665
        %668 = vst.msk [vmem:[#allocation2] sm:$0xff] %vm442, %v666
        %670 = vrot.lane.b32.xlu0 %v545, 96
        %v671 = vpop.permute.xlu0 %670
        %673 = vst.msk [vmem:[#allocation3] sm:$0xff] %vm442, %v671
        %675 = vrot.lane.b32.xlu0 %v656, 32
        %v676 = vpop.permute.xlu0 %675
        %678 = vst.msk [vmem:[#allocation4] sm:$0xff] %vm442, %v676
        %680 = vrot.lane.b32.xlu0 %v663, 96
        %v681 = vpop.permute.xlu0 %680
        %683 = vst.msk [vmem:[#allocation5] sm:$0xff] %vm442, %v681
        %v684 = vmul.f32 %v538, %v524
        %686 = vrot.lane.b32.xlu0 %v684, 32
        %v687 = vpop.permute.xlu0 %686
        %689 = vst.msk [vmem:[%s374] sm:$0xff] %vm442, %v687
        %v690 = vmul.f32 %v656, %v642
        %692 = vrot.lane.b32.xlu0 %v690, 32
        %v693 = vpop.permute.xlu0 %692
        %695 = vst.msk [vmem:[%s381] sm:$0xff] %vm442, %v693
        %p696 = scmp.eq.s32.totalorder %s27, 7
        // Predicated region
        $region49: #{_seq2seq_core.8} parent=43 // pred_check
          %p697 = pneg %p696
        $region50: #{_seq2seq_core.8} parent=43 // pred_check_branch
          %699 = sbr.rel (%p697) target = $region52
        $region51: #{_seq2seq_core.8} parent=43 // pred_region
          %v700 = vadd.f32 %v538, %v656
          %702 = vrot.lane.b32.xlu0 %v700, 32
          %v703 = vpop.permute.xlu0 %702
          %705 = vst.msk [vmem:[%s8] sm:$0xff] %vm442, %v703
          %v706 = vadd.f32 %v545, %v663
          %708 = vrot.lane.b32.xlu0 %v706, 96
          %v709 = vpop.permute.xlu0 %708
          %711 = vst.msk [vmem:[%s9] sm:$0xff] %vm442, %v709
        $region52: #{_seq2seq_core.8} parent=43 // pred_fallthru
          _
        %s712 = sand.u32 %s185, 1
        %s713 = scalar_lea.sflag [#allocation7], %s712
        %s714 = sand.u32 %s185, 1
        %s715 = smul.addr %s714, 8
        %s716 = scalar_lea.vmem [#allocation6], %s715
        %s717 = sand.u32 %s213, 1
        %s718 = scalar_lea.sflag [#allocation9], %s717
        %s719 = sand.u32 %s213, 1
        %s720 = smul.addr %s719, 8
        %s721 = scalar_lea.vmem [#allocation8], %s720
        // Predicated region
        $region53: #{_seq2seq_core.8} parent=43 // pred_check
          %p722 = pneg %p195
        $region54: #{_seq2seq_core.8} parent=43 // pred_check_branch
          %724 = sbr.rel (%p722) target = $region56
        $region55: #{_seq2seq_core.8} parent=43 // pred_region
          %s726 = ssub.s32 128, 128
          %727 = vsyncadd %s713, %s726
          %s728 = smul.addr %s27, 128
          %s729 = scalar_lea.hbm %s6, %s728
          %s731 = sshll.u32 %s716, 4
          %s732 = int_to_ptr.vmem [resolvable:$true] %s731
          %734 = dma.vmem_to_hbm [thread:$0]  %s732, 128, %s729, %s713
        $region56: #{_seq2seq_core.8} parent=43 // pred_fallthru
          _
        // Predicated region
        $region57: #{_seq2seq_core.8} parent=43 // pred_check
          %p735 = pneg %p223
        $region58: #{_seq2seq_core.8} parent=43 // pred_check_branch
          %737 = sbr.rel (%p735) target = $region60
        $region59: #{_seq2seq_core.8} parent=43 // pred_region
          %s738 = ssub.s32 7, %s27
          %s740 = ssub.s32 128, 128
          %741 = vsyncadd %s718, %s740
          %s742 = smul.addr %s738, 128
          %s743 = scalar_lea.hbm %s7, %s742
          %s745 = sshll.u32 %s721, 4
          %s746 = int_to_ptr.vmem [resolvable:$true] %s745
          %748 = dma.vmem_to_hbm [thread:$0]  %s746, 128, %s743, %s718
        $region60: #{_seq2seq_core.8} parent=43 // pred_fallthru
          _
        // Predicated region
        $region61: #{_seq2seq_core.8} parent=43 // pred_check
          %p749 = pneg %p244
        $region62: #{_seq2seq_core.8} parent=43 // pred_check_branch
          %751 = sbr.rel (%p749) target = $region64
        $region63: #{_seq2seq_core.8} parent=43 // pred_region
          _
        $region64: #{_seq2seq_core.8} parent=43 // pred_fallthru
          _
        // Predicated region
        $region65: #{_seq2seq_core.8} parent=43 // pred_check
          %p752 = pneg %p265
        $region66: #{_seq2seq_core.8} parent=43 // pred_check_branch
          %754 = sbr.rel (%p752) target = $region68
        $region67: #{_seq2seq_core.8} parent=43 // pred_region
          _
        $region68: #{_seq2seq_core.8} parent=43 // pred_fallthru
          _
        // Predicated region
        $region69: #{_seq2seq_core.8} parent=43 // pred_check
          %p755 = pneg %p244
        $region70: #{_seq2seq_core.8} parent=43 // pred_check_branch
          %757 = sbr.rel (%p755) target = $region72
        $region71: #{_seq2seq_core.8} parent=43 // pred_region
          _
        $region72: #{_seq2seq_core.8} parent=43 // pred_fallthru
          _
        // Predicated region
        $region73: #{_seq2seq_core.8} parent=43 // pred_check
          %p758 = pneg %p265
        $region74: #{_seq2seq_core.8} parent=43 // pred_check_branch
          %760 = sbr.rel (%p758) target = $region76
        $region75: #{_seq2seq_core.8} parent=43 // pred_region
          _
        $region76: #{_seq2seq_core.8} parent=43 // pred_fallthru
          _
      $region44: #{_seq2seq_core.8} parent=5 // pred_fallthru
        _
      %p761 = scmp.le.s32.totalorder 2, %s22
      // Predicated region
      $region77: #{_seq2seq_core.8} parent=5 // pred_check
        %p762 = pneg %p761
      $region78: #{_seq2seq_core.8} parent=5 // pred_check_branch
        %764 = sbr.rel (%p762) target = $region80
      $region79: #{_seq2seq_core.8} parent=5 // pred_region
        %s765 = ssub.s32 %s22, 2
        // Predicated region
        $region81: #{_seq2seq_core.8} parent=79 // pred_check
          %p766 = pneg %p201
        $region82: #{_seq2seq_core.8} parent=79 // pred_check_branch
          %768 = sbr.rel (%p766) target = $region84
        $region83: #{_seq2seq_core.8} parent=79 // pred_region
          %s769 = sand.u32 %s186, 1
          %s770 = scalar_lea.sflag [#allocation7], %s769
          %s771 = sand.u32 %s186, 1
          %s772 = smul.addr %s771, 8
          %s773 = scalar_lea.vmem [#allocation6], %s772
          %774 = dma.done %s770, 128
        $region84: #{_seq2seq_core.8} parent=79 // pred_fallthru
          _
        // Predicated region
        $region85: #{_seq2seq_core.8} parent=79 // pred_check
          %p775 = pneg %p229
        $region86: #{_seq2seq_core.8} parent=79 // pred_check_branch
          %777 = sbr.rel (%p775) target = $region88
        $region87: #{_seq2seq_core.8} parent=79 // pred_region
          %s778 = sand.u32 %s214, 1
          %s779 = scalar_lea.sflag [#allocation9], %s778
          %s780 = sand.u32 %s214, 1
          %s781 = smul.addr %s780, 8
          %s782 = scalar_lea.vmem [#allocation8], %s781
          %783 = dma.done %s779, 128
        $region88: #{_seq2seq_core.8} parent=79 // pred_fallthru
          _
      $region80: #{_seq2seq_core.8} parent=5 // pred_fallthru
        _
    $region6: #{_seq2seq_core.8} parent=1 // loop_footer
      %s26 = sadd.s32 1, %s22
    $region7: #{_seq2seq_core.8} parent=1 // loop_footer_branch
      %21 = sbr.rel target = $region3
    $region8: #{_seq2seq_core.8} parent=1 // loop_exit
      _
    %784 = vsyncpa [#allocation7], 1
    %s785 = scalar_lea.sflag [#allocation7], 1
    %786 = vsyncpa %s785, 1
    %787 = vsyncpa [#allocation9], 1
    %s788 = scalar_lea.sflag [#allocation9], 1
    %789 = vsyncpa %s788, 1

// kernel: _seq2seq_core.6
$region0: #{_seq2seq_core.6}
  #allocation0 [shape = 'u32[]', space=smem, size = 0x4, offset = 0x4, fixed_abs, tag = 'smem constant byte address 0x4 - core index']
  #allocation1 [shape = 'u32[144,128]{1,0:T(1,128)}', space=vmem, size = 0x12000, scoped, tag = 'internal scratch']
  #allocation2 [shape = 'f32[8,32]{1,0:T(8,128)}', space=vmem, size = 0x1000, scoped, tag = 'scratch operand']
  #allocation3 [shape = 'f32[8,32]{1,0:T(8,128)}', space=vmem, size = 0x1000, scoped, tag = 'scratch operand']
  #allocation4 [shape = 'f32[8,32]{1,0:T(8,128)}', space=vmem, size = 0x1000, scoped, tag = 'scratch operand']
  #allocation5 [shape = 'f32[8,32]{1,0:T(8,128)}', space=vmem, size = 0x1000, scoped, tag = 'scratch operand']
  %s0 = inlined_call_operand.vmem [shape: f32[8,8,256], index: 0, kind: input, shape index: {}, may-alias: {0,1}]
  %s1 = inlined_call_operand.vmem [shape: f32[8,8,256], index: 1, kind: input, shape index: {}, may-alias: {0,1}]
  %s2 = inlined_call_operand.vmem [shape: f32[8,8,1], index: 2, kind: input, shape index: {}, may-alias: {2,3}]
  %s3 = inlined_call_operand.vmem [shape: f32[8,8,1], index: 3, kind: input, shape index: {}, may-alias: {2,3}]
  %s4 = inlined_call_operand.vmem [shape: bf16[32,128], index: 4, kind: input, shape index: {}]
  %s5 = inlined_call_operand.vmem [shape: bf16[32,128], index: 5, kind: input, shape index: {}]
  %s6 = inlined_call_operand.vmem [shape: f32[8,8,32], index: 6, kind: output, shape index: {0}]
  %s7 = inlined_call_operand.vmem [shape: f32[8,8,32], index: 7, kind: output, shape index: {1}]
  %s8 = inlined_call_operand.vmem [shape: f32[8,32], index: 8, kind: output, shape index: {2}]
  %s9 = inlined_call_operand.vmem [shape: f32[8,32], index: 9, kind: output, shape index: {3}]
  %10 = xla_tuple %s6, %s7, %s8, %s9
  %s11 = sld [smem:[#allocation0]]
  $region89: #{_seq2seq_core.6} parent=0
    _
  %s13 = ssub.s32 1, %s11
  %s14 = scalar_select 0, %s13, %s11
  loop: start=0, step=1, limit=10
  $region2: #{_seq2seq_core.6} parent=0 // loop_pre_header
    _
  $region3: #{_seq2seq_core.6} parent=0 // loop_header
    %s16 = sphi 0, %s20
    %p17 = scmp.ge.s32.totalorder %s16, 10
    %s26 = sphi 0, %s28
    %s29 = sphi 0, %s26
    %s30 = sphi 0, %s29
    %s46 = sphi 0, %s30
    %s54 = sphi 0, %s56
    %s57 = sphi 0, %s54
    %s58 = sphi 0, %s57
    %s74 = sphi 0, %s58
    %s80 = sphi 0, %s82
    %s83 = sphi 0, %s80
    %s84 = sphi 0, %s83
    %s100 = sphi 0, %s84
    %s108 = sphi 0, %s110
    %s111 = sphi 0, %s108
    %s112 = sphi 0, %s111
    %s128 = sphi 0, %s112
    %s132 = sphi 0, %s132
    %s134 = sphi 0, %s132
    %s135 = sphi 0, %s134
    %s149 = sphi 0, %s135
    %s153 = sphi 0, %s153
    %s155 = sphi 0, %s153
    %s156 = sphi 0, %s155
    %s170 = sphi 0, %s156
    %s176 = sphi 0, %s178
    %s179 = sphi 0, %s176
    %s180 = sphi 0, %s179
    %s196 = sphi 0, %s180
    %s204 = sphi 0, %s206
    %s207 = sphi 0, %s204
    %s208 = sphi 0, %s207
    %s224 = sphi 0, %s208
    %s228 = sphi 0, %s228
    %s230 = sphi 0, %s228
    %s231 = sphi 0, %s230
    %s245 = sphi 0, %s231
    %s249 = sphi 0, %s249
    %s251 = sphi 0, %s249
    %s252 = sphi 0, %s251
    %s266 = sphi 0, %s252
  $region4: #{_seq2seq_core.6} parent=0 // loop_header_branch
    %19 = sbr.rel (%p17) target = $region8
  $region5: #{_seq2seq_core.6} parent=0 // loop_body
    %s21 = ssub.s32 %s16, 1
    %s22 = ssub.s32 %s16, 2
    %s23 = sadd.s32 %s16, 1
    %s24 = ssub.s32 %s16, %s23
    %p25 = scmp.eq.s32.totalorder %s24, 0
    %s27 = sadd.s32 %s26, 1
    %s28 = scalar_select %p25, %s26, %s27
    %p31 = pneg %p25
    %p32 = scmp.eq.s32.totalorder %s16, 7
    %p33 = por %p31, %p32
    %p34 = scmp.ne.s32.totalorder %s26, %s29
    %p35 = scmp.eq.s32.totalorder %s16, 0
    %p36 = por %p34, %p35
    %p37 = scmp.ne.s32.totalorder %s26, %s29
    %p38 = scmp.eq.s32.totalorder %s21, 7
    %p39 = por %p37, %p38
    %p40 = scmp.ne.s32.totalorder %s29, %s30
    %p41 = scmp.eq.s32.totalorder %s21, 0
    %p42 = por %p40, %p41
    %p43 = scmp.ne.s32.totalorder %s29, %s30
    %p44 = scmp.eq.s32.totalorder %s22, 7
    %p45 = por %p43, %p44
    %p47 = scmp.ne.s32.totalorder %s30, %s46
    %p48 = scmp.eq.s32.totalorder %s22, 0
    %p49 = por %p47, %p48
    %s50 = ssub.s32 7, %s16
    %s51 = ssub.s32 7, %s23
    %s52 = ssub.s32 %s50, %s51
    %p53 = scmp.eq.s32.totalorder %s52, 0
    %s55 = sadd.s32 %s54, 1
    %s56 = scalar_select %p53, %s54, %s55
    %p59 = pneg %p53
    %p60 = scmp.eq.s32.totalorder %s16, 7
    %p61 = por %p59, %p60
    %p62 = scmp.ne.s32.totalorder %s54, %s57
    %p63 = scmp.eq.s32.totalorder %s16, 0
    %p64 = por %p62, %p63
    %p65 = scmp.ne.s32.totalorder %s54, %s57
    %p66 = scmp.eq.s32.totalorder %s21, 7
    %p67 = por %p65, %p66
    %p68 = scmp.ne.s32.totalorder %s57, %s58
    %p69 = scmp.eq.s32.totalorder %s21, 0
    %p70 = por %p68, %p69
    %p71 = scmp.ne.s32.totalorder %s57, %s58
    %p72 = scmp.eq.s32.totalorder %s22, 7
    %p73 = por %p71, %p72
    %p75 = scmp.ne.s32.totalorder %s58, %s74
    %p76 = scmp.eq.s32.totalorder %s22, 0
    %p77 = por %p75, %p76
    %s78 = ssub.s32 %s16, %s23
    %p79 = scmp.eq.s32.totalorder %s78, 0
    %s81 = sadd.s32 %s80, 1
    %s82 = scalar_select %p79, %s80, %s81
    %p85 = pneg %p79
    %p86 = scmp.eq.s32.totalorder %s16, 7
    %p87 = por %p85, %p86
    %p88 = scmp.ne.s32.totalorder %s80, %s83
    %p89 = scmp.eq.s32.totalorder %s16, 0
    %p90 = por %p88, %p89
    %p91 = scmp.ne.s32.totalorder %s80, %s83
    %p92 = scmp.eq.s32.totalorder %s21, 7
    %p93 = por %p91, %p92
    %p94 = scmp.ne.s32.totalorder %s83, %s84
    %p95 = scmp.eq.s32.totalorder %s21, 0
    %p96 = por %p94, %p95
    %p97 = scmp.ne.s32.totalorder %s83, %s84
    %p98 = scmp.eq.s32.totalorder %s22, 7
    %p99 = por %p97, %p98
    %p101 = scmp.ne.s32.totalorder %s84, %s100
    %p102 = scmp.eq.s32.totalorder %s22, 0
    %p103 = por %p101, %p102
    %s104 = ssub.s32 7, %s16
    %s105 = ssub.s32 7, %s23
    %s106 = ssub.s32 %s104, %s105
    %p107 = scmp.eq.s32.totalorder %s106, 0
    %s109 = sadd.s32 %s108, 1
    %s110 = scalar_select %p107, %s108, %s109
    %p113 = pneg %p107
    %p114 = scmp.eq.s32.totalorder %s16, 7
    %p115 = por %p113, %p114
    %p116 = scmp.ne.s32.totalorder %s108, %s111
    %p117 = scmp.eq.s32.totalorder %s16, 0
    %p118 = por %p116, %p117
    %p119 = scmp.ne.s32.totalorder %s108, %s111
    %p120 = scmp.eq.s32.totalorder %s21, 7
    %p121 = por %p119, %p120
    %p122 = scmp.ne.s32.totalorder %s111, %s112
    %p123 = scmp.eq.s32.totalorder %s21, 0
    %p124 = por %p122, %p123
    %p125 = scmp.ne.s32.totalorder %s111, %s112
    %p126 = scmp.eq.s32.totalorder %s22, 7
    %p127 = por %p125, %p126
    %p129 = scmp.ne.s32.totalorder %s112, %s128
    %p130 = scmp.eq.s32.totalorder %s22, 0
    %p131 = por %p129, %p130
    %s133 = sadd.s32 %s132, 1
    %p136 = scmp.eq.s32.totalorder %s16, 7
    %p137 = scmp.ne.s32.totalorder %s132, %s134
    %p138 = scmp.eq.s32.totalorder %s16, 0
    %p139 = por %p137, %p138
    %p140 = scmp.ne.s32.totalorder %s132, %s134
    %p141 = scmp.eq.s32.totalorder %s21, 7
    %p142 = por %p140, %p141
    %p143 = scmp.ne.s32.totalorder %s134, %s135
    %p144 = scmp.eq.s32.totalorder %s21, 0
    %p145 = por %p143, %p144
    %p146 = scmp.ne.s32.totalorder %s134, %s135
    %p147 = scmp.eq.s32.totalorder %s22, 7
    %p148 = por %p146, %p147
    %p150 = scmp.ne.s32.totalorder %s135, %s149
    %p151 = scmp.eq.s32.totalorder %s22, 0
    %p152 = por %p150, %p151
    %s154 = sadd.s32 %s153, 1
    %p157 = scmp.eq.s32.totalorder %s16, 7
    %p158 = scmp.ne.s32.totalorder %s153, %s155
    %p159 = scmp.eq.s32.totalorder %s16, 0
    %p160 = por %p158, %p159
    %p161 = scmp.ne.s32.totalorder %s153, %s155
    %p162 = scmp.eq.s32.totalorder %s21, 7
    %p163 = por %p161, %p162
    %p164 = scmp.ne.s32.totalorder %s155, %s156
    %p165 = scmp.eq.s32.totalorder %s21, 0
    %p166 = por %p164, %p165
    %p167 = scmp.ne.s32.totalorder %s155, %s156
    %p168 = scmp.eq.s32.totalorder %s22, 7
    %p169 = por %p167, %p168
    %p171 = scmp.ne.s32.totalorder %s156, %s170
    %p172 = scmp.eq.s32.totalorder %s22, 0
    %p173 = por %p171, %p172
    %s174 = ssub.s32 %s16, %s23
    %p175 = scmp.eq.s32.totalorder %s174, 0
    %s177 = sadd.s32 %s176, 1
    %s178 = scalar_select %p175, %s176, %s177
    %p181 = pneg %p175
    %p182 = scmp.eq.s32.totalorder %s16, 7
    %p183 = por %p181, %p182
    %p184 = scmp.ne.s32.totalorder %s176, %s179
    %p185 = scmp.eq.s32.totalorder %s16, 0
    %p186 = por %p184, %p185
    %p187 = scmp.ne.s32.totalorder %s176, %s179
    %p188 = scmp.eq.s32.totalorder %s21, 7
    %p189 = por %p187, %p188
    %p190 = scmp.ne.s32.totalorder %s179, %s180
    %p191 = scmp.eq.s32.totalorder %s21, 0
    %p192 = por %p190, %p191
    %p193 = scmp.ne.s32.totalorder %s179, %s180
    %p194 = scmp.eq.s32.totalorder %s22, 7
    %p195 = por %p193, %p194
    %p197 = scmp.ne.s32.totalorder %s180, %s196
    %p198 = scmp.eq.s32.totalorder %s22, 0
    %p199 = por %p197, %p198
    %s200 = ssub.s32 7, %s16
    %s201 = ssub.s32 7, %s23
    %s202 = ssub.s32 %s200, %s201
    %p203 = scmp.eq.s32.totalorder %s202, 0
    %s205 = sadd.s32 %s204, 1
    %s206 = scalar_select %p203, %s204, %s205
    %p209 = pneg %p203
    %p210 = scmp.eq.s32.totalorder %s16, 7
    %p211 = por %p209, %p210
    %p212 = scmp.ne.s32.totalorder %s204, %s207
    %p213 = scmp.eq.s32.totalorder %s16, 0
    %p214 = por %p212, %p213
    %p215 = scmp.ne.s32.totalorder %s204, %s207
    %p216 = scmp.eq.s32.totalorder %s21, 7
    %p217 = por %p215, %p216
    %p218 = scmp.ne.s32.totalorder %s207, %s208
    %p219 = scmp.eq.s32.totalorder %s21, 0
    %p220 = por %p218, %p219
    %p221 = scmp.ne.s32.totalorder %s207, %s208
    %p222 = scmp.eq.s32.totalorder %s22, 7
    %p223 = por %p221, %p222
    %p225 = scmp.ne.s32.totalorder %s208, %s224
    %p226 = scmp.eq.s32.totalorder %s22, 0
    %p227 = por %p225, %p226
    %s229 = sadd.s32 %s228, 1
    %p232 = scmp.eq.s32.totalorder %s16, 7
    %p233 = scmp.ne.s32.totalorder %s228, %s230
    %p234 = scmp.eq.s32.totalorder %s16, 0
    %p235 = por %p233, %p234
    %p236 = scmp.ne.s32.totalorder %s228, %s230
    %p237 = scmp.eq.s32.totalorder %s21, 7
    %p238 = por %p236, %p237
    %p239 = scmp.ne.s32.totalorder %s230, %s231
    %p240 = scmp.eq.s32.totalorder %s21, 0
    %p241 = por %p239, %p240
    %p242 = scmp.ne.s32.totalorder %s230, %s231
    %p243 = scmp.eq.s32.totalorder %s22, 7
    %p244 = por %p242, %p243
    %p246 = scmp.ne.s32.totalorder %s231, %s245
    %p247 = scmp.eq.s32.totalorder %s22, 0
    %p248 = por %p246, %p247
    %s250 = sadd.s32 %s249, 1
    %p253 = scmp.eq.s32.totalorder %s16, 7
    %p254 = scmp.ne.s32.totalorder %s249, %s251
    %p255 = scmp.eq.s32.totalorder %s16, 0
    %p256 = por %p254, %p255
    %p257 = scmp.ne.s32.totalorder %s249, %s251
    %p258 = scmp.eq.s32.totalorder %s21, 7
    %p259 = por %p257, %p258
    %p260 = scmp.ne.s32.totalorder %s251, %s252
    %p261 = scmp.eq.s32.totalorder %s21, 0
    %p262 = por %p260, %p261
    %p263 = scmp.ne.s32.totalorder %s251, %s252
    %p264 = scmp.eq.s32.totalorder %s22, 7
    %p265 = por %p263, %p264
    %p267 = scmp.ne.s32.totalorder %s252, %s266
    %p268 = scmp.eq.s32.totalorder %s22, 0
    %p269 = por %p267, %p268
    %p270 = scmp.le.s32.totalorder 1, %s16
    %p271 = scmp.lt.s32.totalorder %s16, 9
    %p272 = pnand %p270, %p271
    %p273 = pneg %p272
    // Predicated region
    $region9: #{_seq2seq_core.6} parent=5 // pred_check
      _
    $region10: #{_seq2seq_core.6} parent=5 // pred_check_branch
      %275 = sbr.rel (%p272) target = $region12
    $region11: #{_seq2seq_core.6} parent=5 // pred_region
      %s276 = ssub.s32 %s16, 1
      // Predicated region
      $region13: #{_seq2seq_core.6} parent=11 // pred_check
        %p277 = pneg %p145
      $region14: #{_seq2seq_core.6} parent=11 // pred_check_branch
        %279 = sbr.rel (%p277) target = $region16
      $region15: #{_seq2seq_core.6} parent=11 // pred_region
        _
      $region16: #{_seq2seq_core.6} parent=11 // pred_fallthru
        _
      // Predicated region
      $region17: #{_seq2seq_core.6} parent=11 // pred_check
        %p280 = pneg %p166
      $region18: #{_seq2seq_core.6} parent=11 // pred_check_branch
        %282 = sbr.rel (%p280) target = $region20
      $region19: #{_seq2seq_core.6} parent=11 // pred_region
        _
      $region20: #{_seq2seq_core.6} parent=11 // pred_fallthru
        _
    $region12: #{_seq2seq_core.6} parent=5 // pred_fallthru
      _
    %p283 = scmp.lt.s32.totalorder %s16, 8
    // Predicated region
    $region21: #{_seq2seq_core.6} parent=5 // pred_check
      %p284 = pneg %p283
    $region22: #{_seq2seq_core.6} parent=5 // pred_check_branch
      %286 = sbr.rel (%p284) target = $region24
    $region23: #{_seq2seq_core.6} parent=5 // pred_region
      // Predicated region
      $region25: #{_seq2seq_core.6} parent=23 // pred_check
        %p287 = pneg %p36
      $region26: #{_seq2seq_core.6} parent=23 // pred_check_branch
        %289 = sbr.rel (%p287) target = $region28
      $region27: #{_seq2seq_core.6} parent=23 // pred_region
        %p290 = scmp.lt.s32.totalorder %s16, 7
        %s291 = scalar_select %p290, %s16, 7
        %s292 = smul.addr %s291, 2
        %s293 = smul.addr %s292, 8
        %s294 = scalar_lea.vmem %s0, %s293
      $region28: #{_seq2seq_core.6} parent=23 // pred_fallthru
        _
      // Predicated region
      $region29: #{_seq2seq_core.6} parent=23 // pred_check
        %p295 = pneg %p64
      $region30: #{_seq2seq_core.6} parent=23 // pred_check_branch
        %297 = sbr.rel (%p295) target = $region32
      $region31: #{_seq2seq_core.6} parent=23 // pred_region
        %s298 = ssub.s32 7, %s16
        %p299 = scmp.lt.s32.totalorder %s298, 7
        %s300 = scalar_select %p299, %s298, 7
        %s301 = smul.addr %s300, 2
        %s302 = sadd.s32 1, %s301
        %s303 = smul.addr %s302, 8
        %s304 = scalar_lea.vmem %s1, %s303
        %s305 = ssub.s32 7, %s16
      $region32: #{_seq2seq_core.6} parent=23 // pred_fallthru
        _
      // Predicated region
      $region33: #{_seq2seq_core.6} parent=23 // pred_check
        %p306 = pneg %p90
      $region34: #{_seq2seq_core.6} parent=23 // pred_check_branch
        %308 = sbr.rel (%p306) target = $region36
      $region35: #{_seq2seq_core.6} parent=23 // pred_region
        %p309 = scmp.lt.s32.totalorder %s16, 7
        %s310 = scalar_select %p309, %s16, 7
        %s311 = smul.addr %s310, 8
        %s312 = scalar_lea.vmem %s2, %s311
      $region36: #{_seq2seq_core.6} parent=23 // pred_fallthru
        _
      // Predicated region
      $region37: #{_seq2seq_core.6} parent=23 // pred_check
        %p313 = pneg %p118
      $region38: #{_seq2seq_core.6} parent=23 // pred_check_branch
        %315 = sbr.rel (%p313) target = $region40
      $region39: #{_seq2seq_core.6} parent=23 // pred_region
        %s316 = ssub.s32 7, %s16
        %p317 = scmp.lt.s32.totalorder %s316, 7
        %s318 = scalar_select %p317, %s316, 7
        %s319 = smul.addr %s318, 8
        %s320 = scalar_lea.vmem %s3, %s319
        %s321 = ssub.s32 7, %s16
      $region40: #{_seq2seq_core.6} parent=23 // pred_fallthru
        _
    $region24: #{_seq2seq_core.6} parent=5 // pred_fallthru
      _
    %p322 = scmp.le.s32.totalorder 1, %s16
    %p323 = scmp.lt.s32.totalorder %s16, 9
    %p324 = pnand %p322, %p323
    %p325 = pneg %p324
    // Predicated region
    $region41: #{_seq2seq_core.6} parent=5 // pred_check
      _
    $region42: #{_seq2seq_core.6} parent=5 // pred_check_branch
      %327 = sbr.rel (%p324) target = $region44
    $region43: #{_seq2seq_core.6} parent=5 // pred_region
      %s328 = ssub.s32 %s16, 1
      %p329 = scmp.lt.s32.totalorder %s21, 7
      %s330 = scalar_select %p329, %s21, 7
      %s331 = smul.addr %s330, 2
      %s332 = smul.addr %s331, 8
      %s333 = scalar_lea.vmem %s0, %s332
      %p334 = pneg %p42
      %p335 = pneg %p39
      %s336 = ssub.s32 7, %s21
      %p337 = scmp.lt.s32.totalorder %s336, 7
      %s338 = scalar_select %p337, %s336, 7
      %s339 = smul.addr %s338, 2
      %s340 = sadd.s32 1, %s339
      %s341 = smul.addr %s340, 8
      %s342 = scalar_lea.vmem %s1, %s341
      %p343 = pneg %p70
      %p344 = pneg %p67
      %p345 = scmp.lt.s32.totalorder %s21, 7
      %s346 = scalar_select %p345, %s21, 7
      %s347 = smul.addr %s346, 8
      %s348 = scalar_lea.vmem %s2, %s347
      %p349 = pneg %p96
      %p350 = pneg %p93
      %s351 = ssub.s32 7, %s21
      %p352 = scmp.lt.s32.totalorder %s351, 7
      %s353 = scalar_select %p352, %s351, 7
      %s354 = smul.addr %s353, 8
      %s355 = scalar_lea.vmem %s3, %s354
      %p356 = pneg %p124
      %p357 = pneg %p121
      %p358 = pneg %p145
      %p359 = pneg %p142
      %p360 = pneg %p166
      %p361 = pneg %p163
      %p362 = pneg %p192
      %p363 = pneg %p189
      %p364 = scmp.lt.s32.totalorder %s21, 7
      %s365 = scalar_select %p364, %s21, 7
      %s366 = smul.addr %s365, 8
      %s367 = scalar_lea.vmem %s6, %s366
      %p368 = pneg %p220
      %p369 = pneg %p217
      %s370 = ssub.s32 7, %s21
      %p371 = scmp.lt.s32.totalorder %s370, 7
      %s372 = scalar_select %p371, %s370, 7
      %s373 = smul.addr %s372, 8
      %s374 = scalar_lea.vmem %s7, %s373
      %p375 = pneg %p241
      %p376 = pneg %p238
      %p377 = pneg %p262
      %p378 = pneg %p259
      %p379 = scmp.lt.s32.totalorder %s21, 7
      %s380 = scalar_select %p379, %s21, 7
      %s381 = smul.addr %s380, 2
      %s382 = smul.addr %s381, 8
      %s383 = scalar_lea.vmem %s0, %s382
      %s384 = ssub.s32 7, %s21
      %p385 = scmp.lt.s32.totalorder %s384, 7
      %s386 = scalar_select %p385, %s384, 7
      %s387 = smul.addr %s386, 2
      %s388 = sadd.s32 1, %s387
      %s389 = smul.addr %s388, 8
      %s390 = scalar_lea.vmem %s1, %s389
      %s391 = ssub.s32 7, %s21
      %p392 = scmp.lt.s32.totalorder %s21, 7
      %s393 = scalar_select %p392, %s21, 7
      %s394 = smul.addr %s393, 8
      %s395 = scalar_lea.vmem %s2, %s394
      %s396 = ssub.s32 7, %s21
      %p397 = scmp.lt.s32.totalorder %s396, 7
      %s398 = scalar_select %p397, %s396, 7
      %s399 = smul.addr %s398, 8
      %s400 = scalar_lea.vmem %s3, %s399
      %s401 = ssub.s32 7, %s21
      %p402 = scmp.lt.s32.totalorder %s21, 7
      %s403 = scalar_select %p402, %s21, 7
      %s404 = smul.addr %s403, 8
      %s405 = scalar_lea.vmem %s6, %s404
      %s406 = ssub.s32 7, %s21
      %p407 = scmp.lt.s32.totalorder %s406, 7
      %s408 = scalar_select %p407, %s406, 7
      %s409 = smul.addr %s408, 8
      %s410 = scalar_lea.vmem %s7, %s409
      %s411 = ssub.s32 7, %s21
      %p413 = scmp.eq.s32.totalorder %s21, 0
      // Predicated region
      $region45: #{_seq2seq_core.6} parent=43 // pred_check
        %p414 = pneg %p413
      $region46: #{_seq2seq_core.6} parent=43 // pred_check_branch
        %416 = sbr.rel (%p414) target = $region48
      $region47: #{_seq2seq_core.6} parent=43 // pred_region
        %vm417 = vcmask 261120
        %418 = vst.msk [vmem:[#allocation2] sm:$0xff] %vm417, 0.0
        %419 = vst.msk [vmem:[#allocation3] sm:$0xff] %vm417, 0.0
        %420 = vst.msk [vmem:[#allocation4] sm:$0xff] %vm417, 0.0
        %421 = vst.msk [vmem:[#allocation5] sm:$0xff] %vm417, 0.0
      $region48: #{_seq2seq_core.6} parent=43 // pred_fallthru
        _
      %v422 = vld [vmem:[%s395] sm:$0xff]
      %v423 = vld [vmem:[%s400] sm:$0xff]
      %v424 = vld [vmem:[%s383] sm:$0xff]
      %v425 = vld [vmem:[#allocation2] sm:$0xff]
      %v426 = vld [vmem:[#allocation3] sm:$0xff]
      %v427 = vpack.c.bf16 %v425, %v425
      %v428 = vld [vmem:[%s4] sm:$0xf]
      %v429 = vld [vmem:[%s4 + $0x4] sm:$0xf]
      %v430 = vld [vmem:[%s4 + $0x8] sm:$0xf]
      %v431 = vld [vmem:[%s4 + $0xc] sm:$0xf]
      %v436 = vunpack.c.l.b16 %v428
      %v437 = vunpack.c.l.b16 %v429
      %v438 = vunpack.c.l.b16 %v430
      %v439 = vunpack.c.l.b16 %v431
      %v440 = vpack.c.b16 %v437, %v436
      %v441 = vpack.c.b16 %v439, %v438
      %vm444 = vcmask 261120
      %v446 = vsel %vm444, %v427, 0
      %448 = vmatprep.subr.bf16.mxu0 0
      %449 = vmatpush1.bf16.msra.mxu0 0
      %450 = vmatprep.subr.bf16.mxu0 0
      %451 = vmatpush1.bf16.msra.mxu0 0
      %452 = vmatprep.subr.bf16.mxu0 0
      %453 = vmatpush1.bf16.msra.mxu0 0
      %454 = vmatprep.subr.bf16.mxu0 0
      %455 = vmatpush1.bf16.msra.mxu0 0
      %456 = vmatprep.subr.bf16.mxu0 0
      %457 = vmatpush1.bf16.msra.mxu0 0
      %458 = vmatprep.subr.bf16.mxu0 0
      %459 = vmatpush1.bf16.msra.mxu0 0
      %460 = vmatprep.subr.bf16.mxu0 0
      %461 = vmatpush1.bf16.msra.mxu0 %v441
      %462 = vmatprep.subr.bf16.mxu0 0
      %463 = vmatpush1.bf16.msra.mxu0 %v440
      %464 = vmatprep.subr.bf16.mxu0 0
      %465 = vmatpush2.bf16.msra.mxu0 0
      %466 = vmatprep.subr.bf16.mxu0 0
      %467 = vmatpush2.bf16.msra.mxu0 0
      %468 = vmatprep.subr.bf16.mxu0 0
      %469 = vmatpush2.bf16.msra.mxu0 0
      %470 = vmatprep.subr.bf16.mxu0 0
      %471 = vmatpush2.bf16.msra.mxu0 0
      %472 = vmatprep.subr.bf16.mxu0 0
      %473 = vmatpush2.bf16.msra.mxu0 0
      %474 = vmatprep.subr.bf16.mxu0 0
      %475 = vmatpush2.bf16.msra.mxu0 0
      %476 = vmatprep.subr.bf16.mxu0 0
      %477 = vmatpush2.bf16.msra.mxu0 0
      %478 = vmatprep.subr.bf16.mxu0 0
      %479 = vmatpush2.bf16.msra.mxu0 0
      %480 = vmatprep.mubr.bf16.mxu0 0
      %481 = vmatmul.mubr.bf16.gmra.mxu0 %v446
      %v482 = vpop.f32.mrf.mxu0
      %v483 = vadd.f32 0.0, %v482
      %v484 = vpop.f32.mrf.mxu0
      %v485 = vpop.f32.mrf.mxu0
      %v486 = vpop.f32.mrf.mxu0
      %487 = vdwg.mxu0
      %v488 = vadd.f32 %v424, %v483
      %v489 = vlaneseq
      %v490 = vand.u32 %v489, 127
      %vm491 = vcmp.ge.s32.totalorder %v490, 64
      %vm492 = vcmp.lt.s32.totalorder %v490, 96
      %vm493 = vmand %vm491, %vm492
      %v494 = vtanh.pop %v488
      %v495 = vxor.u32 %v488, 2147483648
      %v496 = vmul.f32 %v495, 1.442695
      %v497 = vpow.pop %v496
      %v498 = vadd.f32 %v497, 1.0
      %v499 = vrcp.pop %v498
      %v500 = vmul.f32 1.0, %v499
      %v501 = vsel %vm493, %v494, %v500
      %503 = vrot.lane.b32.xlu0 %v426, 32
      %v504 = vpop.permute.xlu0 %503
      %v506 = vmul.f32 %v501, %v504
      %508 = vrot.lane.b32.xlu0 %v501, 64
      %v509 = vpop.permute.xlu0 %508
      %v511 = vmul.f32 %v501, %v509
      %513 = vrot.lane.b32.xlu0 %v511, 32
      %v514 = vpop.permute.xlu0 %513
      %v516 = vadd.f32 %v506, %v514
      %v517 = vtanh.pop %v516
      %519 = vrot.lane.b32.xlu0 %v517, 64
      %v520 = vpop.permute.xlu0 %519
      %v522 = vmul.f32 %v501, %v520
      %524 = vset.pattern.permute.xlu0 0
      %525 = vperm.xlu0 %524, %v422
      %v526 = vpop.permute.xlu0 %525
      %v528 = vmul.f32 %v526, %v522
      %v529 = vsub.f32 1.0, %v422
      %531 = vset.pattern.permute.xlu0 0
      %532 = vperm.xlu0 %531, %v529
      %v533 = vpop.permute.xlu0 %532
      %v535 = vmul.f32 %v533, %v425
      %537 = vrot.lane.b32.xlu0 %v535, 96
      %v538 = vpop.permute.xlu0 %537
      %v540 = vadd.f32 %v528, %v538
      %v541 = vmul.f32 %v526, %v516
      %v542 = vmul.f32 %v533, %v426
      %544 = vrot.lane.b32.xlu0 %v542, 32
      %v545 = vpop.permute.xlu0 %544
      %v547 = vadd.f32 %v541, %v545
      %v548 = vld [vmem:[%s390] sm:$0xff]
      %v549 = vld [vmem:[#allocation4] sm:$0xff]
      %v550 = vld [vmem:[#allocation5] sm:$0xff]
      %v551 = vpack.c.bf16 %v549, %v549
      %v552 = vld [vmem:[%s5] sm:$0xf]
      %v553 = vld [vmem:[%s5 + $0x4] sm:$0xf]
      %v554 = vld [vmem:[%s5 + $0x8] sm:$0xf]
      %v555 = vld [vmem:[%s5 + $0xc] sm:$0xf]
      %v560 = vunpack.c.l.b16 %v552
      %v561 = vunpack.c.l.b16 %v553
      %v562 = vunpack.c.l.b16 %v554
      %v563 = vunpack.c.l.b16 %v555
      %v564 = vpack.c.b16 %v561, %v560
      %v565 = vpack.c.b16 %v563, %v562
      %v569 = vsel %vm444, %v551, 0
      %571 = vmatprep.subr.bf16.mxu0 0
      %572 = vmatpush1.bf16.msra.mxu0 0
      %573 = vmatprep.subr.bf16.mxu0 0
      %574 = vmatpush1.bf16.msra.mxu0 0
      %575 = vmatprep.subr.bf16.mxu0 0
      %576 = vmatpush1.bf16.msra.mxu0 0
      %577 = vmatprep.subr.bf16.mxu0 0
      %578 = vmatpush1.bf16.msra.mxu0 0
      %579 = vmatprep.subr.bf16.mxu0 0
      %580 = vmatpush1.bf16.msra.mxu0 0
      %581 = vmatprep.subr.bf16.mxu0 0
      %582 = vmatpush1.bf16.msra.mxu0 0
      %583 = vmatprep.subr.bf16.mxu0 0
      %584 = vmatpush1.bf16.msra.mxu0 %v565
      %585 = vmatprep.subr.bf16.mxu0 0
      %586 = vmatpush1.bf16.msra.mxu0 %v564
      %587 = vmatprep.subr.bf16.mxu0 0
      %588 = vmatpush2.bf16.msra.mxu0 0
      %589 = vmatprep.subr.bf16.mxu0 0
      %590 = vmatpush2.bf16.msra.mxu0 0
      %591 = vmatprep.subr.bf16.mxu0 0
      %592 = vmatpush2.bf16.msra.mxu0 0
      %593 = vmatprep.subr.bf16.mxu0 0
      %594 = vmatpush2.bf16.msra.mxu0 0
      %595 = vmatprep.subr.bf16.mxu0 0
      %596 = vmatpush2.bf16.msra.mxu0 0
      %597 = vmatprep.subr.bf16.mxu0 0
      %598 = vmatpush2.bf16.msra.mxu0 0
      %599 = vmatprep.subr.bf16.mxu0 0
      %600 = vmatpush2.bf16.msra.mxu0 0
      %601 = vmatprep.subr.bf16.mxu0 0
      %602 = vmatpush2.bf16.msra.mxu0 0
      %603 = vmatprep.mubr.bf16.mxu0 0
      %604 = vmatmul.mubr.bf16.gmra.mxu0 %v569
      %v605 = vpop.f32.mrf.mxu0
      %v606 = vadd.f32 0.0, %v605
      %v607 = vpop.f32.mrf.mxu0
      %v608 = vpop.f32.mrf.mxu0
      %v609 = vpop.f32.mrf.mxu0
      %610 = vdwg.mxu0
      %v611 = vadd.f32 %v548, %v606
      %v612 = vtanh.pop %v611
      %v613 = vxor.u32 %v611, 2147483648
      %v614 = vmul.f32 %v613, 1.442695
      %v615 = vpow.pop %v614
      %v616 = vadd.f32 %v615, 1.0
      %v617 = vrcp.pop %v616
      %v618 = vmul.f32 1.0, %v617
      %v619 = vsel %vm493, %v612, %v618
      %621 = vrot.lane.b32.xlu0 %v550, 32
      %v622 = vpop.permute.xlu0 %621
      %v624 = vmul.f32 %v619, %v622
      %626 = vrot.lane.b32.xlu0 %v619, 64
      %v627 = vpop.permute.xlu0 %626
      %v629 = vmul.f32 %v619, %v627
      %631 = vrot.lane.b32.xlu0 %v629, 32
      %v632 = vpop.permute.xlu0 %631
      %v634 = vadd.f32 %v624, %v632
      %v635 = vtanh.pop %v634
      %637 = vrot.lane.b32.xlu0 %v635, 64
      %v638 = vpop.permute.xlu0 %637
      %v640 = vmul.f32 %v619, %v638
      %642 = vset.pattern.permute.xlu0 0
      %643 = vperm.xlu0 %642, %v423
      %v644 = vpop.permute.xlu0 %643
      %v646 = vmul.f32 %v644, %v640
      %v647 = vsub.f32 1.0, %v423
      %649 = vset.pattern.permute.xlu0 0
      %650 = vperm.xlu0 %649, %v647
      %v651 = vpop.permute.xlu0 %650
      %v653 = vmul.f32 %v651, %v549
      %655 = vrot.lane.b32.xlu0 %v653, 96
      %v656 = vpop.permute.xlu0 %655
      %v658 = vadd.f32 %v646, %v656
      %v659 = vmul.f32 %v644, %v634
      %v660 = vmul.f32 %v651, %v550
      %662 = vrot.lane.b32.xlu0 %v660, 32
      %v663 = vpop.permute.xlu0 %662
      %v665 = vadd.f32 %v659, %v663
      %667 = vrot.lane.b32.xlu0 %v540, 32
      %v668 = vpop.permute.xlu0 %667
      %670 = vst.msk [vmem:[#allocation2] sm:$0xff] %vm444, %v668
      %672 = vrot.lane.b32.xlu0 %v547, 96
      %v673 = vpop.permute.xlu0 %672
      %675 = vst.msk [vmem:[#allocation3] sm:$0xff] %vm444, %v673
      %677 = vrot.lane.b32.xlu0 %v658, 32
      %v678 = vpop.permute.xlu0 %677
      %680 = vst.msk [vmem:[#allocation4] sm:$0xff] %vm444, %v678
      %682 = vrot.lane.b32.xlu0 %v665, 96
      %v683 = vpop.permute.xlu0 %682
      %685 = vst.msk [vmem:[#allocation5] sm:$0xff] %vm444, %v683
      %v686 = vmul.f32 %v540, %v526
      %688 = vrot.lane.b32.xlu0 %v686, 32
      %v689 = vpop.permute.xlu0 %688
      %691 = vst.msk [vmem:[%s405] sm:$0xff] %vm444, %v689
      %v692 = vmul.f32 %v658, %v644
      %694 = vrot.lane.b32.xlu0 %v692, 32
      %v695 = vpop.permute.xlu0 %694
      %697 = vst.msk [vmem:[%s410] sm:$0xff] %vm444, %v695
      %p698 = scmp.eq.s32.totalorder %s21, 7
      // Predicated region
      $region49: #{_seq2seq_core.6} parent=43 // pred_check
        %p699 = pneg %p698
      $region50: #{_seq2seq_core.6} parent=43 // pred_check_branch
        %701 = sbr.rel (%p699) target = $region52
      $region51: #{_seq2seq_core.6} parent=43 // pred_region
        %v702 = vadd.f32 %v540, %v658
        %704 = vrot.lane.b32.xlu0 %v702, 32
        %v705 = vpop.permute.xlu0 %704
        %707 = vst.msk [vmem:[%s8] sm:$0xff] %vm444, %v705
        %v708 = vadd.f32 %v547, %v665
        %710 = vrot.lane.b32.xlu0 %v708, 96
        %v711 = vpop.permute.xlu0 %710
        %713 = vst.msk [vmem:[%s9] sm:$0xff] %vm444, %v711
      $region52: #{_seq2seq_core.6} parent=43 // pred_fallthru
        _
      %p714 = scmp.lt.s32.totalorder %s21, 7
      %s715 = scalar_select %p714, %s21, 7
      %s716 = smul.addr %s715, 8
      %s717 = scalar_lea.vmem %s6, %s716
      %s718 = ssub.s32 7, %s21
      %p719 = scmp.lt.s32.totalorder %s718, 7
      %s720 = scalar_select %p719, %s718, 7
      %s721 = smul.addr %s720, 8
      %s722 = scalar_lea.vmem %s7, %s721
      // Predicated region
      $region53: #{_seq2seq_core.6} parent=43 // pred_check
        %p723 = pneg %p189
      $region54: #{_seq2seq_core.6} parent=43 // pred_check_branch
        %725 = sbr.rel (%p723) target = $region56
      $region55: #{_seq2seq_core.6} parent=43 // pred_region
        _
      $region56: #{_seq2seq_core.6} parent=43 // pred_fallthru
        _
      // Predicated region
      $region57: #{_seq2seq_core.6} parent=43 // pred_check
        %p726 = pneg %p217
      $region58: #{_seq2seq_core.6} parent=43 // pred_check_branch
        %728 = sbr.rel (%p726) target = $region60
      $region59: #{_seq2seq_core.6} parent=43 // pred_region
        %s729 = ssub.s32 7, %s21
      $region60: #{_seq2seq_core.6} parent=43 // pred_fallthru
        _
      // Predicated region
      $region61: #{_seq2seq_core.6} parent=43 // pred_check
        %p730 = pneg %p238
      $region62: #{_seq2seq_core.6} parent=43 // pred_check_branch
        %732 = sbr.rel (%p730) target = $region64
      $region63: #{_seq2seq_core.6} parent=43 // pred_region
        _
      $region64: #{_seq2seq_core.6} parent=43 // pred_fallthru
        _
      // Predicated region
      $region65: #{_seq2seq_core.6} parent=43 // pred_check
        %p733 = pneg %p259
      $region66: #{_seq2seq_core.6} parent=43 // pred_check_branch
        %735 = sbr.rel (%p733) target = $region68
      $region67: #{_seq2seq_core.6} parent=43 // pred_region
        _
      $region68: #{_seq2seq_core.6} parent=43 // pred_fallthru
        _
      // Predicated region
      $region69: #{_seq2seq_core.6} parent=43 // pred_check
        %p736 = pneg %p238
      $region70: #{_seq2seq_core.6} parent=43 // pred_check_branch
        %738 = sbr.rel (%p736) target = $region72
      $region71: #{_seq2seq_core.6} parent=43 // pred_region
        _
      $region72: #{_seq2seq_core.6} parent=43 // pred_fallthru
        _
      // Predicated region
      $region73: #{_seq2seq_core.6} parent=43 // pred_check
        %p739 = pneg %p259
      $region74: #{_seq2seq_core.6} parent=43 // pred_check_branch
        %741 = sbr.rel (%p739) target = $region76
      $region75: #{_seq2seq_core.6} parent=43 // pred_region
        _
      $region76: #{_seq2seq_core.6} parent=43 // pred_fallthru
        _
    $region44: #{_seq2seq_core.6} parent=5 // pred_fallthru
      _
    %p742 = scmp.le.s32.totalorder 2, %s16
    // Predicated region
    $region77: #{_seq2seq_core.6} parent=5 // pred_check
      %p743 = pneg %p742
    $region78: #{_seq2seq_core.6} parent=5 // pred_check_branch
      %745 = sbr.rel (%p743) target = $region80
    $region79: #{_seq2seq_core.6} parent=5 // pred_region
      %s746 = ssub.s32 %s16, 2
      // Predicated region
      $region81: #{_seq2seq_core.6} parent=79 // pred_check
        %p747 = pneg %p195
      $region82: #{_seq2seq_core.6} parent=79 // pred_check_branch
        %749 = sbr.rel (%p747) target = $region84
      $region83: #{_seq2seq_core.6} parent=79 // pred_region
        %p750 = scmp.lt.s32.totalorder %s22, 7
        %s751 = scalar_select %p750, %s22, 7
        %s752 = smul.addr %s751, 8
        %s753 = scalar_lea.vmem %s6, %s752
      $region84: #{_seq2seq_core.6} parent=79 // pred_fallthru
        _
      // Predicated region
      $region85: #{_seq2seq_core.6} parent=79 // pred_check
        %p754 = pneg %p223
      $region86: #{_seq2seq_core.6} parent=79 // pred_check_branch
        %756 = sbr.rel (%p754) target = $region88
      $region87: #{_seq2seq_core.6} parent=79 // pred_region
        %s757 = ssub.s32 7, %s22
        %p758 = scmp.lt.s32.totalorder %s757, 7
        %s759 = scalar_select %p758, %s757, 7
        %s760 = smul.addr %s759, 8
        %s761 = scalar_lea.vmem %s7, %s760
      $region88: #{_seq2seq_core.6} parent=79 // pred_fallthru
        _
    $region80: #{_seq2seq_core.6} parent=5 // pred_fallthru
      _
  $region6: #{_seq2seq_core.6} parent=0 // loop_footer
    %s20 = sadd.s32 1, %s16
  $region7: #{_seq2seq_core.6} parent=0 // loop_footer_branch
    %15 = sbr.rel target = $region3
  $region8: #{_seq2seq_core.6} parent=0 // loop_exit
    _

// kernel: _seq2seq_core.9
$region0: #{_seq2seq_core.9}
  #allocation0 [shape = 'u32[]', space=smem, size = 0x4, offset = 0x4, fixed_abs, tag = 'smem constant byte address 0x4 - core index']
  #allocation1 [shape = 'u32[144,128]{1,0:T(1,128)}', space=vmem, size = 0x12000, scoped, tag = 'internal scratch']
  #allocation2 [shape = 'f32[2,8,32]{2,1,0:T(8,128)}', space=vmem, size = 0x2000, scoped, tag = 'scratch operand']
  #allocation3 [shape = 'f32[2,8,32]{2,1,0:T(8,128)}', space=vmem, size = 0x2000, scoped, tag = 'scratch operand']
  #allocation4 [shape = 's32[8,1]{1,0:T(8,128)}', space=vmem, size = 0x1000, scoped, tag = 'scratch operand']
  #allocation5 [shape = 's32[1]{0}', space=sflag, size = 0x4, scoped, tag = 'scoped memory for _seq2seq_core.9']
  #allocation6 [shape = 'u8[512]{0}', space=smem, size = 0x200, scoped, tag = 'prefetched SMEM operand 0']
  %s0 = inlined_call_operand.vmem [shape: s32[5], index: 0, kind: input, shape index: {}]
  %s1 = inlined_call_operand.vmem [shape: s32[5,8,1], index: 1, kind: input, shape index: {}]
  %s2 = inlined_call_operand.vmem [shape: f32[2,8,32], index: 2, kind: input, shape index: {}]
  %s3 = inlined_call_operand.vmem [shape: f32[2,8,32], index: 3, kind: input, shape index: {}]
  %s4 = inlined_call_operand.vmem [shape: bf16[128,32], index: 4, kind: input, shape index: {}]
  %s5 = inlined_call_operand.vmem [shape: bf16[2,32,128], index: 5, kind: input, shape index: {}]
  %s6 = inlined_call_operand.vmem [shape: bf16[2,32,128], index: 6, kind: input, shape index: {}]
  %s7 = inlined_call_operand.vmem [shape: f32[2,1,128], index: 7, kind: input, shape index: {}]
  %s8 = inlined_call_operand.vmem [shape: bf16[32,128], index: 8, kind: input, shape index: {}]
  %s9 = inlined_call_operand.vmem [shape: f32[1,128], index: 9, kind: input, shape index: {}]
  %s10 = inlined_call_operand.hbm [shape: f32[5,8,128], index: 10, kind: output, shape index: {}]
  %s11 = sld [smem:[#allocation0]]
  $region73: #{_seq2seq_core.9} parent=0
    _
  %s13 = ssub.s32 1, %s11
  %s14 = scalar_select 0, %s13, %s11
  %s15 = sshll.u32 %s0, 4
  %s16 = int_to_ptr.vmem [resolvable:$true] %s15
  %18 = dma.vmem_to_smem %s16, 16, [#allocation6], [#allocation5]
  %19 = dma.done [#allocation5], 16
  %20 = sfence
  $region1: #{_seq2seq_core.9} parent=0
    #allocation7 [shape = 'u8[8192]{0}', space=vmem, size = 0x2000, scoped, tag = 'output window, operand 0']
    #allocation8 [shape = 's32[2]{0}', space=sflag, size = 0x8, scoped, tag = 'scoped memory for _seq2seq_core.9']
    %21 = vsyncpa [#allocation8], 0
    %s22 = scalar_lea.sflag [#allocation8], 1
    %23 = vsyncpa %s22, 0
    loop: start=0, step=1, limit=7
    $region2: #{_seq2seq_core.9} parent=1 // loop_pre_header
      _
    $region3: #{_seq2seq_core.9} parent=1 // loop_header
      %s25 = sphi 0, %s29
      %p26 = scmp.ge.s32.totalorder %s25, 7
      %s35 = sphi 0, %s37
      %s38 = sphi 0, %s35
      %s39 = sphi 0, %s38
      %s55 = sphi 0, %s39
      %s59 = sphi 0, %s59
      %s61 = sphi 0, %s59
      %s62 = sphi 0, %s61
      %s76 = sphi 0, %s62
      %s80 = sphi 0, %s80
      %s82 = sphi 0, %s80
      %s83 = sphi 0, %s82
      %s97 = sphi 0, %s83
      %s101 = sphi 0, %s101
      %s103 = sphi 0, %s101
      %s104 = sphi 0, %s103
      %s118 = sphi 0, %s104
      %s122 = sphi 0, %s122
      %s124 = sphi 0, %s122
      %s125 = sphi 0, %s124
      %s139 = sphi 0, %s125
      %s143 = sphi 0, %s143
      %s145 = sphi 0, %s143
      %s146 = sphi 0, %s145
      %s160 = sphi 0, %s146
      %s164 = sphi 0, %s164
      %s166 = sphi 0, %s164
      %s167 = sphi 0, %s166
      %s181 = sphi 0, %s167
      %s185 = sphi 0, %s185
      %s187 = sphi 0, %s185
      %s188 = sphi 0, %s187
      %s202 = sphi 0, %s188
      %s206 = sphi 0, %s206
      %s208 = sphi 0, %s206
      %s209 = sphi 0, %s208
      %s223 = sphi 0, %s209
      %s229 = sphi 0, %s231
      %s232 = sphi 0, %s229
      %s233 = sphi 0, %s232
      %s249 = sphi 0, %s233
    $region4: #{_seq2seq_core.9} parent=1 // loop_header_branch
      %28 = sbr.rel (%p26) target = $region8
    $region5: #{_seq2seq_core.9} parent=1 // loop_body
      %s30 = ssub.s32 %s25, 1
      %s31 = ssub.s32 %s25, 2
      %s32 = sadd.s32 %s25, 1
      %s33 = ssub.s32 %s25, %s32
      %p34 = scmp.eq.s32.totalorder %s33, 0
      %s36 = sadd.s32 %s35, 1
      %s37 = scalar_select %p34, %s35, %s36
      %p40 = pneg %p34
      %p41 = scmp.eq.s32.totalorder %s25, 4
      %p42 = por %p40, %p41
      %p43 = scmp.ne.s32.totalorder %s35, %s38
      %p44 = scmp.eq.s32.totalorder %s25, 0
      %p45 = por %p43, %p44
      %p46 = scmp.ne.s32.totalorder %s35, %s38
      %p47 = scmp.eq.s32.totalorder %s30, 4
      %p48 = por %p46, %p47
      %p49 = scmp.ne.s32.totalorder %s38, %s39
      %p50 = scmp.eq.s32.totalorder %s30, 0
      %p51 = por %p49, %p50
      %p52 = scmp.ne.s32.totalorder %s38, %s39
      %p53 = scmp.eq.s32.totalorder %s31, 4
      %p54 = por %p52, %p53
      %p56 = scmp.ne.s32.totalorder %s39, %s55
      %p57 = scmp.eq.s32.totalorder %s31, 0
      %p58 = por %p56, %p57
      %s60 = sadd.s32 %s59, 1
      %p63 = scmp.eq.s32.totalorder %s25, 4
      %p64 = scmp.ne.s32.totalorder %s59, %s61
      %p65 = scmp.eq.s32.totalorder %s25, 0
      %p66 = por %p64, %p65
      %p67 = scmp.ne.s32.totalorder %s59, %s61
      %p68 = scmp.eq.s32.totalorder %s30, 4
      %p69 = por %p67, %p68
      %p70 = scmp.ne.s32.totalorder %s61, %s62
      %p71 = scmp.eq.s32.totalorder %s30, 0
      %p72 = por %p70, %p71
      %p73 = scmp.ne.s32.totalorder %s61, %s62
      %p74 = scmp.eq.s32.totalorder %s31, 4
      %p75 = por %p73, %p74
      %p77 = scmp.ne.s32.totalorder %s62, %s76
      %p78 = scmp.eq.s32.totalorder %s31, 0
      %p79 = por %p77, %p78
      %s81 = sadd.s32 %s80, 1
      %p84 = scmp.eq.s32.totalorder %s25, 4
      %p85 = scmp.ne.s32.totalorder %s80, %s82
      %p86 = scmp.eq.s32.totalorder %s25, 0
      %p87 = por %p85, %p86
      %p88 = scmp.ne.s32.totalorder %s80, %s82
      %p89 = scmp.eq.s32.totalorder %s30, 4
      %p90 = por %p88, %p89
      %p91 = scmp.ne.s32.totalorder %s82, %s83
      %p92 = scmp.eq.s32.totalorder %s30, 0
      %p93 = por %p91, %p92
      %p94 = scmp.ne.s32.totalorder %s82, %s83
      %p95 = scmp.eq.s32.totalorder %s31, 4
      %p96 = por %p94, %p95
      %p98 = scmp.ne.s32.totalorder %s83, %s97
      %p99 = scmp.eq.s32.totalorder %s31, 0
      %p100 = por %p98, %p99
      %s102 = sadd.s32 %s101, 1
      %p105 = scmp.eq.s32.totalorder %s25, 4
      %p106 = scmp.ne.s32.totalorder %s101, %s103
      %p107 = scmp.eq.s32.totalorder %s25, 0
      %p108 = por %p106, %p107
      %p109 = scmp.ne.s32.totalorder %s101, %s103
      %p110 = scmp.eq.s32.totalorder %s30, 4
      %p111 = por %p109, %p110
      %p112 = scmp.ne.s32.totalorder %s103, %s104
      %p113 = scmp.eq.s32.totalorder %s30, 0
      %p114 = por %p112, %p113
      %p115 = scmp.ne.s32.totalorder %s103, %s104
      %p116 = scmp.eq.s32.totalorder %s31, 4
      %p117 = por %p115, %p116
      %p119 = scmp.ne.s32.totalorder %s104, %s118
      %p120 = scmp.eq.s32.totalorder %s31, 0
      %p121 = por %p119, %p120
      %s123 = sadd.s32 %s122, 1
      %p126 = scmp.eq.s32.totalorder %s25, 4
      %p127 = scmp.ne.s32.totalorder %s122, %s124
      %p128 = scmp.eq.s32.totalorder %s25, 0
      %p129 = por %p127, %p128
      %p130 = scmp.ne.s32.totalorder %s122, %s124
      %p131 = scmp.eq.s32.totalorder %s30, 4
      %p132 = por %p130, %p131
      %p133 = scmp.ne.s32.totalorder %s124, %s125
      %p134 = scmp.eq.s32.totalorder %s30, 0
      %p135 = por %p133, %p134
      %p136 = scmp.ne.s32.totalorder %s124, %s125
      %p137 = scmp.eq.s32.totalorder %s31, 4
      %p138 = por %p136, %p137
      %p140 = scmp.ne.s32.totalorder %s125, %s139
      %p141 = scmp.eq.s32.totalorder %s31, 0
      %p142 = por %p140, %p141
      %s144 = sadd.s32 %s143, 1
      %p147 = scmp.eq.s32.totalorder %s25, 4
      %p148 = scmp.ne.s32.totalorder %s143, %s145
      %p149 = scmp.eq.s32.totalorder %s25, 0
      %p150 = por %p148, %p149
      %p151 = scmp.ne.s32.totalorder %s143, %s145
      %p152 = scmp.eq.s32.totalorder %s30, 4
      %p153 = por %p151, %p152
      %p154 = scmp.ne.s32.totalorder %s145, %s146
      %p155 = scmp.eq.s32.totalorder %s30, 0
      %p156 = por %p154, %p155
      %p157 = scmp.ne.s32.totalorder %s145, %s146
      %p158 = scmp.eq.s32.totalorder %s31, 4
      %p159 = por %p157, %p158
      %p161 = scmp.ne.s32.totalorder %s146, %s160
      %p162 = scmp.eq.s32.totalorder %s31, 0
      %p163 = por %p161, %p162
      %s165 = sadd.s32 %s164, 1
      %p168 = scmp.eq.s32.totalorder %s25, 4
      %p169 = scmp.ne.s32.totalorder %s164, %s166
      %p170 = scmp.eq.s32.totalorder %s25, 0
      %p171 = por %p169, %p170
      %p172 = scmp.ne.s32.totalorder %s164, %s166
      %p173 = scmp.eq.s32.totalorder %s30, 4
      %p174 = por %p172, %p173
      %p175 = scmp.ne.s32.totalorder %s166, %s167
      %p176 = scmp.eq.s32.totalorder %s30, 0
      %p177 = por %p175, %p176
      %p178 = scmp.ne.s32.totalorder %s166, %s167
      %p179 = scmp.eq.s32.totalorder %s31, 4
      %p180 = por %p178, %p179
      %p182 = scmp.ne.s32.totalorder %s167, %s181
      %p183 = scmp.eq.s32.totalorder %s31, 0
      %p184 = por %p182, %p183
      %s186 = sadd.s32 %s185, 1
      %p189 = scmp.eq.s32.totalorder %s25, 4
      %p190 = scmp.ne.s32.totalorder %s185, %s187
      %p191 = scmp.eq.s32.totalorder %s25, 0
      %p192 = por %p190, %p191
      %p193 = scmp.ne.s32.totalorder %s185, %s187
      %p194 = scmp.eq.s32.totalorder %s30, 4
      %p195 = por %p193, %p194
      %p196 = scmp.ne.s32.totalorder %s187, %s188
      %p197 = scmp.eq.s32.totalorder %s30, 0
      %p198 = por %p196, %p197
      %p199 = scmp.ne.s32.totalorder %s187, %s188
      %p200 = scmp.eq.s32.totalorder %s31, 4
      %p201 = por %p199, %p200
      %p203 = scmp.ne.s32.totalorder %s188, %s202
      %p204 = scmp.eq.s32.totalorder %s31, 0
      %p205 = por %p203, %p204
      %s207 = sadd.s32 %s206, 1
      %p210 = scmp.eq.s32.totalorder %s25, 4
      %p211 = scmp.ne.s32.totalorder %s206, %s208
      %p212 = scmp.eq.s32.totalorder %s25, 0
      %p213 = por %p211, %p212
      %p214 = scmp.ne.s32.totalorder %s206, %s208
      %p215 = scmp.eq.s32.totalorder %s30, 4
      %p216 = por %p214, %p215
      %p217 = scmp.ne.s32.totalorder %s208, %s209
      %p218 = scmp.eq.s32.totalorder %s30, 0
      %p219 = por %p217, %p218
      %p220 = scmp.ne.s32.totalorder %s208, %s209
      %p221 = scmp.eq.s32.totalorder %s31, 4
      %p222 = por %p220, %p221
      %p224 = scmp.ne.s32.totalorder %s209, %s223
      %p225 = scmp.eq.s32.totalorder %s31, 0
      %p226 = por %p224, %p225
      %s227 = ssub.s32 %s25, %s32
      %p228 = scmp.eq.s32.totalorder %s227, 0
      %s230 = sadd.s32 %s229, 1
      %s231 = scalar_select %p228, %s229, %s230
      %p234 = pneg %p228
      %p235 = scmp.eq.s32.totalorder %s25, 4
      %p236 = por %p234, %p235
      %p237 = scmp.ne.s32.totalorder %s229, %s232
      %p238 = scmp.eq.s32.totalorder %s25, 0
      %p239 = por %p237, %p238
      %p240 = scmp.ne.s32.totalorder %s229, %s232
      %p241 = scmp.eq.s32.totalorder %s30, 4
      %p242 = por %p240, %p241
      %p243 = scmp.ne.s32.totalorder %s232, %s233
      %p244 = scmp.eq.s32.totalorder %s30, 0
      %p245 = por %p243, %p244
      %p246 = scmp.ne.s32.totalorder %s232, %s233
      %p247 = scmp.eq.s32.totalorder %s31, 4
      %p248 = por %p246, %p247
      %p250 = scmp.ne.s32.totalorder %s233, %s249
      %p251 = scmp.eq.s32.totalorder %s31, 0
      %p252 = por %p250, %p251
      %p253 = scmp.le.s32.totalorder 1, %s25
      %p254 = scmp.lt.s32.totalorder %s25, 6
      %p255 = pnand %p253, %p254
      %p256 = pneg %p255
      // Predicated region
      $region9: #{_seq2seq_core.9} parent=5 // pred_check
        _
      $region10: #{_seq2seq_core.9} parent=5 // pred_check_branch
        %258 = sbr.rel (%p255) target = $region12
      $region11: #{_seq2seq_core.9} parent=5 // pred_region
        %s259 = ssub.s32 %s25, 1
        // Predicated region
        $region13: #{_seq2seq_core.9} parent=11 // pred_check
          %p260 = pneg %p72
        $region14: #{_seq2seq_core.9} parent=11 // pred_check_branch
          %262 = sbr.rel (%p260) target = $region16
        $region15: #{_seq2seq_core.9} parent=11 // pred_region
          _
        $region16: #{_seq2seq_core.9} parent=11 // pred_fallthru
          _
        // Predicated region
        $region17: #{_seq2seq_core.9} parent=11 // pred_check
          %p263 = pneg %p93
        $region18: #{_seq2seq_core.9} parent=11 // pred_check_branch
          %265 = sbr.rel (%p263) target = $region20
        $region19: #{_seq2seq_core.9} parent=11 // pred_region
          _
        $region20: #{_seq2seq_core.9} parent=11 // pred_fallthru
          _
        // Predicated region
        $region21: #{_seq2seq_core.9} parent=11 // pred_check
          %p266 = pneg %p114
        $region22: #{_seq2seq_core.9} parent=11 // pred_check_branch
          %268 = sbr.rel (%p266) target = $region24
        $region23: #{_seq2seq_core.9} parent=11 // pred_region
          _
        $region24: #{_seq2seq_core.9} parent=11 // pred_fallthru
          _
        // Predicated region
        $region25: #{_seq2seq_core.9} parent=11 // pred_check
          %p269 = pneg %p135
        $region26: #{_seq2seq_core.9} parent=11 // pred_check_branch
          %271 = sbr.rel (%p269) target = $region28
        $region27: #{_seq2seq_core.9} parent=11 // pred_region
          _
        $region28: #{_seq2seq_core.9} parent=11 // pred_fallthru
          _
        // Predicated region
        $region29: #{_seq2seq_core.9} parent=11 // pred_check
          %p272 = pneg %p156
        $region30: #{_seq2seq_core.9} parent=11 // pred_check_branch
          %274 = sbr.rel (%p272) target = $region32
        $region31: #{_seq2seq_core.9} parent=11 // pred_region
          _
        $region32: #{_seq2seq_core.9} parent=11 // pred_fallthru
          _
        // Predicated region
        $region33: #{_seq2seq_core.9} parent=11 // pred_check
          %p275 = pneg %p177
        $region34: #{_seq2seq_core.9} parent=11 // pred_check_branch
          %277 = sbr.rel (%p275) target = $region36
        $region35: #{_seq2seq_core.9} parent=11 // pred_region
          _
        $region36: #{_seq2seq_core.9} parent=11 // pred_fallthru
          _
        // Predicated region
        $region37: #{_seq2seq_core.9} parent=11 // pred_check
          %p278 = pneg %p198
        $region38: #{_seq2seq_core.9} parent=11 // pred_check_branch
          %280 = sbr.rel (%p278) target = $region40
        $region39: #{_seq2seq_core.9} parent=11 // pred_region
          _
        $region40: #{_seq2seq_core.9} parent=11 // pred_fallthru
          _
        // Predicated region
        $region41: #{_seq2seq_core.9} parent=11 // pred_check
          %p281 = pneg %p219
        $region42: #{_seq2seq_core.9} parent=11 // pred_check_branch
          %283 = sbr.rel (%p281) target = $region44
        $region43: #{_seq2seq_core.9} parent=11 // pred_region
          _
        $region44: #{_seq2seq_core.9} parent=11 // pred_fallthru
          _
      $region12: #{_seq2seq_core.9} parent=5 // pred_fallthru
        _
      %p284 = scmp.lt.s32.totalorder %s25, 5
      // Predicated region
      $region45: #{_seq2seq_core.9} parent=5 // pred_check
        %p285 = pneg %p284
      $region46: #{_seq2seq_core.9} parent=5 // pred_check_branch
        %287 = sbr.rel (%p285) target = $region48
      $region47: #{_seq2seq_core.9} parent=5 // pred_region
        // Predicated region
        $region49: #{_seq2seq_core.9} parent=47 // pred_check
          %p288 = pneg %p45
        $region50: #{_seq2seq_core.9} parent=47 // pred_check_branch
          %290 = sbr.rel (%p288) target = $region52
        $region51: #{_seq2seq_core.9} parent=47 // pred_region
          %p291 = scmp.lt.s32.totalorder %s25, 4
          %s292 = scalar_select %p291, %s25, 4
          %s293 = smul.addr %s292, 8
          %s294 = scalar_lea.vmem %s1, %s293
        $region52: #{_seq2seq_core.9} parent=47 // pred_fallthru
          _
      $region48: #{_seq2seq_core.9} parent=5 // pred_fallthru
        _
      %p295 = scmp.le.s32.totalorder 1, %s25
      %p296 = scmp.lt.s32.totalorder %s25, 6
      %p297 = pnand %p295, %p296
      %p298 = pneg %p297
      // Predicated region
      $region53: #{_seq2seq_core.9} parent=5 // pred_check
        _
      $region54: #{_seq2seq_core.9} parent=5 // pred_check_branch
        %300 = sbr.rel (%p297) target = $region56
      $region55: #{_seq2seq_core.9} parent=5 // pred_region
        %s301 = ssub.s32 %s25, 1
        %p302 = scmp.lt.s32.totalorder %s30, 4
        %s303 = scalar_select %p302, %s30, 4
        %s304 = smul.addr %s303, 8
        %s305 = scalar_lea.vmem %s1, %s304
        %p306 = pneg %p51
        %p307 = pneg %p48
        %p308 = pneg %p72
        %p309 = pneg %p69
        %p310 = pneg %p93
        %p311 = pneg %p90
        %p312 = pneg %p114
        %p313 = pneg %p111
        %p314 = pneg %p135
        %p315 = pneg %p132
        %p316 = pneg %p156
        %p317 = pneg %p153
        %p318 = pneg %p177
        %p319 = pneg %p174
        %p320 = pneg %p198
        %p321 = pneg %p195
        %p322 = pneg %p219
        %p323 = pneg %p216
        %p324 = pneg %p245
        %p325 = pneg %p242
        %s326 = sand.u32 %s232, 1
        %s327 = scalar_lea.sflag [#allocation8], %s326
        %s328 = sand.u32 %s232, 1
        %s329 = smul.addr %s328, 8
        %s330 = scalar_lea.vmem [#allocation7], %s329
        %p331 = scmp.lt.s32.totalorder %s30, 4
        %s332 = scalar_select %p331, %s30, 4
        %s333 = smul.addr %s332, 8
        %s334 = scalar_lea.vmem %s1, %s333
        %p336 = scmp.eq.s32.totalorder %s30, 0
        // Predicated region
        $region57: #{_seq2seq_core.9} parent=55 // pred_check
          %p337 = pneg %p336
        $region58: #{_seq2seq_core.9} parent=55 // pred_check_branch
          %339 = sbr.rel (%p337) target = $region60
        $region59: #{_seq2seq_core.9} parent=55 // pred_region
          %v340 = vld [vmem:[%s2] sm:$0xff]
          %v341 = vld [vmem:[%s2 + $0x8] sm:$0xff]
          %vm342 = vcmask 261120
          %343 = vst.msk [vmem:[#allocation2] sm:$0xff] %vm342, %v340
          %344 = vst.msk [vmem:[#allocation2 + $0x8] sm:$0xff] %vm342, %v341
          %v345 = vld [vmem:[%s3] sm:$0xff]
          %v346 = vld [vmem:[%s3 + $0x8] sm:$0xff]
          %347 = vst.msk [vmem:[#allocation3] sm:$0xff] %vm342, %v345
          %348 = vst.msk [vmem:[#allocation3 + $0x8] sm:$0xff] %vm342, %v346
          %vm349 = vcmask 7168
          %350 = vst.msk [vmem:[#allocation4] sm:$0xff] %vm349, 0
        $region60: #{_seq2seq_core.9} parent=55 // pred_fallthru
          _
        %s351 = sld [smem:[#allocation6 + %s30]]
        %v352 = vld [vmem:[%s334] sm:$0xff]
        %v353 = vstv %s351
        %v354 = vmul.u32 %v353, %v352
        %s355 = ssub.s32 1, %s351
        %v356 = vld [vmem:[#allocation4] sm:$0xff]
        %v357 = vstv %s355
        %v358 = vmul.u32 %v357, %v356
        %v359 = vadd.s32 %v354, %v358
        %v360 = vlaneseq
        %v361 = vand.u32 %v360, 127
        %362 = vset.pattern.permute.xlu0 0
        %363 = vperm.xlu0 %362, %v359
        %v364 = vpop.permute.xlu0 %363
        %vm365 = vcmp.eq.s32.totalorder %v361, %v364
        %v366 = vsel %vm365, 1, 0
        %v367 = vcvt.s32.f32 %v366
        %v368 = vpack.c.bf16 %v367, %v367
        %v369 = vld [vmem:[%s4] sm:$0xf]
        %v370 = vld [vmem:[%s4 + $0x4] sm:$0xf]
        %v371 = vld [vmem:[%s4 + $0x8] sm:$0xf]
        %v372 = vld [vmem:[%s4 + $0xc] sm:$0xf]
        %v373 = vld [vmem:[%s4 + $0x10] sm:$0xf]
        %v374 = vld [vmem:[%s4 + $0x14] sm:$0xf]
        %v375 = vld [vmem:[%s4 + $0x18] sm:$0xf]
        %v376 = vld [vmem:[%s4 + $0x1c] sm:$0xf]
        %v377 = vld [vmem:[%s4 + $0x20] sm:$0xf]
        %v378 = vld [vmem:[%s4 + $0x24] sm:$0xf]
        %v379 = vld [vmem:[%s4 + $0x28] sm:$0xf]
        %v380 = vld [vmem:[%s4 + $0x2c] sm:$0xf]
        %v381 = vld [vmem:[%s4 + $0x30] sm:$0xf]
        %v382 = vld [vmem:[%s4 + $0x34] sm:$0xf]
        %v383 = vld [vmem:[%s4 + $0x38] sm:$0xf]
        %v384 = vld [vmem:[%s4 + $0x3c] sm:$0xf]
        %v401 = vunpack.c.l.b16 %v369
        %v402 = vunpack.c.l.b16 %v370
        %v403 = vunpack.c.l.b16 %v371
        %v404 = vunpack.c.l.b16 %v372
        %v405 = vunpack.c.l.b16 %v373
        %v406 = vunpack.c.l.b16 %v374
        %v407 = vunpack.c.l.b16 %v375
        %v408 = vunpack.c.l.b16 %v376
        %v409 = vunpack.c.l.b16 %v377
        %v410 = vunpack.c.l.b16 %v378
        %v411 = vunpack.c.l.b16 %v379
        %v412 = vunpack.c.l.b16 %v380
        %v413 = vunpack.c.l.b16 %v381
        %v414 = vunpack.c.l.b16 %v382
        %v415 = vunpack.c.l.b16 %v383
        %v416 = vunpack.c.l.b16 %v384
        %v417 = vpack.c.b16 %v402, %v401
        %v418 = vpack.c.b16 %v404, %v403
        %v419 = vpack.c.b16 %v406, %v405
        %v420 = vpack.c.b16 %v408, %v407
        %v421 = vpack.c.b16 %v410, %v409
        %v422 = vpack.c.b16 %v412, %v411
        %v423 = vpack.c.b16 %v414, %v413
        %v424 = vpack.c.b16 %v416, %v415
        %433 = vmatprep.subr.bf16.mxu0 0
        %434 = vmatpush1.bf16.msra.mxu0 %v424
        %435 = vmatprep.subr.bf16.mxu0 0
        %436 = vmatpush1.bf16.msra.mxu0 %v423
        %437 = vmatprep.subr.bf16.mxu0 0
        %438 = vmatpush1.bf16.msra.mxu0 %v422
        %439 = vmatprep.subr.bf16.mxu0 0
        %440 = vmatpush1.bf16.msra.mxu0 %v421
        %441 = vmatprep.subr.bf16.mxu0 0
        %442 = vmatpush1.bf16.msra.mxu0 %v420
        %443 = vmatprep.subr.bf16.mxu0 0
        %444 = vmatpush1.bf16.msra.mxu0 %v419
        %445 = vmatprep.subr.bf16.mxu0 0
        %446 = vmatpush1.bf16.msra.mxu0 %v418
        %447 = vmatprep.subr.bf16.mxu0 0
        %448 = vmatpush1.bf16.msra.mxu0 %v417
        %449 = vmatprep.subr.bf16.mxu0 0
        %450 = vmatpush2.bf16.msra.mxu0 0
        %451 = vmatprep.subr.bf16.mxu0 0
        %452 = vmatpush2.bf16.msra.mxu0 0
        %453 = vmatprep.subr.bf16.mxu0 0
        %454 = vmatpush2.bf16.msra.mxu0 0
        %455 = vmatprep.subr.bf16.mxu0 0
        %456 = vmatpush2.bf16.msra.mxu0 0
        %457 = vmatprep.subr.bf16.mxu0 0
        %458 = vmatpush2.bf16.msra.mxu0 0
        %459 = vmatprep.subr.bf16.mxu0 0
        %460 = vmatpush2.bf16.msra.mxu0 0
        %461 = vmatprep.subr.bf16.mxu0 0
        %462 = vmatpush2.bf16.msra.mxu0 0
        %463 = vmatprep.subr.bf16.mxu0 0
        %464 = vmatpush2.bf16.msra.mxu0 0
        %465 = vmatprep.mubr.bf16.mxu0 0
        %466 = vmatmul.mubr.bf16.gmra.mxu0 %v368
        %v467 = vpop.f32.mrf.mxu0
        %v468 = vadd.f32 0.0, %v467
        %v469 = vpop.f32.mrf.mxu0
        %v470 = vpop.f32.mrf.mxu0
        %v471 = vpop.f32.mrf.mxu0
        %472 = vdwg.mxu0
        %v473 = vld [vmem:[#allocation2] sm:$0xff]
        %v474 = vld [vmem:[#allocation3] sm:$0xff]
        %v475 = vpack.c.bf16 %v468, %v468
        %v476 = vld [vmem:[%s5] sm:$0xf]
        %v477 = vld [vmem:[%s5 + $0x4] sm:$0xf]
        %v478 = vld [vmem:[%s5 + $0x8] sm:$0xf]
        %v479 = vld [vmem:[%s5 + $0xc] sm:$0xf]
        %v480 = vpack.c.bf16 %v473, %v473
        %v481 = vld [vmem:[%s6] sm:$0xf]
        %v482 = vld [vmem:[%s6 + $0x4] sm:$0xf]
        %v483 = vld [vmem:[%s6 + $0x8] sm:$0xf]
        %v484 = vld [vmem:[%s6 + $0xc] sm:$0xf]
        %v489 = vunpack.c.l.b16 %v481
        %v490 = vunpack.c.l.b16 %v482
        %v491 = vunpack.c.l.b16 %v483
        %v492 = vunpack.c.l.b16 %v484
        %v493 = vpack.c.b16 %v490, %v489
        %v494 = vpack.c.b16 %v492, %v491
        %vm497 = vcmask 261120
        %v499 = vsel %vm497, %v480, 0
        %501 = vmatprep.subr.bf16.mxu0 0
        %502 = vmatpush1.bf16.msra.mxu0 0
        %503 = vmatprep.subr.bf16.mxu0 0
        %504 = vmatpush1.bf16.msra.mxu0 0
        %505 = vmatprep.subr.bf16.mxu0 0
        %506 = vmatpush1.bf16.msra.mxu0 0
        %507 = vmatprep.subr.bf16.mxu0 0
        %508 = vmatpush1.bf16.msra.mxu0 0
        %509 = vmatprep.subr.bf16.mxu0 0
        %510 = vmatpush1.bf16.msra.mxu0 0
        %511 = vmatprep.subr.bf16.mxu0 0
        %512 = vmatpush1.bf16.msra.mxu0 0
        %513 = vmatprep.subr.bf16.mxu0 0
        %514 = vmatpush1.bf16.msra.mxu0 %v494
        %515 = vmatprep.subr.bf16.mxu0 0
        %516 = vmatpush1.bf16.msra.mxu0 %v493
        %517 = vmatprep.subr.bf16.mxu0 0
        %518 = vmatpush2.bf16.msra.mxu0 0
        %519 = vmatprep.subr.bf16.mxu0 0
        %520 = vmatpush2.bf16.msra.mxu0 0
        %521 = vmatprep.subr.bf16.mxu0 0
        %522 = vmatpush2.bf16.msra.mxu0 0
        %523 = vmatprep.subr.bf16.mxu0 0
        %524 = vmatpush2.bf16.msra.mxu0 0
        %525 = vmatprep.subr.bf16.mxu0 0
        %526 = vmatpush2.bf16.msra.mxu0 0
        %527 = vmatprep.subr.bf16.mxu0 0
        %528 = vmatpush2.bf16.msra.mxu0 0
        %529 = vmatprep.subr.bf16.mxu0 0
        %530 = vmatpush2.bf16.msra.mxu0 0
        %531 = vmatprep.subr.bf16.mxu0 0
        %532 = vmatpush2.bf16.msra.mxu0 0
        %533 = vmatprep.mubr.bf16.mxu0 0
        %534 = vmatmul.mubr.bf16.gmra.mxu0 %v499
        %v535 = vpop.f32.mrf.mxu0
        %v536 = vadd.f32 0.0, %v535
        %v537 = vpop.f32.mrf.mxu0
        %v538 = vpop.f32.mrf.mxu0
        %v539 = vpop.f32.mrf.mxu0
        %540 = vdwg.mxu0
        %v545 = vunpack.c.l.b16 %v476
        %v546 = vunpack.c.l.b16 %v477
        %v547 = vunpack.c.l.b16 %v478
        %v548 = vunpack.c.l.b16 %v479
        %v549 = vpack.c.b16 %v546, %v545
        %v550 = vpack.c.b16 %v548, %v547
        %v554 = vsel %vm497, %v475, 0
        %556 = vmatprep.subr.bf16.mxu0 0
        %557 = vmatpush1.bf16.msra.mxu0 0
        %558 = vmatprep.subr.bf16.mxu0 0
        %559 = vmatpush1.bf16.msra.mxu0 0
        %560 = vmatprep.subr.bf16.mxu0 0
        %561 = vmatpush1.bf16.msra.mxu0 0
        %562 = vmatprep.subr.bf16.mxu0 0
        %563 = vmatpush1.bf16.msra.mxu0 0
        %564 = vmatprep.subr.bf16.mxu0 0
        %565 = vmatpush1.bf16.msra.mxu0 0
        %566 = vmatprep.subr.bf16.mxu0 0
        %567 = vmatpush1.bf16.msra.mxu0 0
        %568 = vmatprep.subr.bf16.mxu0 0
        %569 = vmatpush1.bf16.msra.mxu0 %v550
        %570 = vmatprep.subr.bf16.mxu0 0
        %571 = vmatpush1.bf16.msra.mxu0 %v549
        %572 = vmatprep.subr.bf16.mxu0 0
        %573 = vmatpush2.bf16.msra.mxu0 0
        %574 = vmatprep.subr.bf16.mxu0 0
        %575 = vmatpush2.bf16.msra.mxu0 0
        %576 = vmatprep.subr.bf16.mxu0 0
        %577 = vmatpush2.bf16.msra.mxu0 0
        %578 = vmatprep.subr.bf16.mxu0 0
        %579 = vmatpush2.bf16.msra.mxu0 0
        %580 = vmatprep.subr.bf16.mxu0 0
        %581 = vmatpush2.bf16.msra.mxu0 0
        %582 = vmatprep.subr.bf16.mxu0 0
        %583 = vmatpush2.bf16.msra.mxu0 0
        %584 = vmatprep.subr.bf16.mxu0 0
        %585 = vmatpush2.bf16.msra.mxu0 0
        %586 = vmatprep.subr.bf16.mxu0 0
        %587 = vmatpush2.bf16.msra.mxu0 0
        %588 = vmatprep.mubr.bf16.mxu0 0
        %589 = vmatmul.mubr.bf16.gmra.mxu0 %v554
        %v590 = vpop.f32.mrf.mxu0
        %v591 = vadd.f32 %v536, %v590
        %v592 = vpop.f32.mrf.mxu0
        %v593 = vpop.f32.mrf.mxu0
        %v594 = vpop.f32.mrf.mxu0
        %595 = vdwg.mxu0
        %v596 = vld [vmem:[%s7] sm:$0x1]
        %v598 = vlaneseq
        %v599 = vshrl.u32 %v598, 7
        %v600 = vsub.s32 0, %v599
        %v601 = vrot.slane %v596, %v600
        %v603 = vadd.f32 %v591, %v601
        %vm604 = vcmp.ge.s32.totalorder %v361, 64
        %vm605 = vcmp.lt.s32.totalorder %v361, 96
        %vm606 = vmand %vm604, %vm605
        %v607 = vtanh.pop %v603
        %v608 = vxor.u32 %v603, 2147483648
        %v609 = vmul.f32 %v608, 1.442695
        %v610 = vpow.pop %v609
        %v611 = vadd.f32 %v610, 1.0
        %v612 = vrcp.pop %v611
        %v613 = vmul.f32 1.0, %v612
        %v614 = vsel %vm606, %v607, %v613
        %616 = vrot.lane.b32.xlu0 %v474, 32
        %v617 = vpop.permute.xlu0 %616
        %v619 = vmul.f32 %v614, %v617
        %621 = vrot.lane.b32.xlu0 %v614, 64
        %v622 = vpop.permute.xlu0 %621
        %v624 = vmul.f32 %v614, %v622
        %626 = vrot.lane.b32.xlu0 %v624, 32
        %v627 = vpop.permute.xlu0 %626
        %v629 = vadd.f32 %v619, %v627
        %v630 = vtanh.pop %v629
        %632 = vrot.lane.b32.xlu0 %v630, 64
        %v633 = vpop.permute.xlu0 %632
        %v635 = vmul.f32 %v614, %v633
        %637 = vrot.lane.b32.xlu0 %v635, 32
        %v638 = vpop.permute.xlu0 %637
        %640 = vst.msk [vmem:[#allocation2] sm:$0xff] %vm497, %v638
        %642 = vrot.lane.b32.xlu0 %v629, 96
        %v643 = vpop.permute.xlu0 %642
        %645 = vst.msk [vmem:[#allocation3] sm:$0xff] %vm497, %v643
        %s646 = scalar_lea.vmem [#allocation2], 8
        %v647 = vld [vmem:[%s646] sm:$0xff]
        %s648 = scalar_lea.vmem [#allocation3], 8
        %v649 = vld [vmem:[%s648] sm:$0xff]
        %v650 = vpack.c.bf16 %v635, %v635
        %s651 = scalar_lea.vmem %s5, 16
        %v652 = vld [vmem:[%s651] sm:$0xf]
        %v653 = vld [vmem:[%s651 + $0x4] sm:$0xf]
        %v654 = vld [vmem:[%s651 + $0x8] sm:$0xf]
        %v655 = vld [vmem:[%s651 + $0xc] sm:$0xf]
        %v656 = vpack.c.bf16 %v647, %v647
        %s657 = scalar_lea.vmem %s6, 16
        %v658 = vld [vmem:[%s657] sm:$0xf]
        %v659 = vld [vmem:[%s657 + $0x4] sm:$0xf]
        %v660 = vld [vmem:[%s657 + $0x8] sm:$0xf]
        %v661 = vld [vmem:[%s657 + $0xc] sm:$0xf]
        %v666 = vunpack.c.l.b16 %v658
        %v667 = vunpack.c.l.b16 %v659
        %v668 = vunpack.c.l.b16 %v660
        %v669 = vunpack.c.l.b16 %v661
        %v670 = vpack.c.b16 %v667, %v666
        %v671 = vpack.c.b16 %v669, %v668
        %v675 = vsel %vm497, %v656, 0
        %677 = vmatprep.subr.bf16.mxu0 0
        %678 = vmatpush1.bf16.msra.mxu0 0
        %679 = vmatprep.subr.bf16.mxu0 0
        %680 = vmatpush1.bf16.msra.mxu0 0
        %681 = vmatprep.subr.bf16.mxu0 0
        %682 = vmatpush1.bf16.msra.mxu0 0
        %683 = vmatprep.subr.bf16.mxu0 0
        %684 = vmatpush1.bf16.msra.mxu0 0
        %685 = vmatprep.subr.bf16.mxu0 0
        %686 = vmatpush1.bf16.msra.mxu0 0
        %687 = vmatprep.subr.bf16.mxu0 0
        %688 = vmatpush1.bf16.msra.mxu0 0
        %689 = vmatprep.subr.bf16.mxu0 0
        %690 = vmatpush1.bf16.msra.mxu0 %v671
        %691 = vmatprep.subr.bf16.mxu0 0
        %692 = vmatpush1.bf16.msra.mxu0 %v670
        %693 = vmatprep.subr.bf16.mxu0 0
        %694 = vmatpush2.bf16.msra.mxu0 0
        %695 = vmatprep.subr.bf16.mxu0 0
        %696 = vmatpush2.bf16.msra.mxu0 0
        %697 = vmatprep.subr.bf16.mxu0 0
        %698 = vmatpush2.bf16.msra.mxu0 0
        %699 = vmatprep.subr.bf16.mxu0 0
        %700 = vmatpush2.bf16.msra.mxu0 0
        %701 = vmatprep.subr.bf16.mxu0 0
        %702 = vmatpush2.bf16.msra.mxu0 0
        %703 = vmatprep.subr.bf16.mxu0 0
        %704 = vmatpush2.bf16.msra.mxu0 0
        %705 = vmatprep.subr.bf16.mxu0 0
        %706 = vmatpush2.bf16.msra.mxu0 0
        %707 = vmatprep.subr.bf16.mxu0 0
        %708 = vmatpush2.bf16.msra.mxu0 0
        %709 = vmatprep.mubr.bf16.mxu0 0
        %710 = vmatmul.mubr.bf16.gmra.mxu0 %v675
        %v711 = vpop.f32.mrf.mxu0
        %v712 = vadd.f32 0.0, %v711
        %v713 = vpop.f32.mrf.mxu0
        %v714 = vpop.f32.mrf.mxu0
        %v715 = vpop.f32.mrf.mxu0
        %716 = vdwg.mxu0
        %718 = vrot.lane.b32.xlu0 %v650, 32
        %v719 = vpop.permute.xlu0 %718
        %v724 = vunpack.c.l.b16 %v652
        %v725 = vunpack.c.l.b16 %v653
        %v726 = vunpack.c.l.b16 %v654
        %v727 = vunpack.c.l.b16 %v655
        %v728 = vpack.c.b16 %v725, %v724
        %v729 = vpack.c.b16 %v727, %v726
        %v733 = vsel %vm497, %v719, 0
        %735 = vmatprep.subr.bf16.mxu0 0
        %736 = vmatpush1.bf16.msra.mxu0 0
        %737 = vmatprep.subr.bf16.mxu0 0
        %738 = vmatpush1.bf16.msra.mxu0 0
        %739 = vmatprep.subr.bf16.mxu0 0
        %740 = vmatpush1.bf16.msra.mxu0 0
        %741 = vmatprep.subr.bf16.mxu0 0
        %742 = vmatpush1.bf16.msra.mxu0 0
        %743 = vmatprep.subr.bf16.mxu0 0
        %744 = vmatpush1.bf16.msra.mxu0 0
        %745 = vmatprep.subr.bf16.mxu0 0
        %746 = vmatpush1.bf16.msra.mxu0 0
        %747 = vmatprep.subr.bf16.mxu0 0
        %748 = vmatpush1.bf16.msra.mxu0 %v729
        %749 = vmatprep.subr.bf16.mxu0 0
        %750 = vmatpush1.bf16.msra.mxu0 %v728
        %751 = vmatprep.subr.bf16.mxu0 0
        %752 = vmatpush2.bf16.msra.mxu0 0
        %753 = vmatprep.subr.bf16.mxu0 0
        %754 = vmatpush2.bf16.msra.mxu0 0
        %755 = vmatprep.subr.bf16.mxu0 0
        %756 = vmatpush2.bf16.msra.mxu0 0
        %757 = vmatprep.subr.bf16.mxu0 0
        %758 = vmatpush2.bf16.msra.mxu0 0
        %759 = vmatprep.subr.bf16.mxu0 0
        %760 = vmatpush2.bf16.msra.mxu0 0
        %761 = vmatprep.subr.bf16.mxu0 0
        %762 = vmatpush2.bf16.msra.mxu0 0
        %763 = vmatprep.subr.bf16.mxu0 0
        %764 = vmatpush2.bf16.msra.mxu0 0
        %765 = vmatprep.subr.bf16.mxu0 0
        %766 = vmatpush2.bf16.msra.mxu0 0
        %767 = vmatprep.mubr.bf16.mxu0 0
        %768 = vmatmul.mubr.bf16.gmra.mxu0 %v733
        %v769 = vpop.f32.mrf.mxu0
        %v770 = vadd.f32 %v712, %v769
        %v771 = vpop.f32.mrf.mxu0
        %v772 = vpop.f32.mrf.mxu0
        %v773 = vpop.f32.mrf.mxu0
        %774 = vdwg.mxu0
        %s775 = scalar_lea.vmem %s7, 1
        %v776 = vld [vmem:[%s775] sm:$0x1]
        %v778 = vlaneseq
        %v779 = vshrl.u32 %v778, 7
        %v780 = vsub.s32 0, %v779
        %v781 = vrot.slane %v776, %v780
        %v783 = vadd.f32 %v770, %v781
        %v784 = vtanh.pop %v783
        %v785 = vxor.u32 %v783, 2147483648
        %v786 = vmul.f32 %v785, 1.442695
        %v787 = vpow.pop %v786
        %v788 = vadd.f32 %v787, 1.0
        %v789 = vrcp.pop %v788
        %v790 = vmul.f32 1.0, %v789
        %v791 = vsel %vm606, %v784, %v790
        %793 = vrot.lane.b32.xlu0 %v649, 32
        %v794 = vpop.permute.xlu0 %793
        %v796 = vmul.f32 %v791, %v794
        %798 = vrot.lane.b32.xlu0 %v791, 64
        %v799 = vpop.permute.xlu0 %798
        %v801 = vmul.f32 %v791, %v799
        %803 = vrot.lane.b32.xlu0 %v801, 32
        %v804 = vpop.permute.xlu0 %803
        %v806 = vadd.f32 %v796, %v804
        %v807 = vtanh.pop %v806
        %809 = vrot.lane.b32.xlu0 %v807, 64
        %v810 = vpop.permute.xlu0 %809
        %v812 = vmul.f32 %v791, %v810
        %814 = vrot.lane.b32.xlu0 %v812, 32
        %v815 = vpop.permute.xlu0 %814
        %817 = vst.msk [vmem:[%s646] sm:$0xff] %vm497, %v815
        %819 = vrot.lane.b32.xlu0 %v806, 96
        %v820 = vpop.permute.xlu0 %819
        %822 = vst.msk [vmem:[%s648] sm:$0xff] %vm497, %v820
        %v823 = vpack.c.bf16 %v812, %v812
        %v824 = vld [vmem:[%s8] sm:$0xf]
        %v825 = vld [vmem:[%s8 + $0x4] sm:$0xf]
        %v826 = vld [vmem:[%s8 + $0x8] sm:$0xf]
        %v827 = vld [vmem:[%s8 + $0xc] sm:$0xf]
        %v828 = vld [vmem:[%s9] sm:$0x1]
        %v830 = vlaneseq
        %v831 = vshrl.u32 %v830, 7
        %v832 = vsub.s32 0, %v831
        %v833 = vrot.slane %v828, %v832
        %836 = vrot.lane.b32.xlu0 %v823, 32
        %v837 = vpop.permute.xlu0 %836
        %v842 = vunpack.c.l.b16 %v824
        %v843 = vunpack.c.l.b16 %v825
        %v844 = vunpack.c.l.b16 %v826
        %v845 = vunpack.c.l.b16 %v827
        %v846 = vpack.c.b16 %v843, %v842
        %v847 = vpack.c.b16 %v845, %v844
        %v851 = vsel %vm497, %v837, 0
        %853 = vmatprep.subr.bf16.mxu0 0
        %854 = vmatpush1.bf16.msra.mxu0 0
        %855 = vmatprep.subr.bf16.mxu0 0
        %856 = vmatpush1.bf16.msra.mxu0 0
        %857 = vmatprep.subr.bf16.mxu0 0
        %858 = vmatpush1.bf16.msra.mxu0 0
        %859 = vmatprep.subr.bf16.mxu0 0
        %860 = vmatpush1.bf16.msra.mxu0 0
        %861 = vmatprep.subr.bf16.mxu0 0
        %862 = vmatpush1.bf16.msra.mxu0 0
        %863 = vmatprep.subr.bf16.mxu0 0
        %864 = vmatpush1.bf16.msra.mxu0 0
        %865 = vmatprep.subr.bf16.mxu0 0
        %866 = vmatpush1.bf16.msra.mxu0 %v847
        %867 = vmatprep.subr.bf16.mxu0 0
        %868 = vmatpush1.bf16.msra.mxu0 %v846
        %869 = vmatprep.subr.bf16.mxu0 0
        %870 = vmatpush2.bf16.msra.mxu0 0
        %871 = vmatprep.subr.bf16.mxu0 0
        %872 = vmatpush2.bf16.msra.mxu0 0
        %873 = vmatprep.subr.bf16.mxu0 0
        %874 = vmatpush2.bf16.msra.mxu0 0
        %875 = vmatprep.subr.bf16.mxu0 0
        %876 = vmatpush2.bf16.msra.mxu0 0
        %877 = vmatprep.subr.bf16.mxu0 0
        %878 = vmatpush2.bf16.msra.mxu0 0
        %879 = vmatprep.subr.bf16.mxu0 0
        %880 = vmatpush2.bf16.msra.mxu0 0
        %881 = vmatprep.subr.bf16.mxu0 0
        %882 = vmatpush2.bf16.msra.mxu0 0
        %883 = vmatprep.subr.bf16.mxu0 0
        %884 = vmatpush2.bf16.msra.mxu0 0
        %885 = vmatprep.mubr.bf16.mxu0 0
        %886 = vmatmul.mubr.bf16.gmra.mxu0 %v851
        %v887 = vpop.f32.mrf.mxu0
        %v888 = vadd.f32 %v833, %v887
        %v889 = vpop.f32.mrf.mxu0
        %v890 = vpop.f32.mrf.mxu0
        %v891 = vpop.f32.mrf.mxu0
        %892 = vdwg.mxu0
        %893 = vst [vmem:[%s330] sm:$0xff] %v888
        %894 = vmax.xlane.f32.xlu0 %v888
        %v895 = vpop.xlane.xlu0 %894
        %vm896 = vcmp.ge.f32.partialorder %v888, %v895
        %v897 = vcvt.s32.f32 %v361
        %v898 = vsel %vm896, %v897, 128.0
        %899 = vmin.xlane.f32.xlu0 %v898
        %v900 = vpop.xlane.xlu0 %899
        %v901 = vcvt.f32.s32.to.zero.pseudo %v900
        %vm902 = vcmask 7168
        %903 = vst.msk [vmem:[#allocation4] sm:$0xff] %vm902, %v901
        %s904 = sand.u32 %s232, 1
        %s905 = scalar_lea.sflag [#allocation8], %s904
        %s906 = sand.u32 %s232, 1
        %s907 = smul.addr %s906, 8
        %s908 = scalar_lea.vmem [#allocation7], %s907
        // Predicated region
        $region61: #{_seq2seq_core.9} parent=55 // pred_check
          %p909 = pneg %p242
        $region62: #{_seq2seq_core.9} parent=55 // pred_check_branch
          %911 = sbr.rel (%p909) target = $region64
        $region63: #{_seq2seq_core.9} parent=55 // pred_region
          %s913 = ssub.s32 128, 128
          %914 = vsyncadd %s905, %s913
          %s915 = smul.addr %s30, 128
          %s916 = scalar_lea.hbm %s10, %s915
          %s918 = sshll.u32 %s908, 4
          %s919 = int_to_ptr.vmem [resolvable:$true] %s918
          %921 = dma.vmem_to_hbm [thread:$0]  %s919, 128, %s916, %s905
        $region64: #{_seq2seq_core.9} parent=55 // pred_fallthru
          _
      $region56: #{_seq2seq_core.9} parent=5 // pred_fallthru
        _
      %p922 = scmp.le.s32.totalorder 2, %s25
      // Predicated region
      $region65: #{_seq2seq_core.9} parent=5 // pred_check
        %p923 = pneg %p922
      $region66: #{_seq2seq_core.9} parent=5 // pred_check_branch
        %925 = sbr.rel (%p923) target = $region68
      $region67: #{_seq2seq_core.9} parent=5 // pred_region
        %s926 = ssub.s32 %s25, 2
        // Predicated region
        $region69: #{_seq2seq_core.9} parent=67 // pred_check
          %p927 = pneg %p248
        $region70: #{_seq2seq_core.9} parent=67 // pred_check_branch
          %929 = sbr.rel (%p927) target = $region72
        $region71: #{_seq2seq_core.9} parent=67 // pred_region
          %s930 = sand.u32 %s233, 1
          %s931 = scalar_lea.sflag [#allocation8], %s930
          %s932 = sand.u32 %s233, 1
          %s933 = smul.addr %s932, 8
          %s934 = scalar_lea.vmem [#allocation7], %s933
          %935 = dma.done %s931, 128
        $region72: #{_seq2seq_core.9} parent=67 // pred_fallthru
          _
      $region68: #{_seq2seq_core.9} parent=5 // pred_fallthru
        _
    $region6: #{_seq2seq_core.9} parent=1 // loop_footer
      %s29 = sadd.s32 1, %s25
    $region7: #{_seq2seq_core.9} parent=1 // loop_footer_branch
      %24 = sbr.rel target = $region3
    $region8: #{_seq2seq_core.9} parent=1 // loop_exit
      _
    %936 = vsyncpa [#allocation8], 1
    %s937 = scalar_lea.sflag [#allocation8], 1
    %938 = vsyncpa %s937, 1

</llo_original>
